<compile_context>
chip_gen: v6e
topology: v6e:2x2x1
jax: 0.10.0
libtpu: 0.0.40
codegen_flags: <defaults>
</compile_context>

<pallas_src>
import jax
import jax.numpy as jnp
from jax import lax
from jax.experimental import pallas as pl
from jax.experimental.pallas import tpu as pltpu

_LANE = 128
_SUBLANE = 8
_VMEM_BUDGET = 40 * 1024 * 1024   # leave headroom under v7x's 64 MiB VMEM


def _round_up(a, b):
    return (a + b - 1) // b * b


# ----------------------------- Pallas kernels -----------------------------

def _conv_matmul_kernel(p_ref, w_ref, b_ref, o_ref):
    """Grid = (M tiles, K tiles).  o[m_tile] = bias + sum_k p[m_tile, k] @ w[k].

    The output block index only depends on the M-tile axis, so it stays
    resident in VMEM across the K reduction and is used directly as the f32
    accumulator (no scratch).  bf16 inputs, f32 MXU accumulation.
    """
    k = pl.program_id(1)

    @pl.when(k == 0)
    def _():
        o_ref[...] = jnp.zeros_like(o_ref) + b_ref[...]   # broadcast bias init

    o_ref[...] += jnp.dot(p_ref[...], w_ref[...],
                          preferred_element_type=jnp.float32)


def _maxpool_kernel(w_ref, o_ref):
    """Max-reduce over the leading window axis: out[m, c] = max_k win[k, m, c]."""
    acc = w_ref[0]
    for k in range(1, w_ref.shape[0]):
        acc = jnp.maximum(acc, w_ref[k])
    o_ref[...] = acc


# ----------------------------- tiling helpers ------------------------------

def _pick_tk(kpad):
    # kpad is a multiple of 128; pick the largest "nice" divisor <= 1024.
    for cand in (1024, 512, 384, 256, 128):
        if kpad % cand == 0:
            return cand
    return _LANE


def _pick_tm(m, tk, cpad):
    tm = min(512, _round_up(m, _SUBLANE))

    def usage(t):
        patches = 2 * t * tk * 2          # bf16, double-buffered
        weights = 2 * tk * cpad * 2       # bf16, double-buffered
        out = 2 * t * cpad * 4            # f32 resident output (conservative x2)
        return patches + weights + out

    while tm > _SUBLANE and usage(tm) > _VMEM_BUDGET:
        tm //= 2
    return max(_SUBLANE, (tm // _SUBLANE) * _SUBLANE)


# ----------------------------- layer wrappers -----------------------------

def conv3d_pallas(x, w, b, stride, padding):
    """x: (N, D, H, W, Cin); w: (Cout, Cin, KD, KH, KW) [PyTorch layout]; b: (Cout,)."""
    N, D, H, W, Cin = x.shape
    Cout, _, KD, KH, KW = w.shape
    sd, sh, sw = stride
    pd, ph, pw = padding
    Do = (D + 2 * pd - KD) // sd + 1
    Ho = (H + 2 * ph - KH) // sh + 1
    Wo = (W + 2 * pw - KW) // sw + 1
    M = N * Do * Ho * Wo
    K = KD * KH * KW * Cin

    # im2col as a single lane-dense (M, K) bf16 slab; column order is
    # (kd, kh, kw, cin) to match the weight reshape below.
    # TODO(synk): at production channel counts replace this HBM im2col with
    # in-kernel strided DMAs from a pl.ANY padded input to cut activation HBM
    # traffic by ~T x.
    xp = jnp.pad(x, ((0, 0), (pd, pd), (ph, ph), (pw, pw), (0, 0)))
    xp = xp.astype(jnp.bfloat16)
    taps = []
    for kd in range(KD):
        for kh in range(KH):
            for kw in range(KW):
                sl = xp[:,
                        kd:kd + (Do - 1) * sd + 1:sd,
                        kh:kh + (Ho - 1) * sh + 1:sh,
                        kw:kw + (Wo - 1) * sw + 1:sw, :]
                taps.append(sl.reshape(M, Cin))
    patches = jnp.concatenate(taps, axis=1)                     # (M, K) bf16

    w2 = jnp.transpose(w, (2, 3, 4, 1, 0)).reshape(K, Cout)     # (K, Cout)

    # Lane/sublane-dense padding and tile selection.
    Cpad = _round_up(Cout, _LANE)
    Kpad = _round_up(K, _LANE)
    tk = _pick_tk(Kpad)
    tm = _pick_tm(M, tk, Cpad)
    Mpad = _round_up(M, tm)

    patches = jnp.pad(patches, ((0, Mpad - M), (0, Kpad - K)))
    w2 = jnp.pad(w2, ((0, Kpad - K), (0, Cpad - Cout))).astype(jnp.bfloat16)
    b2 = jnp.pad(b.astype(jnp.float32), (0, Cpad - Cout)).reshape(1, Cpad)

    grid = (Mpad // tm, Kpad // tk)
    out2d = pl.pallas_call(
        _conv_matmul_kernel,
        out_shape=jax.ShapeDtypeStruct((Mpad, Cpad), jnp.float32),
        grid_spec=pltpu.PrefetchScalarGridSpec(
            num_scalar_prefetch=0,
            grid=grid,
            in_specs=[
                pl.BlockSpec((tm, tk), lambda i, k: (i, k)),        # patches
                pl.BlockSpec((tk, Cpad), lambda i, k: (k, 0)),      # weights
                pl.BlockSpec((1, Cpad), lambda i, k: (0, 0)),       # bias (fetched once)
            ],
            out_specs=pl.BlockSpec((tm, Cpad), lambda i, k: (i, 0)),
        ),
        compiler_params=pltpu.CompilerParams(
            dimension_semantics=("parallel", "arbitrary"),
            vmem_limit_bytes=48 * 1024 * 1024),
    )(patches, w2, b2)

    out2d = out2d[:M, :Cout].astype(x.dtype)
    return out2d.reshape(N, Do, Ho, Wo, Cout)


def maxpool3d_pallas(x, pool):
    """x: (N, D, H, W, C); pool kernel == stride (as in the module)."""
    N, D, H, W, C = x.shape
    kd, kh, kw = pool
    Do, Ho, Wo = D // kd, H // kh, W // kw
    K = kd * kh * kw
    M = N * Do * Ho * Wo

    # Window axis to front (JAX layout glue): (K, M, C).
    win = x[:, :Do * kd, :Ho * kh, :Wo * kw, :]
    win = win.reshape(N, Do, kd, Ho, kh, Wo, kw, C)
    win = jnp.transpose(win, (2, 4, 6, 0, 1, 3, 5, 7)).reshape(K, M, C)

    tm = min(512, _round_up(M, _SUBLANE))
    Mpad = _round_up(M, tm)
    if Mpad != M:
        win = jnp.pad(win, ((0, 0), (0, Mpad - M), (0, 0)))

    out2d = pl.pallas_call(
        _maxpool_kernel,
        out_shape=jax.ShapeDtypeStruct((Mpad, C), x.dtype),
        grid_spec=pltpu.PrefetchScalarGridSpec(
            num_scalar_prefetch=0,
            grid=(Mpad // tm,),
            in_specs=[pl.BlockSpec((K, tm, C), lambda i: (0, i, 0))],
            out_specs=pl.BlockSpec((tm, C), lambda i: (i, 0)),
        ),
        compiler_params=pltpu.CompilerParams(
            dimension_semantics=("parallel",)),
    )(win)
    return out2d[:M].reshape(N, Do, Ho, Wo, C)


# ----------------------------- Encoder module -----------------------------

def init_encoder_params(key, c_in=8, c1=16, c2=32, c3=32):
    def conv_init(k, cout, cin, ksz):
        kw_, kb_ = jax.random.split(k)
        fan_in = cin * ksz[0] * ksz[1] * ksz[2]
        w = jax.random.normal(kw_, (cout, cin) + ksz, jnp.float32) / jnp.sqrt(fan_in)
        b = jax.random.normal(kb_, (cout,), jnp.float32) * 0.01
        return w, b

    k1, k2, k3 = jax.random.split(key, 3)
    return {
        "conv1": conv_init(k1, c1, c_in, (3, 3, 3)),
        "conv2": conv_init(k2, c2, c1, (4, 4, 4)),
        "conv3": conv_init(k3, c3, c2, (4, 3, 3)),
    }


def encoder_forward(params, x_ncdhw):
    x = jnp.transpose(x_ncdhw, (0, 2, 3, 4, 1))          # NCDHW -> NDHWC
    w1, b1 = params["conv1"]
    w2, b2 = params["conv2"]
    w3, b3 = params["conv3"]
    x = conv3d_pallas(x, w1, b1, (1, 1, 1), (1, 1, 1))    # conv1
    x = maxpool3d_pallas(x, (1, 2, 2))                    # maxpool1
    x = conv3d_pallas(x, w2, b2, (2, 2, 2), (1, 1, 1))    # conv2
    x = maxpool3d_pallas(x, (2, 2, 2))                    # maxpool2
    x = conv3d_pallas(x, w3, b3, (2, 2, 2), (1, 1, 1))    # conv3
    return jnp.transpose(x, (0, 4, 1, 2, 3))              # NDHWC -> NCDHW


# ------------------------- pure-JAX reference check ------------------------

def _conv_ref(x, w, b, stride, padding):
    # Mirror the kernel's numerics: bf16 MXU inputs, f32 accumulation.
    xq = x.astype(jnp.bfloat16).astype(jnp.float32)
    wq = jnp.transpose(w, (2, 3, 4, 1, 0)).astype(jnp.bfloat16).astype(jnp.float32)
    out = lax.conv_general_dilated(
        xq, wq, window_strides=stride,
        padding=[(p, p) for p in padding],
        dimension_numbers=("NDHWC", "DHWIO", "NDHWC"))
    return out + b


def _pool_ref(x, pool):
    dims = (1,) + pool + (1,)
    return lax.reduce_window(x, -jnp.inf, lax.max, dims, dims, "VALID")


def encoder_ref(params, x_ncdhw):
    x = jnp.transpose(x_ncdhw, (0, 2, 3, 4, 1))
    w1, b1 = params["conv1"]
    w2, b2 = params["conv2"]
    w3, b3 = params["conv3"]
    x = _conv_ref(x, w1, b1, (1, 1, 1), (1, 1, 1))
    x = _pool_ref(x, (1, 2, 2))
    x = _conv_ref(x, w2, b2, (2, 2, 2), (1, 1, 1))
    x = _pool_ref(x, (2, 2, 2))
    x = _conv_ref(x, w3, b3, (2, 2, 2), (1, 1, 1))
    return jnp.transpose(x, (0, 4, 1, 2, 3))


# ----------------------------------- main ----------------------------------

if __name__ == "__main__":
    key = jax.random.PRNGKey(0)
    kx, kp = jax.random.split(key)

    # Small shapes consistent with the module structure (channels scaled down).
    N, C_in, D, H, W = 2, 8, 8, 16, 16
    x = jax.random.normal(kx, (N, C_in, D, H, W), jnp.float32)
    params = init_encoder_params(kp, c_in=C_in)

    out = jax.jit(encoder_forward)(params, x)
    out = jax.block_until_ready(out)

    assert out.shape == (N, 32, 1, 1, 1), out.shape
    ref = encoder_ref(params, x)
    if not jnp.allclose(out, ref, atol=2e-2, rtol=2e-2):
        err = jnp.max(jnp.abs(out - ref))
        raise AssertionError(
            f"Pallas encoder does not match JAX reference (max abs err {err})")
    print("KERNEL_OK")
</pallas_src>

<mosaic_0001>
module attributes {stable_mosaic.version = 11 : i64} {
  func.func @_conv_matmul_kernel(%arg0: i32, %arg1: i32, %arg2: memref<512x256xbf16, #tpu.memory_space<vmem>>, %arg3: memref<256x128xbf16, #tpu.memory_space<vmem>>, %arg4: memref<1x128xf32, #tpu.memory_space<vmem>>, %arg5: memref<512x128xf32, #tpu.memory_space<vmem>>) attributes {dimension_semantics = [#tpu.dimension_semantics<parallel>, #tpu.dimension_semantics<arbitrary>], iteration_bounds = array<i64: 8, 1>, scalar_prefetch = 0 : i64, scratch_operands = 0 : i64, tpu.core_type = #tpu.core_type<tc>, window_params = [{transform_indices = @transform_0, window_bounds = array<i64: 512, 256>}, {transform_indices = @transform_1, window_bounds = array<i64: 256, 128>}, {pipeline_mode = #tpu.pipeline_mode<synchronous>, transform_indices = @transform_2, window_bounds = array<i64: 1, 128>}, {transform_indices = @transform_3, window_bounds = array<i64: 512, 128>}]} {
    %c0_i32 = arith.constant 0 : i32
    %0 = arith.cmpi eq, %arg1, %c0_i32 : i32
    %1 = arith.extui %0 : i1 to i32
    %c0_i32_0 = arith.constant 0 : i32
    %2 = arith.cmpi ne, %1, %c0_i32_0 : i32
    scf.if %2 {
      %cst_8 = arith.constant 0.000000e+00 : f32
      %9 = vector.broadcast %cst_8 : f32 to vector<512x128xf32>
      %c0_9 = arith.constant 0 : index
      %c0_10 = arith.constant 0 : index
      %10 = vector.load %arg4[%c0_9, %c0_10] : memref<1x128xf32, #tpu.memory_space<vmem>>, vector<1x128xf32>
      %11 = vector.broadcast %10 : vector<1x128xf32> to vector<512x128xf32>
      %12 = arith.addf %9, %11 : vector<512x128xf32>
      %c0_11 = arith.constant 0 : index
      %c0_12 = arith.constant 0 : index
      %13 = vector.load %arg5[%c0_11, %c0_12] : memref<512x128xf32, #tpu.memory_space<vmem>>, vector<512x128xf32>
      tpu.vector_store %arg5[%c0_11, %c0_12], %12 {strides = array<i32>} : memref<512x128xf32, #tpu.memory_space<vmem>>, vector<512x128xf32>,
    } else {
    }
    %c0 = arith.constant 0 : index
    %c0_1 = arith.constant 0 : index
    %3 = vector.load %arg5[%c0, %c0_1] : memref<512x128xf32, #tpu.memory_space<vmem>>, vector<512x128xf32>
    %c0_2 = arith.constant 0 : index
    %c0_3 = arith.constant 0 : index
    %4 = vector.load %arg2[%c0_2, %c0_3] : memref<512x256xbf16, #tpu.memory_space<vmem>>, vector<512x256xbf16>
    %c0_4 = arith.constant 0 : index
    %c0_5 = arith.constant 0 : index
    %5 = vector.load %arg3[%c0_4, %c0_5] : memref<256x128xbf16, #tpu.memory_space<vmem>>, vector<256x128xbf16>
    %cst = arith.constant dense<0.000000e+00> : vector<512x128xf32>
    %6 = tpu.matmul %4, %5, %cst {dimension_numbers = #tpu.dot_dimension_numbers<[1], [0], [0], [1], [0, 0, 1, 1], [], []>} : vector<512x256xbf16>, vector<256x128xbf16>, vector<512x128xf32> -> vector<512x128xf32>
    %7 = arith.addf %3, %6 : vector<512x128xf32>
    %c0_6 = arith.constant 0 : index
    %c0_7 = arith.constant 0 : index
    %8 = vector.load %arg5[%c0_6, %c0_7] : memref<512x128xf32, #tpu.memory_space<vmem>>, vector<512x128xf32>
    tpu.vector_store %arg5[%c0_6, %c0_7], %7 {strides = array<i32>} : memref<512x128xf32, #tpu.memory_space<vmem>>, vector<512x128xf32>,
    return
  }
  func.func @transform_0(%arg0: i32, %arg1: i32) -> (i32, i32) {
    %c0_i32 = arith.constant 0 : i32
    return %arg0, %arg1 : i32, i32
  }
  func.func @transform_1(%arg0: i32, %arg1: i32) -> (i32, i32) {
    %c0_i32 = arith.constant 0 : i32
    %c0_i32_0 = arith.constant 0 : i32
    return %arg1, %c0_i32 : i32, i32
  }
  func.func @transform_2(%arg0: i32, %arg1: i32) -> (i32, i32) {
    %c0_i32 = arith.constant 0 : i32
    %c0_i32_0 = arith.constant 0 : i32
    %c0_i32_1 = arith.constant 0 : i32
    return %c0_i32, %c0_i32_0 : i32, i32
  }
  func.func @transform_3(%arg0: i32, %arg1: i32) -> (i32, i32) {
    %c0_i32 = arith.constant 0 : i32
    %c0_i32_0 = arith.constant 0 : i32
    return %arg0, %c0_i32 : i32, i32
  }
}

module attributes {stable_mosaic.version = 11 : i64} {
  func.func @_maxpool_kernel(%arg0: i32, %arg1: memref<4x512x16xf32, #tpu.memory_space<vmem>>, %arg2: memref<512x16xf32, #tpu.memory_space<vmem>>) attributes {dimension_semantics = [#tpu.dimension_semantics<parallel>], iteration_bounds = array<i64: 2>, scalar_prefetch = 0 : i64, scratch_operands = 0 : i64, tpu.core_type = #tpu.core_type<tc>, window_params = [{transform_indices = @transform_0, window_bounds = array<i64: 4, 512, 16>}, {transform_indices = @transform_1, window_bounds = array<i64: 512, 16>}]} {
    %c0 = arith.constant 0 : index
    %c0_0 = arith.constant 0 : index
    %c0_1 = arith.constant 0 : index
    %0 = vector.load %arg1[%c0, %c0_0, %c0_1] : memref<4x512x16xf32, #tpu.memory_space<vmem>>, vector<1x512x16xf32>
    %1 = vector.shape_cast %0 : vector<1x512x16xf32> to vector<512x16xf32>
    %c1 = arith.constant 1 : index
    %c0_2 = arith.constant 0 : index
    %c0_3 = arith.constant 0 : index
    %2 = vector.load %arg1[%c1, %c0_2, %c0_3] : memref<4x512x16xf32, #tpu.memory_space<vmem>>, vector<1x512x16xf32>
    %3 = vector.shape_cast %2 : vector<1x512x16xf32> to vector<512x16xf32>
    %4 = arith.maximumf %1, %3 : vector<512x16xf32>
    %c2 = arith.constant 2 : index
    %c0_4 = arith.constant 0 : index
    %c0_5 = arith.constant 0 : index
    %5 = vector.load %arg1[%c2, %c0_4, %c0_5] : memref<4x512x16xf32, #tpu.memory_space<vmem>>, vector<1x512x16xf32>
    %6 = vector.shape_cast %5 : vector<1x512x16xf32> to vector<512x16xf32>
    %7 = arith.maximumf %4, %6 : vector<512x16xf32>
    %c3 = arith.constant 3 : index
    %c0_6 = arith.constant 0 : index
    %c0_7 = arith.constant 0 : index
    %8 = vector.load %arg1[%c3, %c0_6, %c0_7] : memref<4x512x16xf32, #tpu.memory_space<vmem>>, vector<1x512x16xf32>
    %9 = vector.shape_cast %8 : vector<1x512x16xf32> to vector<512x16xf32>
    %10 = arith.maximumf %7, %9 : vector<512x16xf32>
    %c0_8 = arith.constant 0 : index
    %c0_9 = arith.constant 0 : index
    %11 = vector.load %arg2[%c0_8, %c0_9] : memref<512x16xf32, #tpu.memory_space<vmem>>, vector<512x16xf32>
    tpu.vector_store %arg2[%c0_8, %c0_9], %10 {strides = array<i32>} : memref<512x16xf32, #tpu.memory_space<vmem>>, vector<512x16xf32>,
    return
  }
  func.func @transform_0(%arg0: i32) -> (i32, i32, i32) {
    %c0_i32 = arith.constant 0 : i32
    %c0_i32_0 = arith.constant 0 : i32
    %c0_i32_1 = arith.constant 0 : i32
    return %c0_i32, %arg0, %c0_i32_0 : i32, i32, i32
  }
  func.func @transform_1(%arg0: i32) -> (i32, i32) {
    %c0_i32 = arith.constant 0 : i32
    %c0_i32_0 = arith.constant 0 : i32
    return %arg0, %c0_i32 : i32, i32
  }
}

module attributes {stable_mosaic.version = 11 : i64} {
  func.func @_conv_matmul_kernel(%arg0: i32, %arg1: i32, %arg2: memref<128x1024xbf16, #tpu.memory_space<vmem>>, %arg3: memref<1024x128xbf16, #tpu.memory_space<vmem>>, %arg4: memref<1x128xf32, #tpu.memory_space<vmem>>, %arg5: memref<128x128xf32, #tpu.memory_space<vmem>>) attributes {dimension_semantics = [#tpu.dimension_semantics<parallel>, #tpu.dimension_semantics<arbitrary>], iteration_bounds = array<i64: 1, 1>, scalar_prefetch = 0 : i64, scratch_operands = 0 : i64, tpu.core_type = #tpu.core_type<tc>, window_params = [{transform_indices = @transform_0, window_bounds = array<i64: 128, 1024>}, {transform_indices = @transform_1, window_bounds = array<i64: 1024, 128>}, {pipeline_mode = #tpu.pipeline_mode<synchronous>, transform_indices = @transform_2, window_bounds = array<i64: 1, 128>}, {transform_indices = @transform_3, window_bounds = array<i64: 128, 128>}]} {
    %c0_i32 = arith.constant 0 : i32
    %0 = arith.cmpi eq, %arg1, %c0_i32 : i32
    %1 = arith.extui %0 : i1 to i32
    %c0_i32_0 = arith.constant 0 : i32
    %2 = arith.cmpi ne, %1, %c0_i32_0 : i32
    scf.if %2 {
      %cst_8 = arith.constant 0.000000e+00 : f32
      %9 = vector.broadcast %cst_8 : f32 to vector<128x128xf32>
      %c0_9 = arith.constant 0 : index
      %c0_10 = arith.constant 0 : index
      %10 = vector.load %arg4[%c0_9, %c0_10] : memref<1x128xf32, #tpu.memory_space<vmem>>, vector<1x128xf32>
      %11 = vector.broadcast %10 : vector<1x128xf32> to vector<128x128xf32>
      %12 = arith.addf %9, %11 : vector<128x128xf32>
      %c0_11 = arith.constant 0 : index
      %c0_12 = arith.constant 0 : index
      %13 = vector.load %arg5[%c0_11, %c0_12] : memref<128x128xf32, #tpu.memory_space<vmem>>, vector<128x128xf32>
      tpu.vector_store %arg5[%c0_11, %c0_12], %12 {strides = array<i32>} : memref<128x128xf32, #tpu.memory_space<vmem>>, vector<128x128xf32>,
    } else {
    }
    %c0 = arith.constant 0 : index
    %c0_1 = arith.constant 0 : index
    %3 = vector.load %arg5[%c0, %c0_1] : memref<128x128xf32, #tpu.memory_space<vmem>>, vector<128x128xf32>
    %c0_2 = arith.constant 0 : index
    %c0_3 = arith.constant 0 : index
    %4 = vector.load %arg2[%c0_2, %c0_3] : memref<128x1024xbf16, #tpu.memory_space<vmem>>, vector<128x1024xbf16>
    %c0_4 = arith.constant 0 : index
    %c0_5 = arith.constant 0 : index
    %5 = vector.load %arg3[%c0_4, %c0_5] : memref<1024x128xbf16, #tpu.memory_space<vmem>>, vector<1024x128xbf16>
    %cst = arith.constant dense<0.000000e+00> : vector<128x128xf32>
    %6 = tpu.matmul %4, %5, %cst {dimension_numbers = #tpu.dot_dimension_numbers<[1], [0], [0], [1], [0, 0, 1, 1], [], []>} : vector<128x1024xbf16>, vector<1024x128xbf16>, vector<128x128xf32> -> vector<128x128xf32>
    %7 = arith.addf %3, %6 : vector<128x128xf32>
    %c0_6 = arith.constant 0 : index
    %c0_7 = arith.constant 0 : index
    %8 = vector.load %arg5[%c0_6, %c0_7] : memref<128x128xf32, #tpu.memory_space<vmem>>, vector<128x128xf32>
    tpu.vector_store %arg5[%c0_6, %c0_7], %7 {strides = array<i32>} : memref<128x128xf32, #tpu.memory_space<vmem>>, vector<128x128xf32>,
    return
  }
  func.func @transform_0(%arg0: i32, %arg1: i32) -> (i32, i32) {
    %c0_i32 = arith.constant 0 : i32
    return %arg0, %arg1 : i32, i32
  }
  func.func @transform_1(%arg0: i32, %arg1: i32) -> (i32, i32) {
    %c0_i32 = arith.constant 0 : i32
    %c0_i32_0 = arith.constant 0 : i32
    return %arg1, %c0_i32 : i32, i32
  }
  func.func @transform_2(%arg0: i32, %arg1: i32) -> (i32, i32) {
    %c0_i32 = arith.constant 0 : i32
    %c0_i32_0 = arith.constant 0 : i32
    %c0_i32_1 = arith.constant 0 : i32
    return %c0_i32, %c0_i32_0 : i32, i32
  }
  func.func @transform_3(%arg0: i32, %arg1: i32) -> (i32, i32) {
    %c0_i32 = arith.constant 0 : i32
    %c0_i32_0 = arith.constant 0 : i32
    return %arg0, %c0_i32 : i32, i32
  }
}

module attributes {stable_mosaic.version = 11 : i64} {
  func.func @_maxpool_kernel(%arg0: i32, %arg1: memref<8x16x32xf32, #tpu.memory_space<vmem>>, %arg2: memref<16x32xf32, #tpu.memory_space<vmem>>) attributes {dimension_semantics = [#tpu.dimension_semantics<parallel>], iteration_bounds = array<i64: 1>, scalar_prefetch = 0 : i64, scratch_operands = 0 : i64, tpu.core_type = #tpu.core_type<tc>, window_params = [{transform_indices = @transform_0, window_bounds = array<i64: 8, 16, 32>}, {transform_indices = @transform_1, window_bounds = array<i64: 16, 32>}]} {
    %c0 = arith.constant 0 : index
    %c0_0 = arith.constant 0 : index
    %c0_1 = arith.constant 0 : index
    %0 = vector.load %arg1[%c0, %c0_0, %c0_1] : memref<8x16x32xf32, #tpu.memory_space<vmem>>, vector<1x16x32xf32>
    %1 = vector.shape_cast %0 : vector<1x16x32xf32> to vector<16x32xf32>
    %c1 = arith.constant 1 : index
    %c0_2 = arith.constant 0 : index
    %c0_3 = arith.constant 0 : index
    %2 = vector.load %arg1[%c1, %c0_2, %c0_3] : memref<8x16x32xf32, #tpu.memory_space<vmem>>, vector<1x16x32xf32>
    %3 = vector.shape_cast %2 : vector<1x16x32xf32> to vector<16x32xf32>
    %4 = arith.maximumf %1, %3 : vector<16x32xf32>
    %c2 = arith.constant 2 : index
    %c0_4 = arith.constant 0 : index
    %c0_5 = arith.constant 0 : index
    %5 = vector.load %arg1[%c2, %c0_4, %c0_5] : memref<8x16x32xf32, #tpu.memory_space<vmem>>, vector<1x16x32xf32>
    %6 = vector.shape_cast %5 : vector<1x16x32xf32> to vector<16x32xf32>
    %7 = arith.maximumf %4, %6 : vector<16x32xf32>
    %c3 = arith.constant 3 : index
    %c0_6 = arith.constant 0 : index
    %c0_7 = arith.constant 0 : index
    %8 = vector.load %arg1[%c3, %c0_6, %c0_7] : memref<8x16x32xf32, #tpu.memory_space<vmem>>, vector<1x16x32xf32>
    %9 = vector.shape_cast %8 : vector<1x16x32xf32> to vector<16x32xf32>
    %10 = arith.maximumf %7, %9 : vector<16x32xf32>
    %c4 = arith.constant 4 : index
    %c0_8 = arith.constant 0 : index
    %c0_9 = arith.constant 0 : index
    %11 = vector.load %arg1[%c4, %c0_8, %c0_9] : memref<8x16x32xf32, #tpu.memory_space<vmem>>, vector<1x16x32xf32>
    %12 = vector.shape_cast %11 : vector<1x16x32xf32> to vector<16x32xf32>
    %13 = arith.maximumf %10, %12 : vector<16x32xf32>
    %c5 = arith.constant 5 : index
    %c0_10 = arith.constant 0 : index
    %c0_11 = arith.constant 0 : index
    %14 = vector.load %arg1[%c5, %c0_10, %c0_11] : memref<8x16x32xf32, #tpu.memory_space<vmem>>, vector<1x16x32xf32>
    %15 = vector.shape_cast %14 : vector<1x16x32xf32> to vector<16x32xf32>
    %16 = arith.maximumf %13, %15 : vector<16x32xf32>
    %c6 = arith.constant 6 : index
    %c0_12 = arith.constant 0 : index
    %c0_13 = arith.constant 0 : index
    %17 = vector.load %arg1[%c6, %c0_12, %c0_13] : memref<8x16x32xf32, #tpu.memory_space<vmem>>, vector<1x16x32xf32>
    %18 = vector.shape_cast %17 : vector<1x16x32xf32> to vector<16x32xf32>
    %19 = arith.maximumf %16, %18 : vector<16x32xf32>
    %c7 = arith.constant 7 : index
    %c0_14 = arith.constant 0 : index
    %c0_15 = arith.constant 0 : index
    %20 = vector.load %arg1[%c7, %c0_14, %c0_15] : memref<8x16x32xf32, #tpu.memory_space<vmem>>, vector<1x16x32xf32>
    %21 = vector.shape_cast %20 : vector<1x16x32xf32> to vector<16x32xf32>
    %22 = arith.maximumf %19, %21 : vector<16x32xf32>
    %c0_16 = arith.constant 0 : index
    %c0_17 = arith.constant 0 : index
    %23 = vector.load %arg2[%c0_16, %c0_17] : memref<16x32xf32, #tpu.memory_space<vmem>>, vector<16x32xf32>
    tpu.vector_store %arg2[%c0_16, %c0_17], %22 {strides = array<i32>} : memref<16x32xf32, #tpu.memory_space<vmem>>, vector<16x32xf32>,
    return
  }
  func.func @transform_0(%arg0: i32) -> (i32, i32, i32) {
    %c0_i32 = arith.constant 0 : i32
    %c0_i32_0 = arith.constant 0 : i32
    %c0_i32_1 = arith.constant 0 : i32
    return %c0_i32, %arg0, %c0_i32_0 : i32, i32, i32
  }
  func.func @transform_1(%arg0: i32) -> (i32, i32) {
    %c0_i32 = arith.constant 0 : i32
    %c0_i32_0 = arith.constant 0 : i32
    return %arg0, %c0_i32 : i32, i32
  }
}

module attributes {stable_mosaic.version = 11 : i64} {
  func.func @_conv_matmul_kernel(%arg0: i32, %arg1: i32, %arg2: memref<8x384xbf16, #tpu.memory_space<vmem>>, %arg3: memref<384x128xbf16, #tpu.memory_space<vmem>>, %arg4: memref<1x128xf32, #tpu.memory_space<vmem>>, %arg5: memref<8x128xf32, #tpu.memory_space<vmem>>) attributes {dimension_semantics = [#tpu.dimension_semantics<parallel>, #tpu.dimension_semantics<arbitrary>], iteration_bounds = array<i64: 1, 3>, scalar_prefetch = 0 : i64, scratch_operands = 0 : i64, tpu.core_type = #tpu.core_type<tc>, window_params = [{transform_indices = @transform_0, window_bounds = array<i64: 8, 384>}, {transform_indices = @transform_1, window_bounds = array<i64: 384, 128>}, {pipeline_mode = #tpu.pipeline_mode<synchronous>, transform_indices = @transform_2, window_bounds = array<i64: 1, 128>}, {transform_indices = @transform_3, window_bounds = array<i64: 8, 128>}]} {
    %c0_i32 = arith.constant 0 : i32
    %0 = arith.cmpi eq, %arg1, %c0_i32 : i32
    %1 = arith.extui %0 : i1 to i32
    %c0_i32_0 = arith.constant 0 : i32
    %2 = arith.cmpi ne, %1, %c0_i32_0 : i32
    scf.if %2 {
      %cst_8 = arith.constant 0.000000e+00 : f32
      %9 = vector.broadcast %cst_8 : f32 to vector<8x128xf32>
      %c0_9 = arith.constant 0 : index
      %c0_10 = arith.constant 0 : index
      %10 = vector.load %arg4[%c0_9, %c0_10] : memref<1x128xf32, #tpu.memory_space<vmem>>, vector<1x128xf32>
      %11 = vector.broadcast %10 : vector<1x128xf32> to vector<8x128xf32>
      %12 = arith.addf %9, %11 : vector<8x128xf32>
      %c0_11 = arith.constant 0 : index
      %c0_12 = arith.constant 0 : index
      %13 = vector.load %arg5[%c0_11, %c0_12] : memref<8x128xf32, #tpu.memory_space<vmem>>, vector<8x128xf32>
      tpu.vector_store %arg5[%c0_11, %c0_12], %12 {strides = array<i32>} : memref<8x128xf32, #tpu.memory_space<vmem>>, vector<8x128xf32>,
    } else {
    }
    %c0 = arith.constant 0 : index
    %c0_1 = arith.constant 0 : index
    %3 = vector.load %arg5[%c0, %c0_1] : memref<8x128xf32, #tpu.memory_space<vmem>>, vector<8x128xf32>
    %c0_2 = arith.constant 0 : index
    %c0_3 = arith.constant 0 : index
    %4 = vector.load %arg2[%c0_2, %c0_3] : memref<8x384xbf16, #tpu.memory_space<vmem>>, vector<8x384xbf16>
    %c0_4 = arith.constant 0 : index
    %c0_5 = arith.constant 0 : index
    %5 = vector.load %arg3[%c0_4, %c0_5] : memref<384x128xbf16, #tpu.memory_space<vmem>>, vector<384x128xbf16>
    %cst = arith.constant dense<0.000000e+00> : vector<8x128xf32>
    %6 = tpu.matmul %4, %5, %cst {dimension_numbers = #tpu.dot_dimension_numbers<[1], [0], [0], [1], [0, 0, 1, 1], [], []>} : vector<8x384xbf16>, vector<384x128xbf16>, vector<8x128xf32> -> vector<8x128xf32>
    %7 = arith.addf %3, %6 : vector<8x128xf32>
    %c0_6 = arith.constant 0 : index
    %c0_7 = arith.constant 0 : index
    %8 = vector.load %arg5[%c0_6, %c0_7] : memref<8x128xf32, #tpu.memory_space<vmem>>, vector<8x128xf32>
    tpu.vector_store %arg5[%c0_6, %c0_7], %7 {strides = array<i32>} : memref<8x128xf32, #tpu.memory_space<vmem>>, vector<8x128xf32>,
    return
  }
  func.func @transform_0(%arg0: i32, %arg1: i32) -> (i32, i32) {
    %c0_i32 = arith.constant 0 : i32
    return %arg0, %arg1 : i32, i32
  }
  func.func @transform_1(%arg0: i32, %arg1: i32) -> (i32, i32) {
    %c0_i32 = arith.constant 0 : i32
    %c0_i32_0 = arith.constant 0 : i32
    return %arg1, %c0_i32 : i32, i32
  }
  func.func @transform_2(%arg0: i32, %arg1: i32) -> (i32, i32) {
    %c0_i32 = arith.constant 0 : i32
    %c0_i32_0 = arith.constant 0 : i32
    %c0_i32_1 = arith.constant 0 : i32
    return %c0_i32, %c0_i32_0 : i32, i32
  }
  func.func @transform_3(%arg0: i32, %arg1: i32) -> (i32, i32) {
    %c0_i32 = arith.constant 0 : i32
    %c0_i32_0 = arith.constant 0 : i32
    return %arg0, %c0_i32 : i32, i32
  }
}

</mosaic_0001>

<llo_original>
// kernel: encoder_forward.5
$region0: #{encoder_forward.5}
  #allocation0 [shape = 'u32[]', space=smem, size = 0x4, offset = 0x4, fixed_abs, tag = 'smem constant byte address 0x4 - core index']
  #allocation1 [shape = 'u32[144,128]{1,0:T(1,128)}', space=vmem, size = 0x12000, scoped, tag = 'internal scratch']
  %s0 = inlined_call_operand.vmem [shape: bf16[4096,256], index: 0, kind: input, shape index: {}]
  %s1 = inlined_call_operand.vmem [shape: bf16[256,128], index: 1, kind: input, shape index: {}]
  %s2 = inlined_call_operand.vmem [shape: f32[1,128], index: 2, kind: input, shape index: {}]
  %s3 = inlined_call_operand.vmem [shape: f32[4096,128], index: 3, kind: output, shape index: {}]
  %s4 = sld [smem:[#allocation0]]
  $region49: #{encoder_forward.5} parent=0
    _
  %s6 = ssub.s32 1, %s4
  %s7 = scalar_select 0, %s6, %s4
  loop: start=0, step=1, limit=10
  $region2: #{encoder_forward.5} parent=0 // loop_pre_header
    _
  $region3: #{encoder_forward.5} parent=0 // loop_header
    %s9 = sphi 0, %s13
    %p10 = scmp.ge.s32.totalorder %s9, 10
    %s16 = sphi 0, %s28
    %s17 = sphi 0, %s24
    %s18 = sphi 0, %s16
    %s19 = sphi 0, %s17
    %s20 = sphi 0, %s18
    %s21 = sphi 0, %s19
    %s33 = sphi 0, %s35
    %s36 = sphi 0, %s33
    %s37 = sphi 0, %s36
    %s53 = sphi 0, %s37
    %s59 = sphi 0, %s61
    %s62 = sphi 0, %s59
    %s63 = sphi 0, %s62
    %s79 = sphi 0, %s63
    %s83 = sphi 0, %s83
    %s85 = sphi 0, %s83
    %s86 = sphi 0, %s85
    %s100 = sphi 0, %s86
    %s106 = sphi 0, %s108
    %s109 = sphi 0, %s106
    %s110 = sphi 0, %s109
    %s126 = sphi 0, %s110
  $region4: #{encoder_forward.5} parent=0 // loop_header_branch
    %12 = sbr.rel (%p10) target = $region8
  $region5: #{encoder_forward.5} parent=0 // loop_body
    %s14 = ssub.s32 %s9, 1
    %s15 = ssub.s32 %s9, 2
    %s22 = sadd.s32 1, %s17
    %p23 = scmp.ge.s32.totalorder %s22, 1
    %s24 = scalar_select %p23, 0, %s22
    %s25 = sadd.s32 1, %s16
    %s26 = scalar_select %p23, %s25, %s16
    %p27 = scmp.ge.s32.totalorder %s26, 8
    %s28 = scalar_select %p27, 0, %s26
    %s29 = ssub.s32 %s16, %s28
    %s30 = ssub.s32 %s17, %s24
    %s31 = sor.u32 %s29, %s30
    %p32 = scmp.eq.s32.totalorder %s31, 0
    %s34 = sadd.s32 %s33, 1
    %s35 = scalar_select %p32, %s33, %s34
    %p38 = pneg %p32
    %p39 = scmp.eq.s32.totalorder %s9, 7
    %p40 = por %p38, %p39
    %p41 = scmp.ne.s32.totalorder %s33, %s36
    %p42 = scmp.eq.s32.totalorder %s9, 0
    %p43 = por %p41, %p42
    %p44 = scmp.ne.s32.totalorder %s33, %s36
    %p45 = scmp.eq.s32.totalorder %s14, 7
    %p46 = por %p44, %p45
    %p47 = scmp.ne.s32.totalorder %s36, %s37
    %p48 = scmp.eq.s32.totalorder %s14, 0
    %p49 = por %p47, %p48
    %p50 = scmp.ne.s32.totalorder %s36, %s37
    %p51 = scmp.eq.s32.totalorder %s15, 7
    %p52 = por %p50, %p51
    %p54 = scmp.ne.s32.totalorder %s37, %s53
    %p55 = scmp.eq.s32.totalorder %s15, 0
    %p56 = por %p54, %p55
    %s57 = ssub.s32 %s17, %s24
    %p58 = scmp.eq.s32.totalorder %s57, 0
    %s60 = sadd.s32 %s59, 1
    %s61 = scalar_select %p58, %s59, %s60
    %p64 = pneg %p58
    %p65 = scmp.eq.s32.totalorder %s9, 7
    %p66 = por %p64, %p65
    %p67 = scmp.ne.s32.totalorder %s59, %s62
    %p68 = scmp.eq.s32.totalorder %s9, 0
    %p69 = por %p67, %p68
    %p70 = scmp.ne.s32.totalorder %s59, %s62
    %p71 = scmp.eq.s32.totalorder %s14, 7
    %p72 = por %p70, %p71
    %p73 = scmp.ne.s32.totalorder %s62, %s63
    %p74 = scmp.eq.s32.totalorder %s14, 0
    %p75 = por %p73, %p74
    %p76 = scmp.ne.s32.totalorder %s62, %s63
    %p77 = scmp.eq.s32.totalorder %s15, 7
    %p78 = por %p76, %p77
    %p80 = scmp.ne.s32.totalorder %s63, %s79
    %p81 = scmp.eq.s32.totalorder %s15, 0
    %p82 = por %p80, %p81
    %s84 = sadd.s32 %s83, 1
    %p87 = scmp.eq.s32.totalorder %s9, 7
    %p88 = scmp.ne.s32.totalorder %s83, %s85
    %p89 = scmp.eq.s32.totalorder %s9, 0
    %p90 = por %p88, %p89
    %p91 = scmp.ne.s32.totalorder %s83, %s85
    %p92 = scmp.eq.s32.totalorder %s14, 7
    %p93 = por %p91, %p92
    %p94 = scmp.ne.s32.totalorder %s85, %s86
    %p95 = scmp.eq.s32.totalorder %s14, 0
    %p96 = por %p94, %p95
    %p97 = scmp.ne.s32.totalorder %s85, %s86
    %p98 = scmp.eq.s32.totalorder %s15, 7
    %p99 = por %p97, %p98
    %p101 = scmp.ne.s32.totalorder %s86, %s100
    %p102 = scmp.eq.s32.totalorder %s15, 0
    %p103 = por %p101, %p102
    %s104 = ssub.s32 %s16, %s28
    %p105 = scmp.eq.s32.totalorder %s104, 0
    %s107 = sadd.s32 %s106, 1
    %s108 = scalar_select %p105, %s106, %s107
    %p111 = pneg %p105
    %p112 = scmp.eq.s32.totalorder %s9, 7
    %p113 = por %p111, %p112
    %p114 = scmp.ne.s32.totalorder %s106, %s109
    %p115 = scmp.eq.s32.totalorder %s9, 0
    %p116 = por %p114, %p115
    %p117 = scmp.ne.s32.totalorder %s106, %s109
    %p118 = scmp.eq.s32.totalorder %s14, 7
    %p119 = por %p117, %p118
    %p120 = scmp.ne.s32.totalorder %s109, %s110
    %p121 = scmp.eq.s32.totalorder %s14, 0
    %p122 = por %p120, %p121
    %p123 = scmp.ne.s32.totalorder %s109, %s110
    %p124 = scmp.eq.s32.totalorder %s15, 7
    %p125 = por %p123, %p124
    %p127 = scmp.ne.s32.totalorder %s110, %s126
    %p128 = scmp.eq.s32.totalorder %s15, 0
    %p129 = por %p127, %p128
    %p130 = scmp.le.s32.totalorder 1, %s9
    %p131 = scmp.lt.s32.totalorder %s9, 9
    %p132 = pnand %p130, %p131
    %p133 = pneg %p132
    // Predicated region
    $region9: #{encoder_forward.5} parent=5 // pred_check
      _
    $region10: #{encoder_forward.5} parent=5 // pred_check_branch
      %135 = sbr.rel (%p132) target = $region12
    $region11: #{encoder_forward.5} parent=5 // pred_region
      %s136 = ssub.s32 %s9, 1
      // Predicated region
      $region13: #{encoder_forward.5} parent=11 // pred_check
        %p137 = pneg %p75
      $region14: #{encoder_forward.5} parent=11 // pred_check_branch
        %139 = sbr.rel (%p137) target = $region16
      $region15: #{encoder_forward.5} parent=11 // pred_region
        %s140 = smul.u32 32, %s19
        %p141 = scmp.lt.s32.totalorder %s140, 31
        %s142 = scalar_select %p141, %s140, 31
        %s143 = smul.addr %s142, 4
        %s144 = scalar_lea.vmem %s1, %s143
        %s145 = smul.u32 32, %s19
      $region16: #{encoder_forward.5} parent=11 // pred_fallthru
        _
      // Predicated region
      $region17: #{encoder_forward.5} parent=11 // pred_check
        %p146 = pneg %p96
      $region18: #{encoder_forward.5} parent=11 // pred_check_branch
        %148 = sbr.rel (%p146) target = $region20
      $region19: #{encoder_forward.5} parent=11 // pred_region
        _
      $region20: #{encoder_forward.5} parent=11 // pred_fallthru
        _
    $region12: #{encoder_forward.5} parent=5 // pred_fallthru
      _
    %p149 = scmp.lt.s32.totalorder %s9, 8
    // Predicated region
    $region21: #{encoder_forward.5} parent=5 // pred_check
      %p150 = pneg %p149
    $region22: #{encoder_forward.5} parent=5 // pred_check_branch
      %152 = sbr.rel (%p150) target = $region24
    $region23: #{encoder_forward.5} parent=5 // pred_region
      // Predicated region
      $region25: #{encoder_forward.5} parent=23 // pred_check
        %p153 = pneg %p43
      $region26: #{encoder_forward.5} parent=23 // pred_check_branch
        %155 = sbr.rel (%p153) target = $region28
      $region27: #{encoder_forward.5} parent=23 // pred_region
        %s156 = smul.u32 64, %s16
        %s157 = smul.u32 2, %s17
        %p158 = scmp.lt.s32.totalorder %s156, 511
        %s159 = scalar_select %p158, %s156, 511
        %p160 = scmp.lt.s32.totalorder %s157, 1
        %s161 = scalar_select %p160, %s157, 1
        %s162 = smul.addr %s159, 2
        %s163 = sadd.s32 %s161, %s162
        %s164 = smul.addr %s163, 4
        %s165 = scalar_lea.vmem %s0, %s164
        %s166 = smul.u32 64, %s16
        %s167 = smul.u32 2, %s17
      $region28: #{encoder_forward.5} parent=23 // pred_fallthru
        _
    $region24: #{encoder_forward.5} parent=5 // pred_fallthru
      _
    %p168 = scmp.le.s32.totalorder 1, %s9
    %p169 = scmp.lt.s32.totalorder %s9, 9
    %p170 = pnand %p168, %p169
    %p171 = pneg %p170
    // Predicated region
    $region29: #{encoder_forward.5} parent=5 // pred_check
      _
    $region30: #{encoder_forward.5} parent=5 // pred_check_branch
      %173 = sbr.rel (%p170) target = $region32
    $region31: #{encoder_forward.5} parent=5 // pred_region
      %s174 = ssub.s32 %s9, 1
      %s175 = smul.u32 64, %s18
      %s176 = smul.u32 2, %s19
      %p177 = scmp.lt.s32.totalorder %s175, 511
      %s178 = scalar_select %p177, %s175, 511
      %p179 = scmp.lt.s32.totalorder %s176, 1
      %s180 = scalar_select %p179, %s176, 1
      %s181 = smul.addr %s178, 2
      %s182 = sadd.s32 %s180, %s181
      %s183 = smul.addr %s182, 4
      %s184 = scalar_lea.vmem %s0, %s183
      %p185 = pneg %p49
      %p186 = pneg %p46
      %s187 = smul.u32 32, %s19
      %p188 = scmp.lt.s32.totalorder %s187, 31
      %s189 = scalar_select %p188, %s187, 31
      %s190 = smul.addr %s189, 4
      %s191 = scalar_lea.vmem %s1, %s190
      %p192 = pneg %p75
      %p193 = pneg %p72
      %p194 = pneg %p96
      %p195 = pneg %p93
      %p196 = pneg %p122
      %p197 = pneg %p119
      %s198 = smul.u32 64, %s18
      %p199 = scmp.lt.s32.totalorder %s198, 511
      %s200 = scalar_select %p199, %s198, 511
      %s201 = smul.addr %s200, 8
      %s202 = scalar_lea.vmem %s3, %s201
      %s203 = smul.u32 64, %s18
      %s204 = smul.u32 2, %s19
      %p205 = scmp.lt.s32.totalorder %s203, 511
      %s206 = scalar_select %p205, %s203, 511
      %p207 = scmp.lt.s32.totalorder %s204, 1
      %s208 = scalar_select %p207, %s204, 1
      %s209 = smul.addr %s206, 2
      %s210 = sadd.s32 %s208, %s209
      %s211 = smul.addr %s210, 4
      %s212 = scalar_lea.vmem %s0, %s211
      %s213 = smul.u32 64, %s18
      %s214 = smul.u32 2, %s19
      %s215 = smul.u32 32, %s19
      %p216 = scmp.lt.s32.totalorder %s215, 31
      %s217 = scalar_select %p216, %s215, 31
      %s218 = smul.addr %s217, 4
      %s219 = scalar_lea.vmem %s1, %s218
      %s220 = smul.u32 32, %s19
      %s221 = smul.u32 64, %s18
      %p222 = scmp.lt.s32.totalorder %s221, 511
      %s223 = scalar_select %p222, %s221, 511
      %s224 = smul.addr %s223, 8
      %s225 = scalar_lea.vmem %s3, %s224
      %s226 = smul.u32 64, %s18
      %p228 = scmp.eq.s32.totalorder %s19, 0
      // Predicated region
      $region33: #{encoder_forward.5} parent=31 // pred_check
        %p229 = pneg %p228
      $region34: #{encoder_forward.5} parent=31 // pred_check_branch
        %231 = sbr.rel (%p229) target = $region36
      $region35: #{encoder_forward.5} parent=31 // pred_region
        %v232 = vld [vmem:[%s2] sm:$0x1]
        %v234 = vlaneseq
        %v235 = vshrl.u32 %v234, 7
        %v236 = vsub.s32 0, %v235
        %v237 = vrot.slane %v232, %v236
        %v239 = vadd.f32 %v237, 0.0
        %240 = vst [vmem:[%s225] sm:$0xff] %v239
        %241 = vst [vmem:[%s225 + $0x8] sm:$0xff] %v239
        %242 = vst [vmem:[%s225 + $0x10] sm:$0xff] %v239
        %243 = vst [vmem:[%s225 + $0x18] sm:$0xff] %v239
        %244 = vst [vmem:[%s225 + $0x20] sm:$0xff] %v239
        %245 = vst [vmem:[%s225 + $0x28] sm:$0xff] %v239
        %246 = vst [vmem:[%s225 + $0x30] sm:$0xff] %v239
        %247 = vst [vmem:[%s225 + $0x38] sm:$0xff] %v239
        %248 = vst [vmem:[%s225 + $0x40] sm:$0xff] %v239
        %249 = vst [vmem:[%s225 + $0x48] sm:$0xff] %v239
        %250 = vst [vmem:[%s225 + $0x50] sm:$0xff] %v239
        %251 = vst [vmem:[%s225 + $0x58] sm:$0xff] %v239
        %252 = vst [vmem:[%s225 + $0x60] sm:$0xff] %v239
        %253 = vst [vmem:[%s225 + $0x68] sm:$0xff] %v239
        %254 = vst [vmem:[%s225 + $0x70] sm:$0xff] %v239
        %255 = vst [vmem:[%s225 + $0x78] sm:$0xff] %v239
        %256 = vst [vmem:[%s225 + $0x80] sm:$0xff] %v239
        %257 = vst [vmem:[%s225 + $0x88] sm:$0xff] %v239
        %258 = vst [vmem:[%s225 + $0x90] sm:$0xff] %v239
        %259 = vst [vmem:[%s225 + $0x98] sm:$0xff] %v239
        %260 = vst [vmem:[%s225 + $0xa0] sm:$0xff] %v239
        %261 = vst [vmem:[%s225 + $0xa8] sm:$0xff] %v239
        %262 = vst [vmem:[%s225 + $0xb0] sm:$0xff] %v239
        %263 = vst [vmem:[%s225 + $0xb8] sm:$0xff] %v239
        %264 = vst [vmem:[%s225 + $0xc0] sm:$0xff] %v239
        %265 = vst [vmem:[%s225 + $0xc8] sm:$0xff] %v239
        %266 = vst [vmem:[%s225 + $0xd0] sm:$0xff] %v239
        %267 = vst [vmem:[%s225 + $0xd8] sm:$0xff] %v239
        %268 = vst [vmem:[%s225 + $0xe0] sm:$0xff] %v239
        %269 = vst [vmem:[%s225 + $0xe8] sm:$0xff] %v239
        %270 = vst [vmem:[%s225 + $0xf0] sm:$0xff] %v239
        %271 = vst [vmem:[%s225 + $0xf8] sm:$0xff] %v239
        %272 = vst [vmem:[%s225 + $0x100] sm:$0xff] %v239
        %273 = vst [vmem:[%s225 + $0x108] sm:$0xff] %v239
        %274 = vst [vmem:[%s225 + $0x110] sm:$0xff] %v239
        %275 = vst [vmem:[%s225 + $0x118] sm:$0xff] %v239
        %276 = vst [vmem:[%s225 + $0x120] sm:$0xff] %v239
        %277 = vst [vmem:[%s225 + $0x128] sm:$0xff] %v239
        %278 = vst [vmem:[%s225 + $0x130] sm:$0xff] %v239
        %279 = vst [vmem:[%s225 + $0x138] sm:$0xff] %v239
        %280 = vst [vmem:[%s225 + $0x140] sm:$0xff] %v239
        %281 = vst [vmem:[%s225 + $0x148] sm:$0xff] %v239
        %282 = vst [vmem:[%s225 + $0x150] sm:$0xff] %v239
        %283 = vst [vmem:[%s225 + $0x158] sm:$0xff] %v239
        %284 = vst [vmem:[%s225 + $0x160] sm:$0xff] %v239
        %285 = vst [vmem:[%s225 + $0x168] sm:$0xff] %v239
        %286 = vst [vmem:[%s225 + $0x170] sm:$0xff] %v239
        %287 = vst [vmem:[%s225 + $0x178] sm:$0xff] %v239
        %288 = vst [vmem:[%s225 + $0x180] sm:$0xff] %v239
        %289 = vst [vmem:[%s225 + $0x188] sm:$0xff] %v239
        %290 = vst [vmem:[%s225 + $0x190] sm:$0xff] %v239
        %291 = vst [vmem:[%s225 + $0x198] sm:$0xff] %v239
        %292 = vst [vmem:[%s225 + $0x1a0] sm:$0xff] %v239
        %293 = vst [vmem:[%s225 + $0x1a8] sm:$0xff] %v239
        %294 = vst [vmem:[%s225 + $0x1b0] sm:$0xff] %v239
        %295 = vst [vmem:[%s225 + $0x1b8] sm:$0xff] %v239
        %296 = vst [vmem:[%s225 + $0x1c0] sm:$0xff] %v239
        %297 = vst [vmem:[%s225 + $0x1c8] sm:$0xff] %v239
        %298 = vst [vmem:[%s225 + $0x1d0] sm:$0xff] %v239
        %299 = vst [vmem:[%s225 + $0x1d8] sm:$0xff] %v239
        %300 = vst [vmem:[%s225 + $0x1e0] sm:$0xff] %v239
        %301 = vst [vmem:[%s225 + $0x1e8] sm:$0xff] %v239
        %302 = vst [vmem:[%s225 + $0x1f0] sm:$0xff] %v239
        %303 = vst [vmem:[%s225 + $0x1f8] sm:$0xff] %v239
      $region36: #{encoder_forward.5} parent=31 // pred_fallthru
        _
      %v304 = vld [vmem:[%s225] sm:$0xff]
      %v305 = vld [vmem:[%s225 + $0x8] sm:$0xff]
      %v306 = vld [vmem:[%s225 + $0x10] sm:$0xff]
      %v307 = vld [vmem:[%s225 + $0x18] sm:$0xff]
      %v308 = vld [vmem:[%s225 + $0x20] sm:$0xff]
      %v309 = vld [vmem:[%s225 + $0x28] sm:$0xff]
      %v310 = vld [vmem:[%s225 + $0x30] sm:$0xff]
      %v311 = vld [vmem:[%s225 + $0x38] sm:$0xff]
      %v312 = vld [vmem:[%s225 + $0x40] sm:$0xff]
      %v313 = vld [vmem:[%s225 + $0x48] sm:$0xff]
      %v314 = vld [vmem:[%s225 + $0x50] sm:$0xff]
      %v315 = vld [vmem:[%s225 + $0x58] sm:$0xff]
      %v316 = vld [vmem:[%s225 + $0x60] sm:$0xff]
      %v317 = vld [vmem:[%s225 + $0x68] sm:$0xff]
      %v318 = vld [vmem:[%s225 + $0x70] sm:$0xff]
      %v319 = vld [vmem:[%s225 + $0x78] sm:$0xff]
      %v320 = vld [vmem:[%s225 + $0x80] sm:$0xff]
      %v321 = vld [vmem:[%s225 + $0x88] sm:$0xff]
      %v322 = vld [vmem:[%s225 + $0x90] sm:$0xff]
      %v323 = vld [vmem:[%s225 + $0x98] sm:$0xff]
      %v324 = vld [vmem:[%s225 + $0xa0] sm:$0xff]
      %v325 = vld [vmem:[%s225 + $0xa8] sm:$0xff]
      %v326 = vld [vmem:[%s225 + $0xb0] sm:$0xff]
      %v327 = vld [vmem:[%s225 + $0xb8] sm:$0xff]
      %v328 = vld [vmem:[%s225 + $0xc0] sm:$0xff]
      %v329 = vld [vmem:[%s225 + $0xc8] sm:$0xff]
      %v330 = vld [vmem:[%s225 + $0xd0] sm:$0xff]
      %v331 = vld [vmem:[%s225 + $0xd8] sm:$0xff]
      %v332 = vld [vmem:[%s225 + $0xe0] sm:$0xff]
      %v333 = vld [vmem:[%s225 + $0xe8] sm:$0xff]
      %v334 = vld [vmem:[%s225 + $0xf0] sm:$0xff]
      %v335 = vld [vmem:[%s225 + $0xf8] sm:$0xff]
      %v336 = vld [vmem:[%s225 + $0x100] sm:$0xff]
      %v337 = vld [vmem:[%s225 + $0x108] sm:$0xff]
      %v338 = vld [vmem:[%s225 + $0x110] sm:$0xff]
      %v339 = vld [vmem:[%s225 + $0x118] sm:$0xff]
      %v340 = vld [vmem:[%s225 + $0x120] sm:$0xff]
      %v341 = vld [vmem:[%s225 + $0x128] sm:$0xff]
      %v342 = vld [vmem:[%s225 + $0x130] sm:$0xff]
      %v343 = vld [vmem:[%s225 + $0x138] sm:$0xff]
      %v344 = vld [vmem:[%s225 + $0x140] sm:$0xff]
      %v345 = vld [vmem:[%s225 + $0x148] sm:$0xff]
      %v346 = vld [vmem:[%s225 + $0x150] sm:$0xff]
      %v347 = vld [vmem:[%s225 + $0x158] sm:$0xff]
      %v348 = vld [vmem:[%s225 + $0x160] sm:$0xff]
      %v349 = vld [vmem:[%s225 + $0x168] sm:$0xff]
      %v350 = vld [vmem:[%s225 + $0x170] sm:$0xff]
      %v351 = vld [vmem:[%s225 + $0x178] sm:$0xff]
      %v352 = vld [vmem:[%s225 + $0x180] sm:$0xff]
      %v353 = vld [vmem:[%s225 + $0x188] sm:$0xff]
      %v354 = vld [vmem:[%s225 + $0x190] sm:$0xff]
      %v355 = vld [vmem:[%s225 + $0x198] sm:$0xff]
      %v356 = vld [vmem:[%s225 + $0x1a0] sm:$0xff]
      %v357 = vld [vmem:[%s225 + $0x1a8] sm:$0xff]
      %v358 = vld [vmem:[%s225 + $0x1b0] sm:$0xff]
      %v359 = vld [vmem:[%s225 + $0x1b8] sm:$0xff]
      %v360 = vld [vmem:[%s225 + $0x1c0] sm:$0xff]
      %v361 = vld [vmem:[%s225 + $0x1c8] sm:$0xff]
      %v362 = vld [vmem:[%s225 + $0x1d0] sm:$0xff]
      %v363 = vld [vmem:[%s225 + $0x1d8] sm:$0xff]
      %v364 = vld [vmem:[%s225 + $0x1e0] sm:$0xff]
      %v365 = vld [vmem:[%s225 + $0x1e8] sm:$0xff]
      %v366 = vld [vmem:[%s225 + $0x1f0] sm:$0xff]
      %v367 = vld [vmem:[%s225 + $0x1f8] sm:$0xff]
      %v368 = vld [vmem:[%s212] sm:$0xff]
      %v369 = vld [vmem:[%s212 + $0x8] sm:$0xff]
      %v370 = vld [vmem:[%s212 + $0x10] sm:$0xff]
      %v371 = vld [vmem:[%s212 + $0x18] sm:$0xff]
      %v372 = vld [vmem:[%s212 + $0x20] sm:$0xff]
      %v373 = vld [vmem:[%s212 + $0x28] sm:$0xff]
      %v374 = vld [vmem:[%s212 + $0x30] sm:$0xff]
      %v375 = vld [vmem:[%s212 + $0x38] sm:$0xff]
      %v376 = vld [vmem:[%s212 + $0x40] sm:$0xff]
      %v377 = vld [vmem:[%s212 + $0x48] sm:$0xff]
      %v378 = vld [vmem:[%s212 + $0x50] sm:$0xff]
      %v379 = vld [vmem:[%s212 + $0x58] sm:$0xff]
      %v380 = vld [vmem:[%s212 + $0x60] sm:$0xff]
      %v381 = vld [vmem:[%s212 + $0x68] sm:$0xff]
      %v382 = vld [vmem:[%s212 + $0x70] sm:$0xff]
      %v383 = vld [vmem:[%s212 + $0x78] sm:$0xff]
      %v384 = vld [vmem:[%s212 + $0x80] sm:$0xff]
      %v385 = vld [vmem:[%s212 + $0x88] sm:$0xff]
      %v386 = vld [vmem:[%s212 + $0x90] sm:$0xff]
      %v387 = vld [vmem:[%s212 + $0x98] sm:$0xff]
      %v388 = vld [vmem:[%s212 + $0xa0] sm:$0xff]
      %v389 = vld [vmem:[%s212 + $0xa8] sm:$0xff]
      %v390 = vld [vmem:[%s212 + $0xb0] sm:$0xff]
      %v391 = vld [vmem:[%s212 + $0xb8] sm:$0xff]
      %v392 = vld [vmem:[%s212 + $0xc0] sm:$0xff]
      %v393 = vld [vmem:[%s212 + $0xc8] sm:$0xff]
      %v394 = vld [vmem:[%s212 + $0xd0] sm:$0xff]
      %v395 = vld [vmem:[%s212 + $0xd8] sm:$0xff]
      %v396 = vld [vmem:[%s212 + $0xe0] sm:$0xff]
      %v397 = vld [vmem:[%s212 + $0xe8] sm:$0xff]
      %v398 = vld [vmem:[%s212 + $0xf0] sm:$0xff]
      %v399 = vld [vmem:[%s212 + $0xf8] sm:$0xff]
      %v400 = vld [vmem:[%s212 + $0x100] sm:$0xff]
      %v401 = vld [vmem:[%s212 + $0x108] sm:$0xff]
      %v402 = vld [vmem:[%s212 + $0x110] sm:$0xff]
      %v403 = vld [vmem:[%s212 + $0x118] sm:$0xff]
      %v404 = vld [vmem:[%s212 + $0x120] sm:$0xff]
      %v405 = vld [vmem:[%s212 + $0x128] sm:$0xff]
      %v406 = vld [vmem:[%s212 + $0x130] sm:$0xff]
      %v407 = vld [vmem:[%s212 + $0x138] sm:$0xff]
      %v408 = vld [vmem:[%s212 + $0x140] sm:$0xff]
      %v409 = vld [vmem:[%s212 + $0x148] sm:$0xff]
      %v410 = vld [vmem:[%s212 + $0x150] sm:$0xff]
      %v411 = vld [vmem:[%s212 + $0x158] sm:$0xff]
      %v412 = vld [vmem:[%s212 + $0x160] sm:$0xff]
      %v413 = vld [vmem:[%s212 + $0x168] sm:$0xff]
      %v414 = vld [vmem:[%s212 + $0x170] sm:$0xff]
      %v415 = vld [vmem:[%s212 + $0x178] sm:$0xff]
      %v416 = vld [vmem:[%s212 + $0x180] sm:$0xff]
      %v417 = vld [vmem:[%s212 + $0x188] sm:$0xff]
      %v418 = vld [vmem:[%s212 + $0x190] sm:$0xff]
      %v419 = vld [vmem:[%s212 + $0x198] sm:$0xff]
      %v420 = vld [vmem:[%s212 + $0x1a0] sm:$0xff]
      %v421 = vld [vmem:[%s212 + $0x1a8] sm:$0xff]
      %v422 = vld [vmem:[%s212 + $0x1b0] sm:$0xff]
      %v423 = vld [vmem:[%s212 + $0x1b8] sm:$0xff]
      %v424 = vld [vmem:[%s212 + $0x1c0] sm:$0xff]
      %v425 = vld [vmem:[%s212 + $0x1c8] sm:$0xff]
      %v426 = vld [vmem:[%s212 + $0x1d0] sm:$0xff]
      %v427 = vld [vmem:[%s212 + $0x1d8] sm:$0xff]
      %v428 = vld [vmem:[%s212 + $0x1e0] sm:$0xff]
      %v429 = vld [vmem:[%s212 + $0x1e8] sm:$0xff]
      %v430 = vld [vmem:[%s212 + $0x1f0] sm:$0xff]
      %v431 = vld [vmem:[%s212 + $0x1f8] sm:$0xff]
      %v432 = vld [vmem:[%s219] sm:$0xf]
      %v433 = vld [vmem:[%s219 + $0x4] sm:$0xf]
      %v434 = vld [vmem:[%s219 + $0x8] sm:$0xf]
      %v435 = vld [vmem:[%s219 + $0xc] sm:$0xf]
      %v436 = vld [vmem:[%s219 + $0x10] sm:$0xf]
      %v437 = vld [vmem:[%s219 + $0x14] sm:$0xf]
      %v438 = vld [vmem:[%s219 + $0x18] sm:$0xf]
      %v439 = vld [vmem:[%s219 + $0x1c] sm:$0xf]
      %v440 = vld [vmem:[%s219 + $0x20] sm:$0xf]
      %v441 = vld [vmem:[%s219 + $0x24] sm:$0xf]
      %v442 = vld [vmem:[%s219 + $0x28] sm:$0xf]
      %v443 = vld [vmem:[%s219 + $0x2c] sm:$0xf]
      %v444 = vld [vmem:[%s219 + $0x30] sm:$0xf]
      %v445 = vld [vmem:[%s219 + $0x34] sm:$0xf]
      %v446 = vld [vmem:[%s219 + $0x38] sm:$0xf]
      %v447 = vld [vmem:[%s219 + $0x3c] sm:$0xf]
      %v448 = vld [vmem:[%s219 + $0x40] sm:$0xf]
      %v449 = vld [vmem:[%s219 + $0x44] sm:$0xf]
      %v450 = vld [vmem:[%s219 + $0x48] sm:$0xf]
      %v451 = vld [vmem:[%s219 + $0x4c] sm:$0xf]
      %v452 = vld [vmem:[%s219 + $0x50] sm:$0xf]
      %v453 = vld [vmem:[%s219 + $0x54] sm:$0xf]
      %v454 = vld [vmem:[%s219 + $0x58] sm:$0xf]
      %v455 = vld [vmem:[%s219 + $0x5c] sm:$0xf]
      %v456 = vld [vmem:[%s219 + $0x60] sm:$0xf]
      %v457 = vld [vmem:[%s219 + $0x64] sm:$0xf]
      %v458 = vld [vmem:[%s219 + $0x68] sm:$0xf]
      %v459 = vld [vmem:[%s219 + $0x6c] sm:$0xf]
      %v460 = vld [vmem:[%s219 + $0x70] sm:$0xf]
      %v461 = vld [vmem:[%s219 + $0x74] sm:$0xf]
      %v462 = vld [vmem:[%s219 + $0x78] sm:$0xf]
      %v463 = vld [vmem:[%s219 + $0x7c] sm:$0xf]
      %v528 = vunpack.c.l.b16 %v368
      %v529 = vunpack.c.h.b16 %v368
      %v530 = vunpack.c.l.b16 %v369
      %v531 = vunpack.c.h.b16 %v369
      %v532 = vunpack.c.l.b16 %v370
      %v533 = vunpack.c.h.b16 %v370
      %v534 = vunpack.c.l.b16 %v371
      %v535 = vunpack.c.h.b16 %v371
      %v536 = vunpack.c.l.b16 %v372
      %v537 = vunpack.c.h.b16 %v372
      %v538 = vunpack.c.l.b16 %v373
      %v539 = vunpack.c.h.b16 %v373
      %v540 = vunpack.c.l.b16 %v374
      %v541 = vunpack.c.h.b16 %v374
      %v542 = vunpack.c.l.b16 %v375
      %v543 = vunpack.c.h.b16 %v375
      %v544 = vunpack.c.l.b16 %v376
      %v545 = vunpack.c.h.b16 %v376
      %v546 = vunpack.c.l.b16 %v377
      %v547 = vunpack.c.h.b16 %v377
      %v548 = vunpack.c.l.b16 %v378
      %v549 = vunpack.c.h.b16 %v378
      %v550 = vunpack.c.l.b16 %v379
      %v551 = vunpack.c.h.b16 %v379
      %v552 = vunpack.c.l.b16 %v380
      %v553 = vunpack.c.h.b16 %v380
      %v554 = vunpack.c.l.b16 %v381
      %v555 = vunpack.c.h.b16 %v381
      %v556 = vunpack.c.l.b16 %v382
      %v557 = vunpack.c.h.b16 %v382
      %v558 = vunpack.c.l.b16 %v383
      %v559 = vunpack.c.h.b16 %v383
      %v560 = vunpack.c.l.b16 %v384
      %v561 = vunpack.c.h.b16 %v384
      %v562 = vunpack.c.l.b16 %v385
      %v563 = vunpack.c.h.b16 %v385
      %v564 = vunpack.c.l.b16 %v386
      %v565 = vunpack.c.h.b16 %v386
      %v566 = vunpack.c.l.b16 %v387
      %v567 = vunpack.c.h.b16 %v387
      %v568 = vunpack.c.l.b16 %v388
      %v569 = vunpack.c.h.b16 %v388
      %v570 = vunpack.c.l.b16 %v389
      %v571 = vunpack.c.h.b16 %v389
      %v572 = vunpack.c.l.b16 %v390
      %v573 = vunpack.c.h.b16 %v390
      %v574 = vunpack.c.l.b16 %v391
      %v575 = vunpack.c.h.b16 %v391
      %v576 = vunpack.c.l.b16 %v392
      %v577 = vunpack.c.h.b16 %v392
      %v578 = vunpack.c.l.b16 %v393
      %v579 = vunpack.c.h.b16 %v393
      %v580 = vunpack.c.l.b16 %v394
      %v581 = vunpack.c.h.b16 %v394
      %v582 = vunpack.c.l.b16 %v395
      %v583 = vunpack.c.h.b16 %v395
      %v584 = vunpack.c.l.b16 %v396
      %v585 = vunpack.c.h.b16 %v396
      %v586 = vunpack.c.l.b16 %v397
      %v587 = vunpack.c.h.b16 %v397
      %v588 = vunpack.c.l.b16 %v398
      %v589 = vunpack.c.h.b16 %v398
      %v590 = vunpack.c.l.b16 %v399
      %v591 = vunpack.c.h.b16 %v399
      %v592 = vunpack.c.l.b16 %v400
      %v593 = vunpack.c.h.b16 %v400
      %v594 = vunpack.c.l.b16 %v401
      %v595 = vunpack.c.h.b16 %v401
      %v596 = vunpack.c.l.b16 %v402
      %v597 = vunpack.c.h.b16 %v402
      %v598 = vunpack.c.l.b16 %v403
      %v599 = vunpack.c.h.b16 %v403
      %v600 = vunpack.c.l.b16 %v404
      %v601 = vunpack.c.h.b16 %v404
      %v602 = vunpack.c.l.b16 %v405
      %v603 = vunpack.c.h.b16 %v405
      %v604 = vunpack.c.l.b16 %v406
      %v605 = vunpack.c.h.b16 %v406
      %v606 = vunpack.c.l.b16 %v407
      %v607 = vunpack.c.h.b16 %v407
      %v608 = vunpack.c.l.b16 %v408
      %v609 = vunpack.c.h.b16 %v408
      %v610 = vunpack.c.l.b16 %v409
      %v611 = vunpack.c.h.b16 %v409
      %v612 = vunpack.c.l.b16 %v410
      %v613 = vunpack.c.h.b16 %v410
      %v614 = vunpack.c.l.b16 %v411
      %v615 = vunpack.c.h.b16 %v411
      %v616 = vunpack.c.l.b16 %v412
      %v617 = vunpack.c.h.b16 %v412
      %v618 = vunpack.c.l.b16 %v413
      %v619 = vunpack.c.h.b16 %v413
      %v620 = vunpack.c.l.b16 %v414
      %v621 = vunpack.c.h.b16 %v414
      %v622 = vunpack.c.l.b16 %v415
      %v623 = vunpack.c.h.b16 %v415
      %v624 = vunpack.c.l.b16 %v416
      %v625 = vunpack.c.h.b16 %v416
      %v626 = vunpack.c.l.b16 %v417
      %v627 = vunpack.c.h.b16 %v417
      %v628 = vunpack.c.l.b16 %v418
      %v629 = vunpack.c.h.b16 %v418
      %v630 = vunpack.c.l.b16 %v419
      %v631 = vunpack.c.h.b16 %v419
      %v632 = vunpack.c.l.b16 %v420
      %v633 = vunpack.c.h.b16 %v420
      %v634 = vunpack.c.l.b16 %v421
      %v635 = vunpack.c.h.b16 %v421
      %v636 = vunpack.c.l.b16 %v422
      %v637 = vunpack.c.h.b16 %v422
      %v638 = vunpack.c.l.b16 %v423
      %v639 = vunpack.c.h.b16 %v423
      %v640 = vunpack.c.l.b16 %v424
      %v641 = vunpack.c.h.b16 %v424
      %v642 = vunpack.c.l.b16 %v425
      %v643 = vunpack.c.h.b16 %v425
      %v644 = vunpack.c.l.b16 %v426
      %v645 = vunpack.c.h.b16 %v426
      %v646 = vunpack.c.l.b16 %v427
      %v647 = vunpack.c.h.b16 %v427
      %v648 = vunpack.c.l.b16 %v428
      %v649 = vunpack.c.h.b16 %v428
      %v650 = vunpack.c.l.b16 %v429
      %v651 = vunpack.c.h.b16 %v429
      %v652 = vunpack.c.l.b16 %v430
      %v653 = vunpack.c.h.b16 %v430
      %v654 = vunpack.c.l.b16 %v431
      %v655 = vunpack.c.h.b16 %v431
      %v656 = vpack.c.b16 %v530, %v528
      %v657 = vpack.c.b16 %v531, %v529
      %v658 = vpack.c.b16 %v534, %v532
      %v659 = vpack.c.b16 %v535, %v533
      %v660 = vpack.c.b16 %v538, %v536
      %v661 = vpack.c.b16 %v539, %v537
      %v662 = vpack.c.b16 %v542, %v540
      %v663 = vpack.c.b16 %v543, %v541
      %v664 = vpack.c.b16 %v546, %v544
      %v665 = vpack.c.b16 %v547, %v545
      %v666 = vpack.c.b16 %v550, %v548
      %v667 = vpack.c.b16 %v551, %v549
      %v668 = vpack.c.b16 %v554, %v552
      %v669 = vpack.c.b16 %v555, %v553
      %v670 = vpack.c.b16 %v558, %v556
      %v671 = vpack.c.b16 %v559, %v557
      %v672 = vpack.c.b16 %v562, %v560
      %v673 = vpack.c.b16 %v563, %v561
      %v674 = vpack.c.b16 %v566, %v564
      %v675 = vpack.c.b16 %v567, %v565
      %v676 = vpack.c.b16 %v570, %v568
      %v677 = vpack.c.b16 %v571, %v569
      %v678 = vpack.c.b16 %v574, %v572
      %v679 = vpack.c.b16 %v575, %v573
      %v680 = vpack.c.b16 %v578, %v576
      %v681 = vpack.c.b16 %v579, %v577
      %v682 = vpack.c.b16 %v582, %v580
      %v683 = vpack.c.b16 %v583, %v581
      %v684 = vpack.c.b16 %v586, %v584
      %v685 = vpack.c.b16 %v587, %v585
      %v686 = vpack.c.b16 %v590, %v588
      %v687 = vpack.c.b16 %v591, %v589
      %v688 = vpack.c.b16 %v594, %v592
      %v689 = vpack.c.b16 %v595, %v593
      %v690 = vpack.c.b16 %v598, %v596
      %v691 = vpack.c.b16 %v599, %v597
      %v692 = vpack.c.b16 %v602, %v600
      %v693 = vpack.c.b16 %v603, %v601
      %v694 = vpack.c.b16 %v606, %v604
      %v695 = vpack.c.b16 %v607, %v605
      %v696 = vpack.c.b16 %v610, %v608
      %v697 = vpack.c.b16 %v611, %v609
      %v698 = vpack.c.b16 %v614, %v612
      %v699 = vpack.c.b16 %v615, %v613
      %v700 = vpack.c.b16 %v618, %v616
      %v701 = vpack.c.b16 %v619, %v617
      %v702 = vpack.c.b16 %v622, %v620
      %v703 = vpack.c.b16 %v623, %v621
      %v704 = vpack.c.b16 %v626, %v624
      %v705 = vpack.c.b16 %v627, %v625
      %v706 = vpack.c.b16 %v630, %v628
      %v707 = vpack.c.b16 %v631, %v629
      %v708 = vpack.c.b16 %v634, %v632
      %v709 = vpack.c.b16 %v635, %v633
      %v710 = vpack.c.b16 %v638, %v636
      %v711 = vpack.c.b16 %v639, %v637
      %v712 = vpack.c.b16 %v642, %v640
      %v713 = vpack.c.b16 %v643, %v641
      %v714 = vpack.c.b16 %v646, %v644
      %v715 = vpack.c.b16 %v647, %v645
      %v716 = vpack.c.b16 %v650, %v648
      %v717 = vpack.c.b16 %v651, %v649
      %v718 = vpack.c.b16 %v654, %v652
      %v719 = vpack.c.b16 %v655, %v653
      %v816 = vunpack.c.l.b16 %v432
      %v817 = vunpack.c.l.b16 %v433
      %v818 = vunpack.c.l.b16 %v434
      %v819 = vunpack.c.l.b16 %v435
      %v820 = vunpack.c.l.b16 %v436
      %v821 = vunpack.c.l.b16 %v437
      %v822 = vunpack.c.l.b16 %v438
      %v823 = vunpack.c.l.b16 %v439
      %v824 = vunpack.c.l.b16 %v440
      %v825 = vunpack.c.l.b16 %v441
      %v826 = vunpack.c.l.b16 %v442
      %v827 = vunpack.c.l.b16 %v443
      %v828 = vunpack.c.l.b16 %v444
      %v829 = vunpack.c.l.b16 %v445
      %v830 = vunpack.c.l.b16 %v446
      %v831 = vunpack.c.l.b16 %v447
      %v832 = vunpack.c.l.b16 %v448
      %v833 = vunpack.c.l.b16 %v449
      %v834 = vunpack.c.l.b16 %v450
      %v835 = vunpack.c.l.b16 %v451
      %v836 = vunpack.c.l.b16 %v452
      %v837 = vunpack.c.l.b16 %v453
      %v838 = vunpack.c.l.b16 %v454
      %v839 = vunpack.c.l.b16 %v455
      %v840 = vunpack.c.l.b16 %v456
      %v841 = vunpack.c.l.b16 %v457
      %v842 = vunpack.c.l.b16 %v458
      %v843 = vunpack.c.l.b16 %v459
      %v844 = vunpack.c.l.b16 %v460
      %v845 = vunpack.c.l.b16 %v461
      %v846 = vunpack.c.l.b16 %v462
      %v847 = vunpack.c.l.b16 %v463
      %v848 = vpack.c.b16 %v817, %v816
      %v849 = vpack.c.b16 %v819, %v818
      %v850 = vpack.c.b16 %v821, %v820
      %v851 = vpack.c.b16 %v823, %v822
      %v852 = vpack.c.b16 %v825, %v824
      %v853 = vpack.c.b16 %v827, %v826
      %v854 = vpack.c.b16 %v829, %v828
      %v855 = vpack.c.b16 %v831, %v830
      %v856 = vpack.c.b16 %v833, %v832
      %v857 = vpack.c.b16 %v835, %v834
      %v858 = vpack.c.b16 %v837, %v836
      %v859 = vpack.c.b16 %v839, %v838
      %v860 = vpack.c.b16 %v841, %v840
      %v861 = vpack.c.b16 %v843, %v842
      %v862 = vpack.c.b16 %v845, %v844
      %v863 = vpack.c.b16 %v847, %v846
      %880 = vmatprep.subr.bf16.mxu0 0
      %881 = vmatpush1.bf16.msra.mxu0 %v855
      %882 = vmatprep.subr.bf16.mxu0 0
      %883 = vmatpush1.bf16.msra.mxu0 %v854
      %884 = vmatprep.subr.bf16.mxu0 0
      %885 = vmatpush1.bf16.msra.mxu0 %v853
      %886 = vmatprep.subr.bf16.mxu0 0
      %887 = vmatpush1.bf16.msra.mxu0 %v852
      %888 = vmatprep.subr.bf16.mxu0 0
      %889 = vmatpush1.bf16.msra.mxu0 %v851
      %890 = vmatprep.subr.bf16.mxu0 0
      %891 = vmatpush1.bf16.msra.mxu0 %v850
      %892 = vmatprep.subr.bf16.mxu0 0
      %893 = vmatpush1.bf16.msra.mxu0 %v849
      %894 = vmatprep.subr.bf16.mxu0 0
      %895 = vmatpush1.bf16.msra.mxu0 %v848
      %896 = vmatprep.subr.bf16.mxu0 0
      %897 = vmatpush2.bf16.msra.mxu0 %v863
      %898 = vmatprep.subr.bf16.mxu0 0
      %899 = vmatpush2.bf16.msra.mxu0 %v862
      %900 = vmatprep.subr.bf16.mxu0 0
      %901 = vmatpush2.bf16.msra.mxu0 %v861
      %902 = vmatprep.subr.bf16.mxu0 0
      %903 = vmatpush2.bf16.msra.mxu0 %v860
      %904 = vmatprep.subr.bf16.mxu0 0
      %905 = vmatpush2.bf16.msra.mxu0 %v859
      %906 = vmatprep.subr.bf16.mxu0 0
      %907 = vmatpush2.bf16.msra.mxu0 %v858
      %908 = vmatprep.subr.bf16.mxu0 0
      %909 = vmatpush2.bf16.msra.mxu0 %v857
      %910 = vmatprep.subr.bf16.mxu0 0
      %911 = vmatpush2.bf16.msra.mxu0 %v856
      %912 = vmatprep.mubr.bf16.mxu0 %v657
      %913 = vmatmul.mubr.bf16.gmra.mxu0 %v656
      %v914 = vpop.f32.mrf.mxu0
      %v915 = vadd.f32 0.0, %v914
      %v916 = vpop.f32.mrf.mxu0
      %v917 = vpop.f32.mrf.mxu0
      %v918 = vadd.f32 0.0, %v917
      %v919 = vpop.f32.mrf.mxu0
      %920 = vmatprep.mubr.bf16.mxu0 %v659
      %921 = vmatmul.mubr.bf16.gmra.mxu0 %v658
      %v922 = vpop.f32.mrf.mxu0
      %v923 = vadd.f32 0.0, %v922
      %v924 = vpop.f32.mrf.mxu0
      %v925 = vpop.f32.mrf.mxu0
      %v926 = vadd.f32 0.0, %v925
      %v927 = vpop.f32.mrf.mxu0
      %928 = vmatprep.mubr.bf16.mxu0 %v661
      %929 = vmatmul.mubr.bf16.gmra.mxu0 %v660
      %v930 = vpop.f32.mrf.mxu0
      %v931 = vadd.f32 0.0, %v930
      %v932 = vpop.f32.mrf.mxu0
      %v933 = vpop.f32.mrf.mxu0
      %v934 = vadd.f32 0.0, %v933
      %v935 = vpop.f32.mrf.mxu0
      %936 = vmatprep.mubr.bf16.mxu0 %v663
      %937 = vmatmul.mubr.bf16.gmra.mxu0 %v662
      %v938 = vpop.f32.mrf.mxu0
      %v939 = vadd.f32 0.0, %v938
      %v940 = vpop.f32.mrf.mxu0
      %v941 = vpop.f32.mrf.mxu0
      %v942 = vadd.f32 0.0, %v941
      %v943 = vpop.f32.mrf.mxu0
      %944 = vmatprep.mubr.bf16.mxu0 %v665
      %945 = vmatmul.mubr.bf16.gmra.mxu0 %v664
      %v946 = vpop.f32.mrf.mxu0
      %v947 = vadd.f32 0.0, %v946
      %v948 = vpop.f32.mrf.mxu0
      %v949 = vpop.f32.mrf.mxu0
      %v950 = vadd.f32 0.0, %v949
      %v951 = vpop.f32.mrf.mxu0
      %952 = vmatprep.mubr.bf16.mxu0 %v667
      %953 = vmatmul.mubr.bf16.gmra.mxu0 %v666
      %v954 = vpop.f32.mrf.mxu0
      %v955 = vadd.f32 0.0, %v954
      %v956 = vpop.f32.mrf.mxu0
      %v957 = vpop.f32.mrf.mxu0
      %v958 = vadd.f32 0.0, %v957
      %v959 = vpop.f32.mrf.mxu0
      %960 = vmatprep.mubr.bf16.mxu0 %v669
      %961 = vmatmul.mubr.bf16.gmra.mxu0 %v668
      %v962 = vpop.f32.mrf.mxu0
      %v963 = vadd.f32 0.0, %v962
      %v964 = vpop.f32.mrf.mxu0
      %v965 = vpop.f32.mrf.mxu0
      %v966 = vadd.f32 0.0, %v965
      %v967 = vpop.f32.mrf.mxu0
      %968 = vmatprep.mubr.bf16.mxu0 %v671
      %969 = vmatmul.mubr.bf16.gmra.mxu0 %v670
      %v970 = vpop.f32.mrf.mxu0
      %v971 = vadd.f32 0.0, %v970
      %v972 = vpop.f32.mrf.mxu0
      %v973 = vpop.f32.mrf.mxu0
      %v974 = vadd.f32 0.0, %v973
      %v975 = vpop.f32.mrf.mxu0
      %976 = vmatprep.mubr.bf16.mxu0 %v673
      %977 = vmatmul.mubr.bf16.gmra.mxu0 %v672
      %v978 = vpop.f32.mrf.mxu0
      %v979 = vadd.f32 0.0, %v978
      %v980 = vpop.f32.mrf.mxu0
      %v981 = vpop.f32.mrf.mxu0
      %v982 = vadd.f32 0.0, %v981
      %v983 = vpop.f32.mrf.mxu0
      %984 = vmatprep.mubr.bf16.mxu0 %v675
      %985 = vmatmul.mubr.bf16.gmra.mxu0 %v674
      %v986 = vpop.f32.mrf.mxu0
      %v987 = vadd.f32 0.0, %v986
      %v988 = vpop.f32.mrf.mxu0
      %v989 = vpop.f32.mrf.mxu0
      %v990 = vadd.f32 0.0, %v989
      %v991 = vpop.f32.mrf.mxu0
      %992 = vmatprep.mubr.bf16.mxu0 %v677
      %993 = vmatmul.mubr.bf16.gmra.mxu0 %v676
      %v994 = vpop.f32.mrf.mxu0
      %v995 = vadd.f32 0.0, %v994
      %v996 = vpop.f32.mrf.mxu0
      %v997 = vpop.f32.mrf.mxu0
      %v998 = vadd.f32 0.0, %v997
      %v999 = vpop.f32.mrf.mxu0
      %1000 = vmatprep.mubr.bf16.mxu0 %v679
      %1001 = vmatmul.mubr.bf16.gmra.mxu0 %v678
      %v1002 = vpop.f32.mrf.mxu0
      %v1003 = vadd.f32 0.0, %v1002
      %v1004 = vpop.f32.mrf.mxu0
      %v1005 = vpop.f32.mrf.mxu0
      %v1006 = vadd.f32 0.0, %v1005
      %v1007 = vpop.f32.mrf.mxu0
      %1008 = vmatprep.mubr.bf16.mxu0 %v681
      %1009 = vmatmul.mubr.bf16.gmra.mxu0 %v680
      %v1010 = vpop.f32.mrf.mxu0
      %v1011 = vadd.f32 0.0, %v1010
      %v1012 = vpop.f32.mrf.mxu0
      %v1013 = vpop.f32.mrf.mxu0
      %v1014 = vadd.f32 0.0, %v1013
      %v1015 = vpop.f32.mrf.mxu0
      %1016 = vmatprep.mubr.bf16.mxu0 %v683
      %1017 = vmatmul.mubr.bf16.gmra.mxu0 %v682
      %v1018 = vpop.f32.mrf.mxu0
      %v1019 = vadd.f32 0.0, %v1018
      %v1020 = vpop.f32.mrf.mxu0
      %v1021 = vpop.f32.mrf.mxu0
      %v1022 = vadd.f32 0.0, %v1021
      %v1023 = vpop.f32.mrf.mxu0
      %1024 = vmatprep.mubr.bf16.mxu0 %v685
      %1025 = vmatmul.mubr.bf16.gmra.mxu0 %v684
      %v1026 = vpop.f32.mrf.mxu0
      %v1027 = vadd.f32 0.0, %v1026
      %v1028 = vpop.f32.mrf.mxu0
      %v1029 = vpop.f32.mrf.mxu0
      %v1030 = vadd.f32 0.0, %v1029
      %v1031 = vpop.f32.mrf.mxu0
      %1032 = vmatprep.mubr.bf16.mxu0 %v687
      %1033 = vmatmul.mubr.bf16.gmra.mxu0 %v686
      %v1034 = vpop.f32.mrf.mxu0
      %v1035 = vadd.f32 0.0, %v1034
      %v1036 = vpop.f32.mrf.mxu0
      %v1037 = vpop.f32.mrf.mxu0
      %v1038 = vadd.f32 0.0, %v1037
      %v1039 = vpop.f32.mrf.mxu0
      %1040 = vmatprep.mubr.bf16.mxu0 %v689
      %1041 = vmatmul.mubr.bf16.gmra.mxu0 %v688
      %v1042 = vpop.f32.mrf.mxu0
      %v1043 = vadd.f32 0.0, %v1042
      %v1044 = vpop.f32.mrf.mxu0
      %v1045 = vpop.f32.mrf.mxu0
      %v1046 = vadd.f32 0.0, %v1045
      %v1047 = vpop.f32.mrf.mxu0
      %1048 = vmatprep.mubr.bf16.mxu0 %v691
      %1049 = vmatmul.mubr.bf16.gmra.mxu0 %v690
      %v1050 = vpop.f32.mrf.mxu0
      %v1051 = vadd.f32 0.0, %v1050
      %v1052 = vpop.f32.mrf.mxu0
      %v1053 = vpop.f32.mrf.mxu0
      %v1054 = vadd.f32 0.0, %v1053
      %v1055 = vpop.f32.mrf.mxu0
      %1056 = vmatprep.mubr.bf16.mxu0 %v693
      %1057 = vmatmul.mubr.bf16.gmra.mxu0 %v692
      %v1058 = vpop.f32.mrf.mxu0
      %v1059 = vadd.f32 0.0, %v1058
      %v1060 = vpop.f32.mrf.mxu0
      %v1061 = vpop.f32.mrf.mxu0
      %v1062 = vadd.f32 0.0, %v1061
      %v1063 = vpop.f32.mrf.mxu0
      %1064 = vmatprep.mubr.bf16.mxu0 %v695
      %1065 = vmatmul.mubr.bf16.gmra.mxu0 %v694
      %v1066 = vpop.f32.mrf.mxu0
      %v1067 = vadd.f32 0.0, %v1066
      %v1068 = vpop.f32.mrf.mxu0
      %v1069 = vpop.f32.mrf.mxu0
      %v1070 = vadd.f32 0.0, %v1069
      %v1071 = vpop.f32.mrf.mxu0
      %1072 = vmatprep.mubr.bf16.mxu0 %v697
      %1073 = vmatmul.mubr.bf16.gmra.mxu0 %v696
      %v1074 = vpop.f32.mrf.mxu0
      %v1075 = vadd.f32 0.0, %v1074
      %v1076 = vpop.f32.mrf.mxu0
      %v1077 = vpop.f32.mrf.mxu0
      %v1078 = vadd.f32 0.0, %v1077
      %v1079 = vpop.f32.mrf.mxu0
      %1080 = vmatprep.mubr.bf16.mxu0 %v699
      %1081 = vmatmul.mubr.bf16.gmra.mxu0 %v698
      %v1082 = vpop.f32.mrf.mxu0
      %v1083 = vadd.f32 0.0, %v1082
      %v1084 = vpop.f32.mrf.mxu0
      %v1085 = vpop.f32.mrf.mxu0
      %v1086 = vadd.f32 0.0, %v1085
      %v1087 = vpop.f32.mrf.mxu0
      %1088 = vmatprep.mubr.bf16.mxu0 %v701
      %1089 = vmatmul.mubr.bf16.gmra.mxu0 %v700
      %v1090 = vpop.f32.mrf.mxu0
      %v1091 = vadd.f32 0.0, %v1090
      %v1092 = vpop.f32.mrf.mxu0
      %v1093 = vpop.f32.mrf.mxu0
      %v1094 = vadd.f32 0.0, %v1093
      %v1095 = vpop.f32.mrf.mxu0
      %1096 = vmatprep.mubr.bf16.mxu0 %v703
      %1097 = vmatmul.mubr.bf16.gmra.mxu0 %v702
      %v1098 = vpop.f32.mrf.mxu0
      %v1099 = vadd.f32 0.0, %v1098
      %v1100 = vpop.f32.mrf.mxu0
      %v1101 = vpop.f32.mrf.mxu0
      %v1102 = vadd.f32 0.0, %v1101
      %v1103 = vpop.f32.mrf.mxu0
      %1104 = vmatprep.mubr.bf16.mxu0 %v705
      %1105 = vmatmul.mubr.bf16.gmra.mxu0 %v704
      %v1106 = vpop.f32.mrf.mxu0
      %v1107 = vadd.f32 0.0, %v1106
      %v1108 = vpop.f32.mrf.mxu0
      %v1109 = vpop.f32.mrf.mxu0
      %v1110 = vadd.f32 0.0, %v1109
      %v1111 = vpop.f32.mrf.mxu0
      %1112 = vmatprep.mubr.bf16.mxu0 %v707
      %1113 = vmatmul.mubr.bf16.gmra.mxu0 %v706
      %v1114 = vpop.f32.mrf.mxu0
      %v1115 = vadd.f32 0.0, %v1114
      %v1116 = vpop.f32.mrf.mxu0
      %v1117 = vpop.f32.mrf.mxu0
      %v1118 = vadd.f32 0.0, %v1117
      %v1119 = vpop.f32.mrf.mxu0
      %1120 = vmatprep.mubr.bf16.mxu0 %v709
      %1121 = vmatmul.mubr.bf16.gmra.mxu0 %v708
      %v1122 = vpop.f32.mrf.mxu0
      %v1123 = vadd.f32 0.0, %v1122
      %v1124 = vpop.f32.mrf.mxu0
      %v1125 = vpop.f32.mrf.mxu0
      %v1126 = vadd.f32 0.0, %v1125
      %v1127 = vpop.f32.mrf.mxu0
      %1128 = vmatprep.mubr.bf16.mxu0 %v711
      %1129 = vmatmul.mubr.bf16.gmra.mxu0 %v710
      %v1130 = vpop.f32.mrf.mxu0
      %v1131 = vadd.f32 0.0, %v1130
      %v1132 = vpop.f32.mrf.mxu0
      %v1133 = vpop.f32.mrf.mxu0
      %v1134 = vadd.f32 0.0, %v1133
      %v1135 = vpop.f32.mrf.mxu0
      %1136 = vmatprep.mubr.bf16.mxu0 %v713
      %1137 = vmatmul.mubr.bf16.gmra.mxu0 %v712
      %v1138 = vpop.f32.mrf.mxu0
      %v1139 = vadd.f32 0.0, %v1138
      %v1140 = vpop.f32.mrf.mxu0
      %v1141 = vpop.f32.mrf.mxu0
      %v1142 = vadd.f32 0.0, %v1141
      %v1143 = vpop.f32.mrf.mxu0
      %1144 = vmatprep.mubr.bf16.mxu0 %v715
      %1145 = vmatmul.mubr.bf16.gmra.mxu0 %v714
      %v1146 = vpop.f32.mrf.mxu0
      %v1147 = vadd.f32 0.0, %v1146
      %v1148 = vpop.f32.mrf.mxu0
      %v1149 = vpop.f32.mrf.mxu0
      %v1150 = vadd.f32 0.0, %v1149
      %v1151 = vpop.f32.mrf.mxu0
      %1152 = vmatprep.mubr.bf16.mxu0 %v717
      %1153 = vmatmul.mubr.bf16.gmra.mxu0 %v716
      %v1154 = vpop.f32.mrf.mxu0
      %v1155 = vadd.f32 0.0, %v1154
      %v1156 = vpop.f32.mrf.mxu0
      %v1157 = vpop.f32.mrf.mxu0
      %v1158 = vadd.f32 0.0, %v1157
      %v1159 = vpop.f32.mrf.mxu0
      %1160 = vmatprep.mubr.bf16.mxu0 %v719
      %1161 = vmatmul.mubr.bf16.gmra.mxu0 %v718
      %v1162 = vpop.f32.mrf.mxu0
      %v1163 = vadd.f32 0.0, %v1162
      %v1164 = vpop.f32.mrf.mxu0
      %v1165 = vpop.f32.mrf.mxu0
      %v1166 = vadd.f32 0.0, %v1165
      %v1167 = vpop.f32.mrf.mxu0
      %1168 = vdwg.mxu0
      %v1169 = vadd.f32 %v304, %v915
      %v1170 = vadd.f32 %v305, %v918
      %v1171 = vadd.f32 %v306, %v923
      %v1172 = vadd.f32 %v307, %v926
      %v1173 = vadd.f32 %v308, %v931
      %v1174 = vadd.f32 %v309, %v934
      %v1175 = vadd.f32 %v310, %v939
      %v1176 = vadd.f32 %v311, %v942
      %v1177 = vadd.f32 %v312, %v947
      %v1178 = vadd.f32 %v313, %v950
      %v1179 = vadd.f32 %v314, %v955
      %v1180 = vadd.f32 %v315, %v958
      %v1181 = vadd.f32 %v316, %v963
      %v1182 = vadd.f32 %v317, %v966
      %v1183 = vadd.f32 %v318, %v971
      %v1184 = vadd.f32 %v319, %v974
      %v1185 = vadd.f32 %v320, %v979
      %v1186 = vadd.f32 %v321, %v982
      %v1187 = vadd.f32 %v322, %v987
      %v1188 = vadd.f32 %v323, %v990
      %v1189 = vadd.f32 %v324, %v995
      %v1190 = vadd.f32 %v325, %v998
      %v1191 = vadd.f32 %v326, %v1003
      %v1192 = vadd.f32 %v327, %v1006
      %v1193 = vadd.f32 %v328, %v1011
      %v1194 = vadd.f32 %v329, %v1014
      %v1195 = vadd.f32 %v330, %v1019
      %v1196 = vadd.f32 %v331, %v1022
      %v1197 = vadd.f32 %v332, %v1027
      %v1198 = vadd.f32 %v333, %v1030
      %v1199 = vadd.f32 %v334, %v1035
      %v1200 = vadd.f32 %v335, %v1038
      %v1201 = vadd.f32 %v336, %v1043
      %v1202 = vadd.f32 %v337, %v1046
      %v1203 = vadd.f32 %v338, %v1051
      %v1204 = vadd.f32 %v339, %v1054
      %v1205 = vadd.f32 %v340, %v1059
      %v1206 = vadd.f32 %v341, %v1062
      %v1207 = vadd.f32 %v342, %v1067
      %v1208 = vadd.f32 %v343, %v1070
      %v1209 = vadd.f32 %v344, %v1075
      %v1210 = vadd.f32 %v345, %v1078
      %v1211 = vadd.f32 %v346, %v1083
      %v1212 = vadd.f32 %v347, %v1086
      %v1213 = vadd.f32 %v348, %v1091
      %v1214 = vadd.f32 %v349, %v1094
      %v1215 = vadd.f32 %v350, %v1099
      %v1216 = vadd.f32 %v351, %v1102
      %v1217 = vadd.f32 %v352, %v1107
      %v1218 = vadd.f32 %v353, %v1110
      %v1219 = vadd.f32 %v354, %v1115
      %v1220 = vadd.f32 %v355, %v1118
      %v1221 = vadd.f32 %v356, %v1123
      %v1222 = vadd.f32 %v357, %v1126
      %v1223 = vadd.f32 %v358, %v1131
      %v1224 = vadd.f32 %v359, %v1134
      %v1225 = vadd.f32 %v360, %v1139
      %v1226 = vadd.f32 %v361, %v1142
      %v1227 = vadd.f32 %v362, %v1147
      %v1228 = vadd.f32 %v363, %v1150
      %v1229 = vadd.f32 %v364, %v1155
      %v1230 = vadd.f32 %v365, %v1158
      %v1231 = vadd.f32 %v366, %v1163
      %v1232 = vadd.f32 %v367, %v1166
      %1233 = vst [vmem:[%s225] sm:$0xff] %v1169
      %1234 = vst [vmem:[%s225 + $0x8] sm:$0xff] %v1170
      %1235 = vst [vmem:[%s225 + $0x10] sm:$0xff] %v1171
      %1236 = vst [vmem:[%s225 + $0x18] sm:$0xff] %v1172
      %1237 = vst [vmem:[%s225 + $0x20] sm:$0xff] %v1173
      %1238 = vst [vmem:[%s225 + $0x28] sm:$0xff] %v1174
      %1239 = vst [vmem:[%s225 + $0x30] sm:$0xff] %v1175
      %1240 = vst [vmem:[%s225 + $0x38] sm:$0xff] %v1176
      %1241 = vst [vmem:[%s225 + $0x40] sm:$0xff] %v1177
      %1242 = vst [vmem:[%s225 + $0x48] sm:$0xff] %v1178
      %1243 = vst [vmem:[%s225 + $0x50] sm:$0xff] %v1179
      %1244 = vst [vmem:[%s225 + $0x58] sm:$0xff] %v1180
      %1245 = vst [vmem:[%s225 + $0x60] sm:$0xff] %v1181
      %1246 = vst [vmem:[%s225 + $0x68] sm:$0xff] %v1182
      %1247 = vst [vmem:[%s225 + $0x70] sm:$0xff] %v1183
      %1248 = vst [vmem:[%s225 + $0x78] sm:$0xff] %v1184
      %1249 = vst [vmem:[%s225 + $0x80] sm:$0xff] %v1185
      %1250 = vst [vmem:[%s225 + $0x88] sm:$0xff] %v1186
      %1251 = vst [vmem:[%s225 + $0x90] sm:$0xff] %v1187
      %1252 = vst [vmem:[%s225 + $0x98] sm:$0xff] %v1188
      %1253 = vst [vmem:[%s225 + $0xa0] sm:$0xff] %v1189
      %1254 = vst [vmem:[%s225 + $0xa8] sm:$0xff] %v1190
      %1255 = vst [vmem:[%s225 + $0xb0] sm:$0xff] %v1191
      %1256 = vst [vmem:[%s225 + $0xb8] sm:$0xff] %v1192
      %1257 = vst [vmem:[%s225 + $0xc0] sm:$0xff] %v1193
      %1258 = vst [vmem:[%s225 + $0xc8] sm:$0xff] %v1194
      %1259 = vst [vmem:[%s225 + $0xd0] sm:$0xff] %v1195
      %1260 = vst [vmem:[%s225 + $0xd8] sm:$0xff] %v1196
      %1261 = vst [vmem:[%s225 + $0xe0] sm:$0xff] %v1197
      %1262 = vst [vmem:[%s225 + $0xe8] sm:$0xff] %v1198
      %1263 = vst [vmem:[%s225 + $0xf0] sm:$0xff] %v1199
      %1264 = vst [vmem:[%s225 + $0xf8] sm:$0xff] %v1200
      %1265 = vst [vmem:[%s225 + $0x100] sm:$0xff] %v1201
      %1266 = vst [vmem:[%s225 + $0x108] sm:$0xff] %v1202
      %1267 = vst [vmem:[%s225 + $0x110] sm:$0xff] %v1203
      %1268 = vst [vmem:[%s225 + $0x118] sm:$0xff] %v1204
      %1269 = vst [vmem:[%s225 + $0x120] sm:$0xff] %v1205
      %1270 = vst [vmem:[%s225 + $0x128] sm:$0xff] %v1206
      %1271 = vst [vmem:[%s225 + $0x130] sm:$0xff] %v1207
      %1272 = vst [vmem:[%s225 + $0x138] sm:$0xff] %v1208
      %1273 = vst [vmem:[%s225 + $0x140] sm:$0xff] %v1209
      %1274 = vst [vmem:[%s225 + $0x148] sm:$0xff] %v1210
      %1275 = vst [vmem:[%s225 + $0x150] sm:$0xff] %v1211
      %1276 = vst [vmem:[%s225 + $0x158] sm:$0xff] %v1212
      %1277 = vst [vmem:[%s225 + $0x160] sm:$0xff] %v1213
      %1278 = vst [vmem:[%s225 + $0x168] sm:$0xff] %v1214
      %1279 = vst [vmem:[%s225 + $0x170] sm:$0xff] %v1215
      %1280 = vst [vmem:[%s225 + $0x178] sm:$0xff] %v1216
      %1281 = vst [vmem:[%s225 + $0x180] sm:$0xff] %v1217
      %1282 = vst [vmem:[%s225 + $0x188] sm:$0xff] %v1218
      %1283 = vst [vmem:[%s225 + $0x190] sm:$0xff] %v1219
      %1284 = vst [vmem:[%s225 + $0x198] sm:$0xff] %v1220
      %1285 = vst [vmem:[%s225 + $0x1a0] sm:$0xff] %v1221
      %1286 = vst [vmem:[%s225 + $0x1a8] sm:$0xff] %v1222
      %1287 = vst [vmem:[%s225 + $0x1b0] sm:$0xff] %v1223
      %1288 = vst [vmem:[%s225 + $0x1b8] sm:$0xff] %v1224
      %1289 = vst [vmem:[%s225 + $0x1c0] sm:$0xff] %v1225
      %1290 = vst [vmem:[%s225 + $0x1c8] sm:$0xff] %v1226
      %1291 = vst [vmem:[%s225 + $0x1d0] sm:$0xff] %v1227
      %1292 = vst [vmem:[%s225 + $0x1d8] sm:$0xff] %v1228
      %1293 = vst [vmem:[%s225 + $0x1e0] sm:$0xff] %v1229
      %1294 = vst [vmem:[%s225 + $0x1e8] sm:$0xff] %v1230
      %1295 = vst [vmem:[%s225 + $0x1f0] sm:$0xff] %v1231
      %1296 = vst [vmem:[%s225 + $0x1f8] sm:$0xff] %v1232
      %s1297 = smul.u32 64, %s18
      %p1298 = scmp.lt.s32.totalorder %s1297, 511
      %s1299 = scalar_select %p1298, %s1297, 511
      %s1300 = smul.addr %s1299, 8
      %s1301 = scalar_lea.vmem %s3, %s1300
      // Predicated region
      $region37: #{encoder_forward.5} parent=31 // pred_check
        %p1302 = pneg %p119
      $region38: #{encoder_forward.5} parent=31 // pred_check_branch
        %1304 = sbr.rel (%p1302) target = $region40
      $region39: #{encoder_forward.5} parent=31 // pred_region
        %s1305 = smul.u32 64, %s18
      $region40: #{encoder_forward.5} parent=31 // pred_fallthru
        _
    $region32: #{encoder_forward.5} parent=5 // pred_fallthru
      _
    %p1306 = scmp.le.s32.totalorder 2, %s9
    // Predicated region
    $region41: #{encoder_forward.5} parent=5 // pred_check
      %p1307 = pneg %p1306
    $region42: #{encoder_forward.5} parent=5 // pred_check_branch
      %1309 = sbr.rel (%p1307) target = $region44
    $region43: #{encoder_forward.5} parent=5 // pred_region
      %s1310 = ssub.s32 %s9, 2
      // Predicated region
      $region45: #{encoder_forward.5} parent=43 // pred_check
        %p1311 = pneg %p125
      $region46: #{encoder_forward.5} parent=43 // pred_check_branch
        %1313 = sbr.rel (%p1311) target = $region48
      $region47: #{encoder_forward.5} parent=43 // pred_region
        %s1314 = smul.u32 64, %s20
        %p1315 = scmp.lt.s32.totalorder %s1314, 511
        %s1316 = scalar_select %p1315, %s1314, 511
        %s1317 = smul.addr %s1316, 8
        %s1318 = scalar_lea.vmem %s3, %s1317
      $region48: #{encoder_forward.5} parent=43 // pred_fallthru
        _
    $region44: #{encoder_forward.5} parent=5 // pred_fallthru
      _
  $region6: #{encoder_forward.5} parent=0 // loop_footer
    %s13 = sadd.s32 1, %s9
  $region7: #{encoder_forward.5} parent=0 // loop_footer_branch
    %8 = sbr.rel target = $region3
  $region8: #{encoder_forward.5} parent=0 // loop_exit
    _

// kernel: encoder_forward.6
$region0: #{encoder_forward.6}
  #allocation0 [shape = 'u32[]', space=smem, size = 0x4, offset = 0x4, fixed_abs, tag = 'smem constant byte address 0x4 - core index']
  #allocation1 [shape = 'u32[144,128]{1,0:T(1,128)}', space=vmem, size = 0x12000, scoped, tag = 'internal scratch']
  %s0 = inlined_call_operand.vmem [shape: f32[4,1024,16], index: 0, kind: input, shape index: {}]
  %s1 = inlined_call_operand.vmem [shape: f32[1024,16], index: 1, kind: output, shape index: {}]
  %s2 = sld [smem:[#allocation0]]
  $region75: #{encoder_forward.6} parent=0
    _
  %s4 = ssub.s32 1, %s2
  %s5 = scalar_select 0, %s4, %s2
  $region1: #{encoder_forward.6} parent=0
    #allocation2 [shape = 'u8[2097152]{0}', space=vmem, size = 0x200000, scoped, tag = 'input window, operand 0']
    loop: start=0, step=1, limit=4
    $region2: #{encoder_forward.6} parent=1 // loop_pre_header
      _
    $region3: #{encoder_forward.6} parent=1 // loop_header
      %s7 = sphi 0, %s11
      %p8 = scmp.ge.s32.totalorder %s7, 4
      %s17 = sphi 0, %s19
      %s20 = sphi 0, %s17
      %s21 = sphi 0, %s20
      %s37 = sphi 0, %s21
      %s43 = sphi 0, %s45
      %s46 = sphi 0, %s43
      %s47 = sphi 0, %s46
      %s63 = sphi 0, %s47
    $region4: #{encoder_forward.6} parent=1 // loop_header_branch
      %10 = sbr.rel (%p8) target = $region8
    $region5: #{encoder_forward.6} parent=1 // loop_body
      %s12 = ssub.s32 %s7, 1
      %s13 = ssub.s32 %s7, 2
      %s14 = sadd.s32 %s7, 1
      %s15 = ssub.s32 %s7, %s14
      %p16 = scmp.eq.s32.totalorder %s15, 0
      %s18 = sadd.s32 %s17, 1
      %s19 = scalar_select %p16, %s17, %s18
      %p22 = pneg %p16
      %p23 = scmp.eq.s32.totalorder %s7, 1
      %p24 = por %p22, %p23
      %p25 = scmp.ne.s32.totalorder %s17, %s20
      %p26 = scmp.eq.s32.totalorder %s7, 0
      %p27 = por %p25, %p26
      %p28 = scmp.ne.s32.totalorder %s17, %s20
      %p29 = scmp.eq.s32.totalorder %s12, 1
      %p30 = por %p28, %p29
      %p31 = scmp.ne.s32.totalorder %s20, %s21
      %p32 = scmp.eq.s32.totalorder %s12, 0
      %p33 = por %p31, %p32
      %p34 = scmp.ne.s32.totalorder %s20, %s21
      %p35 = scmp.eq.s32.totalorder %s13, 1
      %p36 = por %p34, %p35
      %p38 = scmp.ne.s32.totalorder %s21, %s37
      %p39 = scmp.eq.s32.totalorder %s13, 0
      %p40 = por %p38, %p39
      %s41 = ssub.s32 %s7, %s14
      %p42 = scmp.eq.s32.totalorder %s41, 0
      %s44 = sadd.s32 %s43, 1
      %s45 = scalar_select %p42, %s43, %s44
      %p48 = pneg %p42
      %p49 = scmp.eq.s32.totalorder %s7, 1
      %p50 = por %p48, %p49
      %p51 = scmp.ne.s32.totalorder %s43, %s46
      %p52 = scmp.eq.s32.totalorder %s7, 0
      %p53 = por %p51, %p52
      %p54 = scmp.ne.s32.totalorder %s43, %s46
      %p55 = scmp.eq.s32.totalorder %s12, 1
      %p56 = por %p54, %p55
      %p57 = scmp.ne.s32.totalorder %s46, %s47
      %p58 = scmp.eq.s32.totalorder %s12, 0
      %p59 = por %p57, %p58
      %p60 = scmp.ne.s32.totalorder %s46, %s47
      %p61 = scmp.eq.s32.totalorder %s13, 1
      %p62 = por %p60, %p61
      %p64 = scmp.ne.s32.totalorder %s47, %s63
      %p65 = scmp.eq.s32.totalorder %s13, 0
      %p66 = por %p64, %p65
      %p67 = scmp.le.s32.totalorder 1, %s7
      %p68 = scmp.lt.s32.totalorder %s7, 3
      %p69 = pnand %p67, %p68
      %p70 = pneg %p69
      // Predicated region
      $region9: #{encoder_forward.6} parent=5 // pred_check
        _
      $region10: #{encoder_forward.6} parent=5 // pred_check_branch
        %72 = sbr.rel (%p69) target = $region12
      $region11: #{encoder_forward.6} parent=5 // pred_region
        %s73 = ssub.s32 %s7, 1
      $region12: #{encoder_forward.6} parent=5 // pred_fallthru
        _
      %p74 = scmp.lt.s32.totalorder %s7, 2
      // Predicated region
      $region13: #{encoder_forward.6} parent=5 // pred_check
        %p75 = pneg %p74
      $region14: #{encoder_forward.6} parent=5 // pred_check_branch
        %77 = sbr.rel (%p75) target = $region16
      $region15: #{encoder_forward.6} parent=5 // pred_region
        // Predicated region
        $region17: #{encoder_forward.6} parent=15 // pred_check
          %p78 = pneg %p27
        $region18: #{encoder_forward.6} parent=15 // pred_check_branch
          %80 = sbr.rel (%p78) target = $region20
        $region19: #{encoder_forward.6} parent=15 // pred_region
          %s81 = sand.u32 %s17, 1
          %s82 = sand.u32 %s17, 1
          %s83 = smul.addr %s82, 2048
          %s84 = scalar_lea.vmem [#allocation2], %s83
          %s85 = smul.u32 64, %s7
          %s86 = smul.addr %s85, 8
          %s87 = scalar_lea.vmem %s0, %s86
          // Predicated region
          $region21: #{encoder_forward.6} parent=19 // pred_check
            _
          $region22: #{encoder_forward.6} parent=19 // pred_check_branch
            %89 = sbr.rel (0) target = $region24
          $region23: #{encoder_forward.6} parent=19 // pred_region
            // Predicated region
            $region25: #{encoder_forward.6} parent=23 // pred_check
              _
            $region26: #{encoder_forward.6} parent=23 // pred_check_branch
              %91 = sbr.rel (0) target = $region28
            $region27: #{encoder_forward.6} parent=23 // pred_region
              // Predicated region
              $region40: #{encoder_forward.6} parent=27 // pred_check
                _
              $region41: #{encoder_forward.6} parent=27 // pred_check_branch
                %617 = sbr.rel (0) target = $region43
              $region42: #{encoder_forward.6} parent=27 // pred_region
                loop: start=0, step=1, limit=1
                $region44: #{encoder_forward.6} parent=42 // loop_pre_header
                  _
                $region45: #{encoder_forward.6} parent=42 // loop_header
                  %s619 = sphi 0, %s623
                  %p620 = scmp.ge.s32.totalorder %s619, 1
                  %s624 = sphi %s87, %s87
                  %s625 = sphi %s84, %s84
                $region46: #{encoder_forward.6} parent=42 // loop_header_branch
                  %622 = sbr.rel (%p620) target = $region50
                $region47: #{encoder_forward.6} parent=42 // loop_body
                  %v626 = vld [vmem:[%s624] sm:$0xff]
                  %627 = vst [vmem:[%s625] sm:$0xff] %v626
                  %v628 = vld [vmem:[%s624 + $0x8] sm:$0xff]
                  %629 = vst [vmem:[%s625 + $0x8] sm:$0xff] %v628
                  %v630 = vld [vmem:[%s624 + $0x10] sm:$0xff]
                  %631 = vst [vmem:[%s625 + $0x10] sm:$0xff] %v630
                  %v632 = vld [vmem:[%s624 + $0x18] sm:$0xff]
                  %633 = vst [vmem:[%s625 + $0x18] sm:$0xff] %v632
                  %v634 = vld [vmem:[%s624 + $0x20] sm:$0xff]
                  %635 = vst [vmem:[%s625 + $0x20] sm:$0xff] %v634
                  %v636 = vld [vmem:[%s624 + $0x28] sm:$0xff]
                  %637 = vst [vmem:[%s625 + $0x28] sm:$0xff] %v636
                  %v638 = vld [vmem:[%s624 + $0x30] sm:$0xff]
                  %639 = vst [vmem:[%s625 + $0x30] sm:$0xff] %v638
                  %v640 = vld [vmem:[%s624 + $0x38] sm:$0xff]
                  %641 = vst [vmem:[%s625 + $0x38] sm:$0xff] %v640
                  %v642 = vld [vmem:[%s624 + $0x40] sm:$0xff]
                  %643 = vst [vmem:[%s625 + $0x40] sm:$0xff] %v642
                  %v644 = vld [vmem:[%s624 + $0x48] sm:$0xff]
                  %645 = vst [vmem:[%s625 + $0x48] sm:$0xff] %v644
                  %v646 = vld [vmem:[%s624 + $0x50] sm:$0xff]
                  %647 = vst [vmem:[%s625 + $0x50] sm:$0xff] %v646
                  %v648 = vld [vmem:[%s624 + $0x58] sm:$0xff]
                  %649 = vst [vmem:[%s625 + $0x58] sm:$0xff] %v648
                  %v650 = vld [vmem:[%s624 + $0x60] sm:$0xff]
                  %651 = vst [vmem:[%s625 + $0x60] sm:$0xff] %v650
                  %v652 = vld [vmem:[%s624 + $0x68] sm:$0xff]
                  %653 = vst [vmem:[%s625 + $0x68] sm:$0xff] %v652
                  %v654 = vld [vmem:[%s624 + $0x70] sm:$0xff]
                  %655 = vst [vmem:[%s625 + $0x70] sm:$0xff] %v654
                  %v656 = vld [vmem:[%s624 + $0x78] sm:$0xff]
                  %657 = vst [vmem:[%s625 + $0x78] sm:$0xff] %v656
                  %v658 = vld [vmem:[%s624 + $0x80] sm:$0xff]
                  %659 = vst [vmem:[%s625 + $0x80] sm:$0xff] %v658
                  %v660 = vld [vmem:[%s624 + $0x88] sm:$0xff]
                  %661 = vst [vmem:[%s625 + $0x88] sm:$0xff] %v660
                  %v662 = vld [vmem:[%s624 + $0x90] sm:$0xff]
                  %663 = vst [vmem:[%s625 + $0x90] sm:$0xff] %v662
                  %v664 = vld [vmem:[%s624 + $0x98] sm:$0xff]
                  %665 = vst [vmem:[%s625 + $0x98] sm:$0xff] %v664
                  %v666 = vld [vmem:[%s624 + $0xa0] sm:$0xff]
                  %667 = vst [vmem:[%s625 + $0xa0] sm:$0xff] %v666
                  %v668 = vld [vmem:[%s624 + $0xa8] sm:$0xff]
                  %669 = vst [vmem:[%s625 + $0xa8] sm:$0xff] %v668
                  %v670 = vld [vmem:[%s624 + $0xb0] sm:$0xff]
                  %671 = vst [vmem:[%s625 + $0xb0] sm:$0xff] %v670
                  %v672 = vld [vmem:[%s624 + $0xb8] sm:$0xff]
                  %673 = vst [vmem:[%s625 + $0xb8] sm:$0xff] %v672
                  %v674 = vld [vmem:[%s624 + $0xc0] sm:$0xff]
                  %675 = vst [vmem:[%s625 + $0xc0] sm:$0xff] %v674
                  %v676 = vld [vmem:[%s624 + $0xc8] sm:$0xff]
                  %677 = vst [vmem:[%s625 + $0xc8] sm:$0xff] %v676
                  %v678 = vld [vmem:[%s624 + $0xd0] sm:$0xff]
                  %679 = vst [vmem:[%s625 + $0xd0] sm:$0xff] %v678
                  %v680 = vld [vmem:[%s624 + $0xd8] sm:$0xff]
                  %681 = vst [vmem:[%s625 + $0xd8] sm:$0xff] %v680
                  %v682 = vld [vmem:[%s624 + $0xe0] sm:$0xff]
                  %683 = vst [vmem:[%s625 + $0xe0] sm:$0xff] %v682
                  %v684 = vld [vmem:[%s624 + $0xe8] sm:$0xff]
                  %685 = vst [vmem:[%s625 + $0xe8] sm:$0xff] %v684
                  %v686 = vld [vmem:[%s624 + $0xf0] sm:$0xff]
                  %687 = vst [vmem:[%s625 + $0xf0] sm:$0xff] %v686
                  %v688 = vld [vmem:[%s624 + $0xf8] sm:$0xff]
                  %689 = vst [vmem:[%s625 + $0xf8] sm:$0xff] %v688
                  %v690 = vld [vmem:[%s624 + $0x100] sm:$0xff]
                  %691 = vst [vmem:[%s625 + $0x100] sm:$0xff] %v690
                  %v692 = vld [vmem:[%s624 + $0x108] sm:$0xff]
                  %693 = vst [vmem:[%s625 + $0x108] sm:$0xff] %v692
                  %v694 = vld [vmem:[%s624 + $0x110] sm:$0xff]
                  %695 = vst [vmem:[%s625 + $0x110] sm:$0xff] %v694
                  %v696 = vld [vmem:[%s624 + $0x118] sm:$0xff]
                  %697 = vst [vmem:[%s625 + $0x118] sm:$0xff] %v696
                  %v698 = vld [vmem:[%s624 + $0x120] sm:$0xff]
                  %699 = vst [vmem:[%s625 + $0x120] sm:$0xff] %v698
                  %v700 = vld [vmem:[%s624 + $0x128] sm:$0xff]
                  %701 = vst [vmem:[%s625 + $0x128] sm:$0xff] %v700
                  %v702 = vld [vmem:[%s624 + $0x130] sm:$0xff]
                  %703 = vst [vmem:[%s625 + $0x130] sm:$0xff] %v702
                  %v704 = vld [vmem:[%s624 + $0x138] sm:$0xff]
                  %705 = vst [vmem:[%s625 + $0x138] sm:$0xff] %v704
                  %v706 = vld [vmem:[%s624 + $0x140] sm:$0xff]
                  %707 = vst [vmem:[%s625 + $0x140] sm:$0xff] %v706
                  %v708 = vld [vmem:[%s624 + $0x148] sm:$0xff]
                  %709 = vst [vmem:[%s625 + $0x148] sm:$0xff] %v708
                  %v710 = vld [vmem:[%s624 + $0x150] sm:$0xff]
                  %711 = vst [vmem:[%s625 + $0x150] sm:$0xff] %v710
                  %v712 = vld [vmem:[%s624 + $0x158] sm:$0xff]
                  %713 = vst [vmem:[%s625 + $0x158] sm:$0xff] %v712
                  %v714 = vld [vmem:[%s624 + $0x160] sm:$0xff]
                  %715 = vst [vmem:[%s625 + $0x160] sm:$0xff] %v714
                  %v716 = vld [vmem:[%s624 + $0x168] sm:$0xff]
                  %717 = vst [vmem:[%s625 + $0x168] sm:$0xff] %v716
                  %v718 = vld [vmem:[%s624 + $0x170] sm:$0xff]
                  %719 = vst [vmem:[%s625 + $0x170] sm:$0xff] %v718
                  %v720 = vld [vmem:[%s624 + $0x178] sm:$0xff]
                  %721 = vst [vmem:[%s625 + $0x178] sm:$0xff] %v720
                  %v722 = vld [vmem:[%s624 + $0x180] sm:$0xff]
                  %723 = vst [vmem:[%s625 + $0x180] sm:$0xff] %v722
                  %v724 = vld [vmem:[%s624 + $0x188] sm:$0xff]
                  %725 = vst [vmem:[%s625 + $0x188] sm:$0xff] %v724
                  %v726 = vld [vmem:[%s624 + $0x190] sm:$0xff]
                  %727 = vst [vmem:[%s625 + $0x190] sm:$0xff] %v726
                  %v728 = vld [vmem:[%s624 + $0x198] sm:$0xff]
                  %729 = vst [vmem:[%s625 + $0x198] sm:$0xff] %v728
                  %v730 = vld [vmem:[%s624 + $0x1a0] sm:$0xff]
                  %731 = vst [vmem:[%s625 + $0x1a0] sm:$0xff] %v730
                  %v732 = vld [vmem:[%s624 + $0x1a8] sm:$0xff]
                  %733 = vst [vmem:[%s625 + $0x1a8] sm:$0xff] %v732
                  %v734 = vld [vmem:[%s624 + $0x1b0] sm:$0xff]
                  %735 = vst [vmem:[%s625 + $0x1b0] sm:$0xff] %v734
                  %v736 = vld [vmem:[%s624 + $0x1b8] sm:$0xff]
                  %737 = vst [vmem:[%s625 + $0x1b8] sm:$0xff] %v736
                  %v738 = vld [vmem:[%s624 + $0x1c0] sm:$0xff]
                  %739 = vst [vmem:[%s625 + $0x1c0] sm:$0xff] %v738
                  %v740 = vld [vmem:[%s624 + $0x1c8] sm:$0xff]
                  %741 = vst [vmem:[%s625 + $0x1c8] sm:$0xff] %v740
                  %v742 = vld [vmem:[%s624 + $0x1d0] sm:$0xff]
                  %743 = vst [vmem:[%s625 + $0x1d0] sm:$0xff] %v742
                  %v744 = vld [vmem:[%s624 + $0x1d8] sm:$0xff]
                  %745 = vst [vmem:[%s625 + $0x1d8] sm:$0xff] %v744
                  %v746 = vld [vmem:[%s624 + $0x1e0] sm:$0xff]
                  %747 = vst [vmem:[%s625 + $0x1e0] sm:$0xff] %v746
                  %v748 = vld [vmem:[%s624 + $0x1e8] sm:$0xff]
                  %749 = vst [vmem:[%s625 + $0x1e8] sm:$0xff] %v748
                  %v750 = vld [vmem:[%s624 + $0x1f0] sm:$0xff]
                  %751 = vst [vmem:[%s625 + $0x1f0] sm:$0xff] %v750
                  %v752 = vld [vmem:[%s624 + $0x1f8] sm:$0xff]
                  %753 = vst [vmem:[%s625 + $0x1f8] sm:$0xff] %v752
                  %v754 = vld [vmem:[%s624 + $0x400] sm:$0xff]
                  %755 = vst [vmem:[%s625 + $0x200] sm:$0xff] %v754
                  %v756 = vld [vmem:[%s624 + $0x408] sm:$0xff]
                  %757 = vst [vmem:[%s625 + $0x208] sm:$0xff] %v756
                  %v758 = vld [vmem:[%s624 + $0x410] sm:$0xff]
                  %759 = vst [vmem:[%s625 + $0x210] sm:$0xff] %v758
                  %v760 = vld [vmem:[%s624 + $0x418] sm:$0xff]
                  %761 = vst [vmem:[%s625 + $0x218] sm:$0xff] %v760
                  %v762 = vld [vmem:[%s624 + $0x420] sm:$0xff]
                  %763 = vst [vmem:[%s625 + $0x220] sm:$0xff] %v762
                  %v764 = vld [vmem:[%s624 + $0x428] sm:$0xff]
                  %765 = vst [vmem:[%s625 + $0x228] sm:$0xff] %v764
                  %v766 = vld [vmem:[%s624 + $0x430] sm:$0xff]
                  %767 = vst [vmem:[%s625 + $0x230] sm:$0xff] %v766
                  %v768 = vld [vmem:[%s624 + $0x438] sm:$0xff]
                  %769 = vst [vmem:[%s625 + $0x238] sm:$0xff] %v768
                  %v770 = vld [vmem:[%s624 + $0x440] sm:$0xff]
                  %771 = vst [vmem:[%s625 + $0x240] sm:$0xff] %v770
                  %v772 = vld [vmem:[%s624 + $0x448] sm:$0xff]
                  %773 = vst [vmem:[%s625 + $0x248] sm:$0xff] %v772
                  %v774 = vld [vmem:[%s624 + $0x450] sm:$0xff]
                  %775 = vst [vmem:[%s625 + $0x250] sm:$0xff] %v774
                  %v776 = vld [vmem:[%s624 + $0x458] sm:$0xff]
                  %777 = vst [vmem:[%s625 + $0x258] sm:$0xff] %v776
                  %v778 = vld [vmem:[%s624 + $0x460] sm:$0xff]
                  %779 = vst [vmem:[%s625 + $0x260] sm:$0xff] %v778
                  %v780 = vld [vmem:[%s624 + $0x468] sm:$0xff]
                  %781 = vst [vmem:[%s625 + $0x268] sm:$0xff] %v780
                  %v782 = vld [vmem:[%s624 + $0x470] sm:$0xff]
                  %783 = vst [vmem:[%s625 + $0x270] sm:$0xff] %v782
                  %v784 = vld [vmem:[%s624 + $0x478] sm:$0xff]
                  %785 = vst [vmem:[%s625 + $0x278] sm:$0xff] %v784
                  %v786 = vld [vmem:[%s624 + $0x480] sm:$0xff]
                  %787 = vst [vmem:[%s625 + $0x280] sm:$0xff] %v786
                  %v788 = vld [vmem:[%s624 + $0x488] sm:$0xff]
                  %789 = vst [vmem:[%s625 + $0x288] sm:$0xff] %v788
                  %v790 = vld [vmem:[%s624 + $0x490] sm:$0xff]
                  %791 = vst [vmem:[%s625 + $0x290] sm:$0xff] %v790
                  %v792 = vld [vmem:[%s624 + $0x498] sm:$0xff]
                  %793 = vst [vmem:[%s625 + $0x298] sm:$0xff] %v792
                  %v794 = vld [vmem:[%s624 + $0x4a0] sm:$0xff]
                  %795 = vst [vmem:[%s625 + $0x2a0] sm:$0xff] %v794
                  %v796 = vld [vmem:[%s624 + $0x4a8] sm:$0xff]
                  %797 = vst [vmem:[%s625 + $0x2a8] sm:$0xff] %v796
                  %v798 = vld [vmem:[%s624 + $0x4b0] sm:$0xff]
                  %799 = vst [vmem:[%s625 + $0x2b0] sm:$0xff] %v798
                  %v800 = vld [vmem:[%s624 + $0x4b8] sm:$0xff]
                  %801 = vst [vmem:[%s625 + $0x2b8] sm:$0xff] %v800
                  %v802 = vld [vmem:[%s624 + $0x4c0] sm:$0xff]
                  %803 = vst [vmem:[%s625 + $0x2c0] sm:$0xff] %v802
                  %v804 = vld [vmem:[%s624 + $0x4c8] sm:$0xff]
                  %805 = vst [vmem:[%s625 + $0x2c8] sm:$0xff] %v804
                  %v806 = vld [vmem:[%s624 + $0x4d0] sm:$0xff]
                  %807 = vst [vmem:[%s625 + $0x2d0] sm:$0xff] %v806
                  %v808 = vld [vmem:[%s624 + $0x4d8] sm:$0xff]
                  %809 = vst [vmem:[%s625 + $0x2d8] sm:$0xff] %v808
                  %v810 = vld [vmem:[%s624 + $0x4e0] sm:$0xff]
                  %811 = vst [vmem:[%s625 + $0x2e0] sm:$0xff] %v810
                  %v812 = vld [vmem:[%s624 + $0x4e8] sm:$0xff]
                  %813 = vst [vmem:[%s625 + $0x2e8] sm:$0xff] %v812
                  %v814 = vld [vmem:[%s624 + $0x4f0] sm:$0xff]
                  %815 = vst [vmem:[%s625 + $0x2f0] sm:$0xff] %v814
                  %v816 = vld [vmem:[%s624 + $0x4f8] sm:$0xff]
                  %817 = vst [vmem:[%s625 + $0x2f8] sm:$0xff] %v816
                  %v818 = vld [vmem:[%s624 + $0x500] sm:$0xff]
                  %819 = vst [vmem:[%s625 + $0x300] sm:$0xff] %v818
                  %v820 = vld [vmem:[%s624 + $0x508] sm:$0xff]
                  %821 = vst [vmem:[%s625 + $0x308] sm:$0xff] %v820
                  %v822 = vld [vmem:[%s624 + $0x510] sm:$0xff]
                  %823 = vst [vmem:[%s625 + $0x310] sm:$0xff] %v822
                  %v824 = vld [vmem:[%s624 + $0x518] sm:$0xff]
                  %825 = vst [vmem:[%s625 + $0x318] sm:$0xff] %v824
                  %v826 = vld [vmem:[%s624 + $0x520] sm:$0xff]
                  %827 = vst [vmem:[%s625 + $0x320] sm:$0xff] %v826
                  %v828 = vld [vmem:[%s624 + $0x528] sm:$0xff]
                  %829 = vst [vmem:[%s625 + $0x328] sm:$0xff] %v828
                  %v830 = vld [vmem:[%s624 + $0x530] sm:$0xff]
                  %831 = vst [vmem:[%s625 + $0x330] sm:$0xff] %v830
                  %v832 = vld [vmem:[%s624 + $0x538] sm:$0xff]
                  %833 = vst [vmem:[%s625 + $0x338] sm:$0xff] %v832
                  %v834 = vld [vmem:[%s624 + $0x540] sm:$0xff]
                  %835 = vst [vmem:[%s625 + $0x340] sm:$0xff] %v834
                  %v836 = vld [vmem:[%s624 + $0x548] sm:$0xff]
                  %837 = vst [vmem:[%s625 + $0x348] sm:$0xff] %v836
                  %v838 = vld [vmem:[%s624 + $0x550] sm:$0xff]
                  %839 = vst [vmem:[%s625 + $0x350] sm:$0xff] %v838
                  %v840 = vld [vmem:[%s624 + $0x558] sm:$0xff]
                  %841 = vst [vmem:[%s625 + $0x358] sm:$0xff] %v840
                  %v842 = vld [vmem:[%s624 + $0x560] sm:$0xff]
                  %843 = vst [vmem:[%s625 + $0x360] sm:$0xff] %v842
                  %v844 = vld [vmem:[%s624 + $0x568] sm:$0xff]
                  %845 = vst [vmem:[%s625 + $0x368] sm:$0xff] %v844
                  %v846 = vld [vmem:[%s624 + $0x570] sm:$0xff]
                  %847 = vst [vmem:[%s625 + $0x370] sm:$0xff] %v846
                  %v848 = vld [vmem:[%s624 + $0x578] sm:$0xff]
                  %849 = vst [vmem:[%s625 + $0x378] sm:$0xff] %v848
                  %v850 = vld [vmem:[%s624 + $0x580] sm:$0xff]
                  %851 = vst [vmem:[%s625 + $0x380] sm:$0xff] %v850
                  %v852 = vld [vmem:[%s624 + $0x588] sm:$0xff]
                  %853 = vst [vmem:[%s625 + $0x388] sm:$0xff] %v852
                  %v854 = vld [vmem:[%s624 + $0x590] sm:$0xff]
                  %855 = vst [vmem:[%s625 + $0x390] sm:$0xff] %v854
                  %v856 = vld [vmem:[%s624 + $0x598] sm:$0xff]
                  %857 = vst [vmem:[%s625 + $0x398] sm:$0xff] %v856
                  %v858 = vld [vmem:[%s624 + $0x5a0] sm:$0xff]
                  %859 = vst [vmem:[%s625 + $0x3a0] sm:$0xff] %v858
                  %v860 = vld [vmem:[%s624 + $0x5a8] sm:$0xff]
                  %861 = vst [vmem:[%s625 + $0x3a8] sm:$0xff] %v860
                  %v862 = vld [vmem:[%s624 + $0x5b0] sm:$0xff]
                  %863 = vst [vmem:[%s625 + $0x3b0] sm:$0xff] %v862
                  %v864 = vld [vmem:[%s624 + $0x5b8] sm:$0xff]
                  %865 = vst [vmem:[%s625 + $0x3b8] sm:$0xff] %v864
                  %v866 = vld [vmem:[%s624 + $0x5c0] sm:$0xff]
                  %867 = vst [vmem:[%s625 + $0x3c0] sm:$0xff] %v866
                  %v868 = vld [vmem:[%s624 + $0x5c8] sm:$0xff]
                  %869 = vst [vmem:[%s625 + $0x3c8] sm:$0xff] %v868
                  %v870 = vld [vmem:[%s624 + $0x5d0] sm:$0xff]
                  %871 = vst [vmem:[%s625 + $0x3d0] sm:$0xff] %v870
                  %v872 = vld [vmem:[%s624 + $0x5d8] sm:$0xff]
                  %873 = vst [vmem:[%s625 + $0x3d8] sm:$0xff] %v872
                  %v874 = vld [vmem:[%s624 + $0x5e0] sm:$0xff]
                  %875 = vst [vmem:[%s625 + $0x3e0] sm:$0xff] %v874
                  %v876 = vld [vmem:[%s624 + $0x5e8] sm:$0xff]
                  %877 = vst [vmem:[%s625 + $0x3e8] sm:$0xff] %v876
                  %v878 = vld [vmem:[%s624 + $0x5f0] sm:$0xff]
                  %879 = vst [vmem:[%s625 + $0x3f0] sm:$0xff] %v878
                  %v880 = vld [vmem:[%s624 + $0x5f8] sm:$0xff]
                  %881 = vst [vmem:[%s625 + $0x3f8] sm:$0xff] %v880
                  %v882 = vld [vmem:[%s624 + $0x800] sm:$0xff]
                  %883 = vst [vmem:[%s625 + $0x400] sm:$0xff] %v882
                  %v884 = vld [vmem:[%s624 + $0x808] sm:$0xff]
                  %885 = vst [vmem:[%s625 + $0x408] sm:$0xff] %v884
                  %v886 = vld [vmem:[%s624 + $0x810] sm:$0xff]
                  %887 = vst [vmem:[%s625 + $0x410] sm:$0xff] %v886
                  %v888 = vld [vmem:[%s624 + $0x818] sm:$0xff]
                  %889 = vst [vmem:[%s625 + $0x418] sm:$0xff] %v888
                  %v890 = vld [vmem:[%s624 + $0x820] sm:$0xff]
                  %891 = vst [vmem:[%s625 + $0x420] sm:$0xff] %v890
                  %v892 = vld [vmem:[%s624 + $0x828] sm:$0xff]
                  %893 = vst [vmem:[%s625 + $0x428] sm:$0xff] %v892
                  %v894 = vld [vmem:[%s624 + $0x830] sm:$0xff]
                  %895 = vst [vmem:[%s625 + $0x430] sm:$0xff] %v894
                  %v896 = vld [vmem:[%s624 + $0x838] sm:$0xff]
                  %897 = vst [vmem:[%s625 + $0x438] sm:$0xff] %v896
                  %v898 = vld [vmem:[%s624 + $0x840] sm:$0xff]
                  %899 = vst [vmem:[%s625 + $0x440] sm:$0xff] %v898
                  %v900 = vld [vmem:[%s624 + $0x848] sm:$0xff]
                  %901 = vst [vmem:[%s625 + $0x448] sm:$0xff] %v900
                  %v902 = vld [vmem:[%s624 + $0x850] sm:$0xff]
                  %903 = vst [vmem:[%s625 + $0x450] sm:$0xff] %v902
                  %v904 = vld [vmem:[%s624 + $0x858] sm:$0xff]
                  %905 = vst [vmem:[%s625 + $0x458] sm:$0xff] %v904
                  %v906 = vld [vmem:[%s624 + $0x860] sm:$0xff]
                  %907 = vst [vmem:[%s625 + $0x460] sm:$0xff] %v906
                  %v908 = vld [vmem:[%s624 + $0x868] sm:$0xff]
                  %909 = vst [vmem:[%s625 + $0x468] sm:$0xff] %v908
                  %v910 = vld [vmem:[%s624 + $0x870] sm:$0xff]
                  %911 = vst [vmem:[%s625 + $0x470] sm:$0xff] %v910
                  %v912 = vld [vmem:[%s624 + $0x878] sm:$0xff]
                  %913 = vst [vmem:[%s625 + $0x478] sm:$0xff] %v912
                  %v914 = vld [vmem:[%s624 + $0x880] sm:$0xff]
                  %915 = vst [vmem:[%s625 + $0x480] sm:$0xff] %v914
                  %v916 = vld [vmem:[%s624 + $0x888] sm:$0xff]
                  %917 = vst [vmem:[%s625 + $0x488] sm:$0xff] %v916
                  %v918 = vld [vmem:[%s624 + $0x890] sm:$0xff]
                  %919 = vst [vmem:[%s625 + $0x490] sm:$0xff] %v918
                  %v920 = vld [vmem:[%s624 + $0x898] sm:$0xff]
                  %921 = vst [vmem:[%s625 + $0x498] sm:$0xff] %v920
                  %v922 = vld [vmem:[%s624 + $0x8a0] sm:$0xff]
                  %923 = vst [vmem:[%s625 + $0x4a0] sm:$0xff] %v922
                  %v924 = vld [vmem:[%s624 + $0x8a8] sm:$0xff]
                  %925 = vst [vmem:[%s625 + $0x4a8] sm:$0xff] %v924
                  %v926 = vld [vmem:[%s624 + $0x8b0] sm:$0xff]
                  %927 = vst [vmem:[%s625 + $0x4b0] sm:$0xff] %v926
                  %v928 = vld [vmem:[%s624 + $0x8b8] sm:$0xff]
                  %929 = vst [vmem:[%s625 + $0x4b8] sm:$0xff] %v928
                  %v930 = vld [vmem:[%s624 + $0x8c0] sm:$0xff]
                  %931 = vst [vmem:[%s625 + $0x4c0] sm:$0xff] %v930
                  %v932 = vld [vmem:[%s624 + $0x8c8] sm:$0xff]
                  %933 = vst [vmem:[%s625 + $0x4c8] sm:$0xff] %v932
                  %v934 = vld [vmem:[%s624 + $0x8d0] sm:$0xff]
                  %935 = vst [vmem:[%s625 + $0x4d0] sm:$0xff] %v934
                  %v936 = vld [vmem:[%s624 + $0x8d8] sm:$0xff]
                  %937 = vst [vmem:[%s625 + $0x4d8] sm:$0xff] %v936
                  %v938 = vld [vmem:[%s624 + $0x8e0] sm:$0xff]
                  %939 = vst [vmem:[%s625 + $0x4e0] sm:$0xff] %v938
                  %v940 = vld [vmem:[%s624 + $0x8e8] sm:$0xff]
                  %941 = vst [vmem:[%s625 + $0x4e8] sm:$0xff] %v940
                  %v942 = vld [vmem:[%s624 + $0x8f0] sm:$0xff]
                  %943 = vst [vmem:[%s625 + $0x4f0] sm:$0xff] %v942
                  %v944 = vld [vmem:[%s624 + $0x8f8] sm:$0xff]
                  %945 = vst [vmem:[%s625 + $0x4f8] sm:$0xff] %v944
                  %v946 = vld [vmem:[%s624 + $0x900] sm:$0xff]
                  %947 = vst [vmem:[%s625 + $0x500] sm:$0xff] %v946
                  %v948 = vld [vmem:[%s624 + $0x908] sm:$0xff]
                  %949 = vst [vmem:[%s625 + $0x508] sm:$0xff] %v948
                  %v950 = vld [vmem:[%s624 + $0x910] sm:$0xff]
                  %951 = vst [vmem:[%s625 + $0x510] sm:$0xff] %v950
                  %v952 = vld [vmem:[%s624 + $0x918] sm:$0xff]
                  %953 = vst [vmem:[%s625 + $0x518] sm:$0xff] %v952
                  %v954 = vld [vmem:[%s624 + $0x920] sm:$0xff]
                  %955 = vst [vmem:[%s625 + $0x520] sm:$0xff] %v954
                  %v956 = vld [vmem:[%s624 + $0x928] sm:$0xff]
                  %957 = vst [vmem:[%s625 + $0x528] sm:$0xff] %v956
                  %v958 = vld [vmem:[%s624 + $0x930] sm:$0xff]
                  %959 = vst [vmem:[%s625 + $0x530] sm:$0xff] %v958
                  %v960 = vld [vmem:[%s624 + $0x938] sm:$0xff]
                  %961 = vst [vmem:[%s625 + $0x538] sm:$0xff] %v960
                  %v962 = vld [vmem:[%s624 + $0x940] sm:$0xff]
                  %963 = vst [vmem:[%s625 + $0x540] sm:$0xff] %v962
                  %v964 = vld [vmem:[%s624 + $0x948] sm:$0xff]
                  %965 = vst [vmem:[%s625 + $0x548] sm:$0xff] %v964
                  %v966 = vld [vmem:[%s624 + $0x950] sm:$0xff]
                  %967 = vst [vmem:[%s625 + $0x550] sm:$0xff] %v966
                  %v968 = vld [vmem:[%s624 + $0x958] sm:$0xff]
                  %969 = vst [vmem:[%s625 + $0x558] sm:$0xff] %v968
                  %v970 = vld [vmem:[%s624 + $0x960] sm:$0xff]
                  %971 = vst [vmem:[%s625 + $0x560] sm:$0xff] %v970
                  %v972 = vld [vmem:[%s624 + $0x968] sm:$0xff]
                  %973 = vst [vmem:[%s625 + $0x568] sm:$0xff] %v972
                  %v974 = vld [vmem:[%s624 + $0x970] sm:$0xff]
                  %975 = vst [vmem:[%s625 + $0x570] sm:$0xff] %v974
                  %v976 = vld [vmem:[%s624 + $0x978] sm:$0xff]
                  %977 = vst [vmem:[%s625 + $0x578] sm:$0xff] %v976
                  %v978 = vld [vmem:[%s624 + $0x980] sm:$0xff]
                  %979 = vst [vmem:[%s625 + $0x580] sm:$0xff] %v978
                  %v980 = vld [vmem:[%s624 + $0x988] sm:$0xff]
                  %981 = vst [vmem:[%s625 + $0x588] sm:$0xff] %v980
                  %v982 = vld [vmem:[%s624 + $0x990] sm:$0xff]
                  %983 = vst [vmem:[%s625 + $0x590] sm:$0xff] %v982
                  %v984 = vld [vmem:[%s624 + $0x998] sm:$0xff]
                  %985 = vst [vmem:[%s625 + $0x598] sm:$0xff] %v984
                  %v986 = vld [vmem:[%s624 + $0x9a0] sm:$0xff]
                  %987 = vst [vmem:[%s625 + $0x5a0] sm:$0xff] %v986
                  %v988 = vld [vmem:[%s624 + $0x9a8] sm:$0xff]
                  %989 = vst [vmem:[%s625 + $0x5a8] sm:$0xff] %v988
                  %v990 = vld [vmem:[%s624 + $0x9b0] sm:$0xff]
                  %991 = vst [vmem:[%s625 + $0x5b0] sm:$0xff] %v990
                  %v992 = vld [vmem:[%s624 + $0x9b8] sm:$0xff]
                  %993 = vst [vmem:[%s625 + $0x5b8] sm:$0xff] %v992
                  %v994 = vld [vmem:[%s624 + $0x9c0] sm:$0xff]
                  %995 = vst [vmem:[%s625 + $0x5c0] sm:$0xff] %v994
                  %v996 = vld [vmem:[%s624 + $0x9c8] sm:$0xff]
                  %997 = vst [vmem:[%s625 + $0x5c8] sm:$0xff] %v996
                  %v998 = vld [vmem:[%s624 + $0x9d0] sm:$0xff]
                  %999 = vst [vmem:[%s625 + $0x5d0] sm:$0xff] %v998
                  %v1000 = vld [vmem:[%s624 + $0x9d8] sm:$0xff]
                  %1001 = vst [vmem:[%s625 + $0x5d8] sm:$0xff] %v1000
                  %v1002 = vld [vmem:[%s624 + $0x9e0] sm:$0xff]
                  %1003 = vst [vmem:[%s625 + $0x5e0] sm:$0xff] %v1002
                  %v1004 = vld [vmem:[%s624 + $0x9e8] sm:$0xff]
                  %1005 = vst [vmem:[%s625 + $0x5e8] sm:$0xff] %v1004
                  %v1006 = vld [vmem:[%s624 + $0x9f0] sm:$0xff]
                  %1007 = vst [vmem:[%s625 + $0x5f0] sm:$0xff] %v1006
                  %v1008 = vld [vmem:[%s624 + $0x9f8] sm:$0xff]
                  %1009 = vst [vmem:[%s625 + $0x5f8] sm:$0xff] %v1008
                  %v1010 = vld [vmem:[%s624 + $0xc00] sm:$0xff]
                  %1011 = vst [vmem:[%s625 + $0x600] sm:$0xff] %v1010
                  %v1012 = vld [vmem:[%s624 + $0xc08] sm:$0xff]
                  %1013 = vst [vmem:[%s625 + $0x608] sm:$0xff] %v1012
                  %v1014 = vld [vmem:[%s624 + $0xc10] sm:$0xff]
                  %1015 = vst [vmem:[%s625 + $0x610] sm:$0xff] %v1014
                  %v1016 = vld [vmem:[%s624 + $0xc18] sm:$0xff]
                  %1017 = vst [vmem:[%s625 + $0x618] sm:$0xff] %v1016
                  %v1018 = vld [vmem:[%s624 + $0xc20] sm:$0xff]
                  %1019 = vst [vmem:[%s625 + $0x620] sm:$0xff] %v1018
                  %v1020 = vld [vmem:[%s624 + $0xc28] sm:$0xff]
                  %1021 = vst [vmem:[%s625 + $0x628] sm:$0xff] %v1020
                  %v1022 = vld [vmem:[%s624 + $0xc30] sm:$0xff]
                  %1023 = vst [vmem:[%s625 + $0x630] sm:$0xff] %v1022
                  %v1024 = vld [vmem:[%s624 + $0xc38] sm:$0xff]
                  %1025 = vst [vmem:[%s625 + $0x638] sm:$0xff] %v1024
                  %v1026 = vld [vmem:[%s624 + $0xc40] sm:$0xff]
                  %1027 = vst [vmem:[%s625 + $0x640] sm:$0xff] %v1026
                  %v1028 = vld [vmem:[%s624 + $0xc48] sm:$0xff]
                  %1029 = vst [vmem:[%s625 + $0x648] sm:$0xff] %v1028
                  %v1030 = vld [vmem:[%s624 + $0xc50] sm:$0xff]
                  %1031 = vst [vmem:[%s625 + $0x650] sm:$0xff] %v1030
                  %v1032 = vld [vmem:[%s624 + $0xc58] sm:$0xff]
                  %1033 = vst [vmem:[%s625 + $0x658] sm:$0xff] %v1032
                  %v1034 = vld [vmem:[%s624 + $0xc60] sm:$0xff]
                  %1035 = vst [vmem:[%s625 + $0x660] sm:$0xff] %v1034
                  %v1036 = vld [vmem:[%s624 + $0xc68] sm:$0xff]
                  %1037 = vst [vmem:[%s625 + $0x668] sm:$0xff] %v1036
                  %v1038 = vld [vmem:[%s624 + $0xc70] sm:$0xff]
                  %1039 = vst [vmem:[%s625 + $0x670] sm:$0xff] %v1038
                  %v1040 = vld [vmem:[%s624 + $0xc78] sm:$0xff]
                  %1041 = vst [vmem:[%s625 + $0x678] sm:$0xff] %v1040
                  %v1042 = vld [vmem:[%s624 + $0xc80] sm:$0xff]
                  %1043 = vst [vmem:[%s625 + $0x680] sm:$0xff] %v1042
                  %v1044 = vld [vmem:[%s624 + $0xc88] sm:$0xff]
                  %1045 = vst [vmem:[%s625 + $0x688] sm:$0xff] %v1044
                  %v1046 = vld [vmem:[%s624 + $0xc90] sm:$0xff]
                  %1047 = vst [vmem:[%s625 + $0x690] sm:$0xff] %v1046
                  %v1048 = vld [vmem:[%s624 + $0xc98] sm:$0xff]
                  %1049 = vst [vmem:[%s625 + $0x698] sm:$0xff] %v1048
                  %v1050 = vld [vmem:[%s624 + $0xca0] sm:$0xff]
                  %1051 = vst [vmem:[%s625 + $0x6a0] sm:$0xff] %v1050
                  %v1052 = vld [vmem:[%s624 + $0xca8] sm:$0xff]
                  %1053 = vst [vmem:[%s625 + $0x6a8] sm:$0xff] %v1052
                  %v1054 = vld [vmem:[%s624 + $0xcb0] sm:$0xff]
                  %1055 = vst [vmem:[%s625 + $0x6b0] sm:$0xff] %v1054
                  %v1056 = vld [vmem:[%s624 + $0xcb8] sm:$0xff]
                  %1057 = vst [vmem:[%s625 + $0x6b8] sm:$0xff] %v1056
                  %v1058 = vld [vmem:[%s624 + $0xcc0] sm:$0xff]
                  %1059 = vst [vmem:[%s625 + $0x6c0] sm:$0xff] %v1058
                  %v1060 = vld [vmem:[%s624 + $0xcc8] sm:$0xff]
                  %1061 = vst [vmem:[%s625 + $0x6c8] sm:$0xff] %v1060
                  %v1062 = vld [vmem:[%s624 + $0xcd0] sm:$0xff]
                  %1063 = vst [vmem:[%s625 + $0x6d0] sm:$0xff] %v1062
                  %v1064 = vld [vmem:[%s624 + $0xcd8] sm:$0xff]
                  %1065 = vst [vmem:[%s625 + $0x6d8] sm:$0xff] %v1064
                  %v1066 = vld [vmem:[%s624 + $0xce0] sm:$0xff]
                  %1067 = vst [vmem:[%s625 + $0x6e0] sm:$0xff] %v1066
                  %v1068 = vld [vmem:[%s624 + $0xce8] sm:$0xff]
                  %1069 = vst [vmem:[%s625 + $0x6e8] sm:$0xff] %v1068
                  %v1070 = vld [vmem:[%s624 + $0xcf0] sm:$0xff]
                  %1071 = vst [vmem:[%s625 + $0x6f0] sm:$0xff] %v1070
                  %v1072 = vld [vmem:[%s624 + $0xcf8] sm:$0xff]
                  %1073 = vst [vmem:[%s625 + $0x6f8] sm:$0xff] %v1072
                  %v1074 = vld [vmem:[%s624 + $0xd00] sm:$0xff]
                  %1075 = vst [vmem:[%s625 + $0x700] sm:$0xff] %v1074
                  %v1076 = vld [vmem:[%s624 + $0xd08] sm:$0xff]
                  %1077 = vst [vmem:[%s625 + $0x708] sm:$0xff] %v1076
                  %v1078 = vld [vmem:[%s624 + $0xd10] sm:$0xff]
                  %1079 = vst [vmem:[%s625 + $0x710] sm:$0xff] %v1078
                  %v1080 = vld [vmem:[%s624 + $0xd18] sm:$0xff]
                  %1081 = vst [vmem:[%s625 + $0x718] sm:$0xff] %v1080
                  %v1082 = vld [vmem:[%s624 + $0xd20] sm:$0xff]
                  %1083 = vst [vmem:[%s625 + $0x720] sm:$0xff] %v1082
                  %v1084 = vld [vmem:[%s624 + $0xd28] sm:$0xff]
                  %1085 = vst [vmem:[%s625 + $0x728] sm:$0xff] %v1084
                  %v1086 = vld [vmem:[%s624 + $0xd30] sm:$0xff]
                  %1087 = vst [vmem:[%s625 + $0x730] sm:$0xff] %v1086
                  %v1088 = vld [vmem:[%s624 + $0xd38] sm:$0xff]
                  %1089 = vst [vmem:[%s625 + $0x738] sm:$0xff] %v1088
                  %v1090 = vld [vmem:[%s624 + $0xd40] sm:$0xff]
                  %1091 = vst [vmem:[%s625 + $0x740] sm:$0xff] %v1090
                  %v1092 = vld [vmem:[%s624 + $0xd48] sm:$0xff]
                  %1093 = vst [vmem:[%s625 + $0x748] sm:$0xff] %v1092
                  %v1094 = vld [vmem:[%s624 + $0xd50] sm:$0xff]
                  %1095 = vst [vmem:[%s625 + $0x750] sm:$0xff] %v1094
                  %v1096 = vld [vmem:[%s624 + $0xd58] sm:$0xff]
                  %1097 = vst [vmem:[%s625 + $0x758] sm:$0xff] %v1096
                  %v1098 = vld [vmem:[%s624 + $0xd60] sm:$0xff]
                  %1099 = vst [vmem:[%s625 + $0x760] sm:$0xff] %v1098
                  %v1100 = vld [vmem:[%s624 + $0xd68] sm:$0xff]
                  %1101 = vst [vmem:[%s625 + $0x768] sm:$0xff] %v1100
                  %v1102 = vld [vmem:[%s624 + $0xd70] sm:$0xff]
                  %1103 = vst [vmem:[%s625 + $0x770] sm:$0xff] %v1102
                  %v1104 = vld [vmem:[%s624 + $0xd78] sm:$0xff]
                  %1105 = vst [vmem:[%s625 + $0x778] sm:$0xff] %v1104
                  %v1106 = vld [vmem:[%s624 + $0xd80] sm:$0xff]
                  %1107 = vst [vmem:[%s625 + $0x780] sm:$0xff] %v1106
                  %v1108 = vld [vmem:[%s624 + $0xd88] sm:$0xff]
                  %1109 = vst [vmem:[%s625 + $0x788] sm:$0xff] %v1108
                  %v1110 = vld [vmem:[%s624 + $0xd90] sm:$0xff]
                  %1111 = vst [vmem:[%s625 + $0x790] sm:$0xff] %v1110
                  %v1112 = vld [vmem:[%s624 + $0xd98] sm:$0xff]
                  %1113 = vst [vmem:[%s625 + $0x798] sm:$0xff] %v1112
                  %v1114 = vld [vmem:[%s624 + $0xda0] sm:$0xff]
                  %1115 = vst [vmem:[%s625 + $0x7a0] sm:$0xff] %v1114
                  %v1116 = vld [vmem:[%s624 + $0xda8] sm:$0xff]
                  %1117 = vst [vmem:[%s625 + $0x7a8] sm:$0xff] %v1116
                  %v1118 = vld [vmem:[%s624 + $0xdb0] sm:$0xff]
                  %1119 = vst [vmem:[%s625 + $0x7b0] sm:$0xff] %v1118
                  %v1120 = vld [vmem:[%s624 + $0xdb8] sm:$0xff]
                  %1121 = vst [vmem:[%s625 + $0x7b8] sm:$0xff] %v1120
                  %v1122 = vld [vmem:[%s624 + $0xdc0] sm:$0xff]
                  %1123 = vst [vmem:[%s625 + $0x7c0] sm:$0xff] %v1122
                  %v1124 = vld [vmem:[%s624 + $0xdc8] sm:$0xff]
                  %1125 = vst [vmem:[%s625 + $0x7c8] sm:$0xff] %v1124
                  %v1126 = vld [vmem:[%s624 + $0xdd0] sm:$0xff]
                  %1127 = vst [vmem:[%s625 + $0x7d0] sm:$0xff] %v1126
                  %v1128 = vld [vmem:[%s624 + $0xdd8] sm:$0xff]
                  %1129 = vst [vmem:[%s625 + $0x7d8] sm:$0xff] %v1128
                  %v1130 = vld [vmem:[%s624 + $0xde0] sm:$0xff]
                  %1131 = vst [vmem:[%s625 + $0x7e0] sm:$0xff] %v1130
                  %v1132 = vld [vmem:[%s624 + $0xde8] sm:$0xff]
                  %1133 = vst [vmem:[%s625 + $0x7e8] sm:$0xff] %v1132
                  %v1134 = vld [vmem:[%s624 + $0xdf0] sm:$0xff]
                  %1135 = vst [vmem:[%s625 + $0x7f0] sm:$0xff] %v1134
                  %v1136 = vld [vmem:[%s624 + $0xdf8] sm:$0xff]
                  %1137 = vst [vmem:[%s625 + $0x7f8] sm:$0xff] %v1136
                $region48: #{encoder_forward.6} parent=42 // loop_footer
                  %s623 = sadd.s32 1, %s619
                $region49: #{encoder_forward.6} parent=42 // loop_footer_branch
                  %618 = sbr.rel target = $region45
                $region50: #{encoder_forward.6} parent=42 // loop_exit
                  _
              $region43: #{encoder_forward.6} parent=27 // pred_fallthru
                _
              // Predicated region
              $region51: #{encoder_forward.6} parent=27 // pred_check
                _
              $region52: #{encoder_forward.6} parent=27 // pred_check_branch
                %1139 = sbr.rel target = $region54
              $region53: #{encoder_forward.6} parent=27 // pred_region
                _
              $region54: #{encoder_forward.6} parent=27 // pred_fallthru
                _
            $region28: #{encoder_forward.6} parent=23 // pred_fallthru
              _
            // Predicated region
            $region29: #{encoder_forward.6} parent=23 // pred_check
              _
            $region30: #{encoder_forward.6} parent=23 // pred_check_branch
              %93 = sbr.rel target = $region32
            $region31: #{encoder_forward.6} parent=23 // pred_region
              %s95 = ssub.s32 256, 1
              loop: start=0, step=1, limit=1
              $region33: #{encoder_forward.6} parent=31 // loop_pre_header
                _
              $region34: #{encoder_forward.6} parent=31 // loop_header
                %s97 = sphi 0, %s101
                %p98 = scmp.ge.s32.totalorder %s97, 1
                %s102 = sphi %s87, %s87
                %s103 = sphi %s84, %s84
              $region35: #{encoder_forward.6} parent=31 // loop_header_branch
                %100 = sbr.rel (%p98) target = $region39
              $region36: #{encoder_forward.6} parent=31 // loop_body
                %v104 = vld [vmem:[%s102] sm:%s95]
                %105 = vst [vmem:[%s103] sm:%s95] %v104
                %v106 = vld [vmem:[%s102 + $0x8] sm:%s95]
                %107 = vst [vmem:[%s103 + $0x8] sm:%s95] %v106
                %v108 = vld [vmem:[%s102 + $0x10] sm:%s95]
                %109 = vst [vmem:[%s103 + $0x10] sm:%s95] %v108
                %v110 = vld [vmem:[%s102 + $0x18] sm:%s95]
                %111 = vst [vmem:[%s103 + $0x18] sm:%s95] %v110
                %v112 = vld [vmem:[%s102 + $0x20] sm:%s95]
                %113 = vst [vmem:[%s103 + $0x20] sm:%s95] %v112
                %v114 = vld [vmem:[%s102 + $0x28] sm:%s95]
                %115 = vst [vmem:[%s103 + $0x28] sm:%s95] %v114
                %v116 = vld [vmem:[%s102 + $0x30] sm:%s95]
                %117 = vst [vmem:[%s103 + $0x30] sm:%s95] %v116
                %v118 = vld [vmem:[%s102 + $0x38] sm:%s95]
                %119 = vst [vmem:[%s103 + $0x38] sm:%s95] %v118
                %v120 = vld [vmem:[%s102 + $0x40] sm:%s95]
                %121 = vst [vmem:[%s103 + $0x40] sm:%s95] %v120
                %v122 = vld [vmem:[%s102 + $0x48] sm:%s95]
                %123 = vst [vmem:[%s103 + $0x48] sm:%s95] %v122
                %v124 = vld [vmem:[%s102 + $0x50] sm:%s95]
                %125 = vst [vmem:[%s103 + $0x50] sm:%s95] %v124
                %v126 = vld [vmem:[%s102 + $0x58] sm:%s95]
                %127 = vst [vmem:[%s103 + $0x58] sm:%s95] %v126
                %v128 = vld [vmem:[%s102 + $0x60] sm:%s95]
                %129 = vst [vmem:[%s103 + $0x60] sm:%s95] %v128
                %v130 = vld [vmem:[%s102 + $0x68] sm:%s95]
                %131 = vst [vmem:[%s103 + $0x68] sm:%s95] %v130
                %v132 = vld [vmem:[%s102 + $0x70] sm:%s95]
                %133 = vst [vmem:[%s103 + $0x70] sm:%s95] %v132
                %v134 = vld [vmem:[%s102 + $0x78] sm:%s95]
                %135 = vst [vmem:[%s103 + $0x78] sm:%s95] %v134
                %v136 = vld [vmem:[%s102 + $0x80] sm:%s95]
                %137 = vst [vmem:[%s103 + $0x80] sm:%s95] %v136
                %v138 = vld [vmem:[%s102 + $0x88] sm:%s95]
                %139 = vst [vmem:[%s103 + $0x88] sm:%s95] %v138
                %v140 = vld [vmem:[%s102 + $0x90] sm:%s95]
                %141 = vst [vmem:[%s103 + $0x90] sm:%s95] %v140
                %v142 = vld [vmem:[%s102 + $0x98] sm:%s95]
                %143 = vst [vmem:[%s103 + $0x98] sm:%s95] %v142
                %v144 = vld [vmem:[%s102 + $0xa0] sm:%s95]
                %145 = vst [vmem:[%s103 + $0xa0] sm:%s95] %v144
                %v146 = vld [vmem:[%s102 + $0xa8] sm:%s95]
                %147 = vst [vmem:[%s103 + $0xa8] sm:%s95] %v146
                %v148 = vld [vmem:[%s102 + $0xb0] sm:%s95]
                %149 = vst [vmem:[%s103 + $0xb0] sm:%s95] %v148
                %v150 = vld [vmem:[%s102 + $0xb8] sm:%s95]
                %151 = vst [vmem:[%s103 + $0xb8] sm:%s95] %v150
                %v152 = vld [vmem:[%s102 + $0xc0] sm:%s95]
                %153 = vst [vmem:[%s103 + $0xc0] sm:%s95] %v152
                %v154 = vld [vmem:[%s102 + $0xc8] sm:%s95]
                %155 = vst [vmem:[%s103 + $0xc8] sm:%s95] %v154
                %v156 = vld [vmem:[%s102 + $0xd0] sm:%s95]
                %157 = vst [vmem:[%s103 + $0xd0] sm:%s95] %v156
                %v158 = vld [vmem:[%s102 + $0xd8] sm:%s95]
                %159 = vst [vmem:[%s103 + $0xd8] sm:%s95] %v158
                %v160 = vld [vmem:[%s102 + $0xe0] sm:%s95]
                %161 = vst [vmem:[%s103 + $0xe0] sm:%s95] %v160
                %v162 = vld [vmem:[%s102 + $0xe8] sm:%s95]
                %163 = vst [vmem:[%s103 + $0xe8] sm:%s95] %v162
                %v164 = vld [vmem:[%s102 + $0xf0] sm:%s95]
                %165 = vst [vmem:[%s103 + $0xf0] sm:%s95] %v164
                %v166 = vld [vmem:[%s102 + $0xf8] sm:%s95]
                %167 = vst [vmem:[%s103 + $0xf8] sm:%s95] %v166
                %v168 = vld [vmem:[%s102 + $0x100] sm:%s95]
                %169 = vst [vmem:[%s103 + $0x100] sm:%s95] %v168
                %v170 = vld [vmem:[%s102 + $0x108] sm:%s95]
                %171 = vst [vmem:[%s103 + $0x108] sm:%s95] %v170
                %v172 = vld [vmem:[%s102 + $0x110] sm:%s95]
                %173 = vst [vmem:[%s103 + $0x110] sm:%s95] %v172
                %v174 = vld [vmem:[%s102 + $0x118] sm:%s95]
                %175 = vst [vmem:[%s103 + $0x118] sm:%s95] %v174
                %v176 = vld [vmem:[%s102 + $0x120] sm:%s95]
                %177 = vst [vmem:[%s103 + $0x120] sm:%s95] %v176
                %v178 = vld [vmem:[%s102 + $0x128] sm:%s95]
                %179 = vst [vmem:[%s103 + $0x128] sm:%s95] %v178
                %v180 = vld [vmem:[%s102 + $0x130] sm:%s95]
                %181 = vst [vmem:[%s103 + $0x130] sm:%s95] %v180
                %v182 = vld [vmem:[%s102 + $0x138] sm:%s95]
                %183 = vst [vmem:[%s103 + $0x138] sm:%s95] %v182
                %v184 = vld [vmem:[%s102 + $0x140] sm:%s95]
                %185 = vst [vmem:[%s103 + $0x140] sm:%s95] %v184
                %v186 = vld [vmem:[%s102 + $0x148] sm:%s95]
                %187 = vst [vmem:[%s103 + $0x148] sm:%s95] %v186
                %v188 = vld [vmem:[%s102 + $0x150] sm:%s95]
                %189 = vst [vmem:[%s103 + $0x150] sm:%s95] %v188
                %v190 = vld [vmem:[%s102 + $0x158] sm:%s95]
                %191 = vst [vmem:[%s103 + $0x158] sm:%s95] %v190
                %v192 = vld [vmem:[%s102 + $0x160] sm:%s95]
                %193 = vst [vmem:[%s103 + $0x160] sm:%s95] %v192
                %v194 = vld [vmem:[%s102 + $0x168] sm:%s95]
                %195 = vst [vmem:[%s103 + $0x168] sm:%s95] %v194
                %v196 = vld [vmem:[%s102 + $0x170] sm:%s95]
                %197 = vst [vmem:[%s103 + $0x170] sm:%s95] %v196
                %v198 = vld [vmem:[%s102 + $0x178] sm:%s95]
                %199 = vst [vmem:[%s103 + $0x178] sm:%s95] %v198
                %v200 = vld [vmem:[%s102 + $0x180] sm:%s95]
                %201 = vst [vmem:[%s103 + $0x180] sm:%s95] %v200
                %v202 = vld [vmem:[%s102 + $0x188] sm:%s95]
                %203 = vst [vmem:[%s103 + $0x188] sm:%s95] %v202
                %v204 = vld [vmem:[%s102 + $0x190] sm:%s95]
                %205 = vst [vmem:[%s103 + $0x190] sm:%s95] %v204
                %v206 = vld [vmem:[%s102 + $0x198] sm:%s95]
                %207 = vst [vmem:[%s103 + $0x198] sm:%s95] %v206
                %v208 = vld [vmem:[%s102 + $0x1a0] sm:%s95]
                %209 = vst [vmem:[%s103 + $0x1a0] sm:%s95] %v208
                %v210 = vld [vmem:[%s102 + $0x1a8] sm:%s95]
                %211 = vst [vmem:[%s103 + $0x1a8] sm:%s95] %v210
                %v212 = vld [vmem:[%s102 + $0x1b0] sm:%s95]
                %213 = vst [vmem:[%s103 + $0x1b0] sm:%s95] %v212
                %v214 = vld [vmem:[%s102 + $0x1b8] sm:%s95]
                %215 = vst [vmem:[%s103 + $0x1b8] sm:%s95] %v214
                %v216 = vld [vmem:[%s102 + $0x1c0] sm:%s95]
                %217 = vst [vmem:[%s103 + $0x1c0] sm:%s95] %v216
                %v218 = vld [vmem:[%s102 + $0x1c8] sm:%s95]
                %219 = vst [vmem:[%s103 + $0x1c8] sm:%s95] %v218
                %v220 = vld [vmem:[%s102 + $0x1d0] sm:%s95]
                %221 = vst [vmem:[%s103 + $0x1d0] sm:%s95] %v220
                %v222 = vld [vmem:[%s102 + $0x1d8] sm:%s95]
                %223 = vst [vmem:[%s103 + $0x1d8] sm:%s95] %v222
                %v224 = vld [vmem:[%s102 + $0x1e0] sm:%s95]
                %225 = vst [vmem:[%s103 + $0x1e0] sm:%s95] %v224
                %v226 = vld [vmem:[%s102 + $0x1e8] sm:%s95]
                %227 = vst [vmem:[%s103 + $0x1e8] sm:%s95] %v226
                %v228 = vld [vmem:[%s102 + $0x1f0] sm:%s95]
                %229 = vst [vmem:[%s103 + $0x1f0] sm:%s95] %v228
                %v230 = vld [vmem:[%s102 + $0x1f8] sm:%s95]
                %231 = vst [vmem:[%s103 + $0x1f8] sm:%s95] %v230
                %v232 = vld [vmem:[%s102 + $0x400] sm:%s95]
                %233 = vst [vmem:[%s103 + $0x200] sm:%s95] %v232
                %v234 = vld [vmem:[%s102 + $0x408] sm:%s95]
                %235 = vst [vmem:[%s103 + $0x208] sm:%s95] %v234
                %v236 = vld [vmem:[%s102 + $0x410] sm:%s95]
                %237 = vst [vmem:[%s103 + $0x210] sm:%s95] %v236
                %v238 = vld [vmem:[%s102 + $0x418] sm:%s95]
                %239 = vst [vmem:[%s103 + $0x218] sm:%s95] %v238
                %v240 = vld [vmem:[%s102 + $0x420] sm:%s95]
                %241 = vst [vmem:[%s103 + $0x220] sm:%s95] %v240
                %v242 = vld [vmem:[%s102 + $0x428] sm:%s95]
                %243 = vst [vmem:[%s103 + $0x228] sm:%s95] %v242
                %v244 = vld [vmem:[%s102 + $0x430] sm:%s95]
                %245 = vst [vmem:[%s103 + $0x230] sm:%s95] %v244
                %v246 = vld [vmem:[%s102 + $0x438] sm:%s95]
                %247 = vst [vmem:[%s103 + $0x238] sm:%s95] %v246
                %v248 = vld [vmem:[%s102 + $0x440] sm:%s95]
                %249 = vst [vmem:[%s103 + $0x240] sm:%s95] %v248
                %v250 = vld [vmem:[%s102 + $0x448] sm:%s95]
                %251 = vst [vmem:[%s103 + $0x248] sm:%s95] %v250
                %v252 = vld [vmem:[%s102 + $0x450] sm:%s95]
                %253 = vst [vmem:[%s103 + $0x250] sm:%s95] %v252
                %v254 = vld [vmem:[%s102 + $0x458] sm:%s95]
                %255 = vst [vmem:[%s103 + $0x258] sm:%s95] %v254
                %v256 = vld [vmem:[%s102 + $0x460] sm:%s95]
                %257 = vst [vmem:[%s103 + $0x260] sm:%s95] %v256
                %v258 = vld [vmem:[%s102 + $0x468] sm:%s95]
                %259 = vst [vmem:[%s103 + $0x268] sm:%s95] %v258
                %v260 = vld [vmem:[%s102 + $0x470] sm:%s95]
                %261 = vst [vmem:[%s103 + $0x270] sm:%s95] %v260
                %v262 = vld [vmem:[%s102 + $0x478] sm:%s95]
                %263 = vst [vmem:[%s103 + $0x278] sm:%s95] %v262
                %v264 = vld [vmem:[%s102 + $0x480] sm:%s95]
                %265 = vst [vmem:[%s103 + $0x280] sm:%s95] %v264
                %v266 = vld [vmem:[%s102 + $0x488] sm:%s95]
                %267 = vst [vmem:[%s103 + $0x288] sm:%s95] %v266
                %v268 = vld [vmem:[%s102 + $0x490] sm:%s95]
                %269 = vst [vmem:[%s103 + $0x290] sm:%s95] %v268
                %v270 = vld [vmem:[%s102 + $0x498] sm:%s95]
                %271 = vst [vmem:[%s103 + $0x298] sm:%s95] %v270
                %v272 = vld [vmem:[%s102 + $0x4a0] sm:%s95]
                %273 = vst [vmem:[%s103 + $0x2a0] sm:%s95] %v272
                %v274 = vld [vmem:[%s102 + $0x4a8] sm:%s95]
                %275 = vst [vmem:[%s103 + $0x2a8] sm:%s95] %v274
                %v276 = vld [vmem:[%s102 + $0x4b0] sm:%s95]
                %277 = vst [vmem:[%s103 + $0x2b0] sm:%s95] %v276
                %v278 = vld [vmem:[%s102 + $0x4b8] sm:%s95]
                %279 = vst [vmem:[%s103 + $0x2b8] sm:%s95] %v278
                %v280 = vld [vmem:[%s102 + $0x4c0] sm:%s95]
                %281 = vst [vmem:[%s103 + $0x2c0] sm:%s95] %v280
                %v282 = vld [vmem:[%s102 + $0x4c8] sm:%s95]
                %283 = vst [vmem:[%s103 + $0x2c8] sm:%s95] %v282
                %v284 = vld [vmem:[%s102 + $0x4d0] sm:%s95]
                %285 = vst [vmem:[%s103 + $0x2d0] sm:%s95] %v284
                %v286 = vld [vmem:[%s102 + $0x4d8] sm:%s95]
                %287 = vst [vmem:[%s103 + $0x2d8] sm:%s95] %v286
                %v288 = vld [vmem:[%s102 + $0x4e0] sm:%s95]
                %289 = vst [vmem:[%s103 + $0x2e0] sm:%s95] %v288
                %v290 = vld [vmem:[%s102 + $0x4e8] sm:%s95]
                %291 = vst [vmem:[%s103 + $0x2e8] sm:%s95] %v290
                %v292 = vld [vmem:[%s102 + $0x4f0] sm:%s95]
                %293 = vst [vmem:[%s103 + $0x2f0] sm:%s95] %v292
                %v294 = vld [vmem:[%s102 + $0x4f8] sm:%s95]
                %295 = vst [vmem:[%s103 + $0x2f8] sm:%s95] %v294
                %v296 = vld [vmem:[%s102 + $0x500] sm:%s95]
                %297 = vst [vmem:[%s103 + $0x300] sm:%s95] %v296
                %v298 = vld [vmem:[%s102 + $0x508] sm:%s95]
                %299 = vst [vmem:[%s103 + $0x308] sm:%s95] %v298
                %v300 = vld [vmem:[%s102 + $0x510] sm:%s95]
                %301 = vst [vmem:[%s103 + $0x310] sm:%s95] %v300
                %v302 = vld [vmem:[%s102 + $0x518] sm:%s95]
                %303 = vst [vmem:[%s103 + $0x318] sm:%s95] %v302
                %v304 = vld [vmem:[%s102 + $0x520] sm:%s95]
                %305 = vst [vmem:[%s103 + $0x320] sm:%s95] %v304
                %v306 = vld [vmem:[%s102 + $0x528] sm:%s95]
                %307 = vst [vmem:[%s103 + $0x328] sm:%s95] %v306
                %v308 = vld [vmem:[%s102 + $0x530] sm:%s95]
                %309 = vst [vmem:[%s103 + $0x330] sm:%s95] %v308
                %v310 = vld [vmem:[%s102 + $0x538] sm:%s95]
                %311 = vst [vmem:[%s103 + $0x338] sm:%s95] %v310
                %v312 = vld [vmem:[%s102 + $0x540] sm:%s95]
                %313 = vst [vmem:[%s103 + $0x340] sm:%s95] %v312
                %v314 = vld [vmem:[%s102 + $0x548] sm:%s95]
                %315 = vst [vmem:[%s103 + $0x348] sm:%s95] %v314
                %v316 = vld [vmem:[%s102 + $0x550] sm:%s95]
                %317 = vst [vmem:[%s103 + $0x350] sm:%s95] %v316
                %v318 = vld [vmem:[%s102 + $0x558] sm:%s95]
                %319 = vst [vmem:[%s103 + $0x358] sm:%s95] %v318
                %v320 = vld [vmem:[%s102 + $0x560] sm:%s95]
                %321 = vst [vmem:[%s103 + $0x360] sm:%s95] %v320
                %v322 = vld [vmem:[%s102 + $0x568] sm:%s95]
                %323 = vst [vmem:[%s103 + $0x368] sm:%s95] %v322
                %v324 = vld [vmem:[%s102 + $0x570] sm:%s95]
                %325 = vst [vmem:[%s103 + $0x370] sm:%s95] %v324
                %v326 = vld [vmem:[%s102 + $0x578] sm:%s95]
                %327 = vst [vmem:[%s103 + $0x378] sm:%s95] %v326
                %v328 = vld [vmem:[%s102 + $0x580] sm:%s95]
                %329 = vst [vmem:[%s103 + $0x380] sm:%s95] %v328
                %v330 = vld [vmem:[%s102 + $0x588] sm:%s95]
                %331 = vst [vmem:[%s103 + $0x388] sm:%s95] %v330
                %v332 = vld [vmem:[%s102 + $0x590] sm:%s95]
                %333 = vst [vmem:[%s103 + $0x390] sm:%s95] %v332
                %v334 = vld [vmem:[%s102 + $0x598] sm:%s95]
                %335 = vst [vmem:[%s103 + $0x398] sm:%s95] %v334
                %v336 = vld [vmem:[%s102 + $0x5a0] sm:%s95]
                %337 = vst [vmem:[%s103 + $0x3a0] sm:%s95] %v336
                %v338 = vld [vmem:[%s102 + $0x5a8] sm:%s95]
                %339 = vst [vmem:[%s103 + $0x3a8] sm:%s95] %v338
                %v340 = vld [vmem:[%s102 + $0x5b0] sm:%s95]
                %341 = vst [vmem:[%s103 + $0x3b0] sm:%s95] %v340
                %v342 = vld [vmem:[%s102 + $0x5b8] sm:%s95]
                %343 = vst [vmem:[%s103 + $0x3b8] sm:%s95] %v342
                %v344 = vld [vmem:[%s102 + $0x5c0] sm:%s95]
                %345 = vst [vmem:[%s103 + $0x3c0] sm:%s95] %v344
                %v346 = vld [vmem:[%s102 + $0x5c8] sm:%s95]
                %347 = vst [vmem:[%s103 + $0x3c8] sm:%s95] %v346
                %v348 = vld [vmem:[%s102 + $0x5d0] sm:%s95]
                %349 = vst [vmem:[%s103 + $0x3d0] sm:%s95] %v348
                %v350 = vld [vmem:[%s102 + $0x5d8] sm:%s95]
                %351 = vst [vmem:[%s103 + $0x3d8] sm:%s95] %v350
                %v352 = vld [vmem:[%s102 + $0x5e0] sm:%s95]
                %353 = vst [vmem:[%s103 + $0x3e0] sm:%s95] %v352
                %v354 = vld [vmem:[%s102 + $0x5e8] sm:%s95]
                %355 = vst [vmem:[%s103 + $0x3e8] sm:%s95] %v354
                %v356 = vld [vmem:[%s102 + $0x5f0] sm:%s95]
                %357 = vst [vmem:[%s103 + $0x3f0] sm:%s95] %v356
                %v358 = vld [vmem:[%s102 + $0x5f8] sm:%s95]
                %359 = vst [vmem:[%s103 + $0x3f8] sm:%s95] %v358
                %v360 = vld [vmem:[%s102 + $0x800] sm:%s95]
                %361 = vst [vmem:[%s103 + $0x400] sm:%s95] %v360
                %v362 = vld [vmem:[%s102 + $0x808] sm:%s95]
                %363 = vst [vmem:[%s103 + $0x408] sm:%s95] %v362
                %v364 = vld [vmem:[%s102 + $0x810] sm:%s95]
                %365 = vst [vmem:[%s103 + $0x410] sm:%s95] %v364
                %v366 = vld [vmem:[%s102 + $0x818] sm:%s95]
                %367 = vst [vmem:[%s103 + $0x418] sm:%s95] %v366
                %v368 = vld [vmem:[%s102 + $0x820] sm:%s95]
                %369 = vst [vmem:[%s103 + $0x420] sm:%s95] %v368
                %v370 = vld [vmem:[%s102 + $0x828] sm:%s95]
                %371 = vst [vmem:[%s103 + $0x428] sm:%s95] %v370
                %v372 = vld [vmem:[%s102 + $0x830] sm:%s95]
                %373 = vst [vmem:[%s103 + $0x430] sm:%s95] %v372
                %v374 = vld [vmem:[%s102 + $0x838] sm:%s95]
                %375 = vst [vmem:[%s103 + $0x438] sm:%s95] %v374
                %v376 = vld [vmem:[%s102 + $0x840] sm:%s95]
                %377 = vst [vmem:[%s103 + $0x440] sm:%s95] %v376
                %v378 = vld [vmem:[%s102 + $0x848] sm:%s95]
                %379 = vst [vmem:[%s103 + $0x448] sm:%s95] %v378
                %v380 = vld [vmem:[%s102 + $0x850] sm:%s95]
                %381 = vst [vmem:[%s103 + $0x450] sm:%s95] %v380
                %v382 = vld [vmem:[%s102 + $0x858] sm:%s95]
                %383 = vst [vmem:[%s103 + $0x458] sm:%s95] %v382
                %v384 = vld [vmem:[%s102 + $0x860] sm:%s95]
                %385 = vst [vmem:[%s103 + $0x460] sm:%s95] %v384
                %v386 = vld [vmem:[%s102 + $0x868] sm:%s95]
                %387 = vst [vmem:[%s103 + $0x468] sm:%s95] %v386
                %v388 = vld [vmem:[%s102 + $0x870] sm:%s95]
                %389 = vst [vmem:[%s103 + $0x470] sm:%s95] %v388
                %v390 = vld [vmem:[%s102 + $0x878] sm:%s95]
                %391 = vst [vmem:[%s103 + $0x478] sm:%s95] %v390
                %v392 = vld [vmem:[%s102 + $0x880] sm:%s95]
                %393 = vst [vmem:[%s103 + $0x480] sm:%s95] %v392
                %v394 = vld [vmem:[%s102 + $0x888] sm:%s95]
                %395 = vst [vmem:[%s103 + $0x488] sm:%s95] %v394
                %v396 = vld [vmem:[%s102 + $0x890] sm:%s95]
                %397 = vst [vmem:[%s103 + $0x490] sm:%s95] %v396
                %v398 = vld [vmem:[%s102 + $0x898] sm:%s95]
                %399 = vst [vmem:[%s103 + $0x498] sm:%s95] %v398
                %v400 = vld [vmem:[%s102 + $0x8a0] sm:%s95]
                %401 = vst [vmem:[%s103 + $0x4a0] sm:%s95] %v400
                %v402 = vld [vmem:[%s102 + $0x8a8] sm:%s95]
                %403 = vst [vmem:[%s103 + $0x4a8] sm:%s95] %v402
                %v404 = vld [vmem:[%s102 + $0x8b0] sm:%s95]
                %405 = vst [vmem:[%s103 + $0x4b0] sm:%s95] %v404
                %v406 = vld [vmem:[%s102 + $0x8b8] sm:%s95]
                %407 = vst [vmem:[%s103 + $0x4b8] sm:%s95] %v406
                %v408 = vld [vmem:[%s102 + $0x8c0] sm:%s95]
                %409 = vst [vmem:[%s103 + $0x4c0] sm:%s95] %v408
                %v410 = vld [vmem:[%s102 + $0x8c8] sm:%s95]
                %411 = vst [vmem:[%s103 + $0x4c8] sm:%s95] %v410
                %v412 = vld [vmem:[%s102 + $0x8d0] sm:%s95]
                %413 = vst [vmem:[%s103 + $0x4d0] sm:%s95] %v412
                %v414 = vld [vmem:[%s102 + $0x8d8] sm:%s95]
                %415 = vst [vmem:[%s103 + $0x4d8] sm:%s95] %v414
                %v416 = vld [vmem:[%s102 + $0x8e0] sm:%s95]
                %417 = vst [vmem:[%s103 + $0x4e0] sm:%s95] %v416
                %v418 = vld [vmem:[%s102 + $0x8e8] sm:%s95]
                %419 = vst [vmem:[%s103 + $0x4e8] sm:%s95] %v418
                %v420 = vld [vmem:[%s102 + $0x8f0] sm:%s95]
                %421 = vst [vmem:[%s103 + $0x4f0] sm:%s95] %v420
                %v422 = vld [vmem:[%s102 + $0x8f8] sm:%s95]
                %423 = vst [vmem:[%s103 + $0x4f8] sm:%s95] %v422
                %v424 = vld [vmem:[%s102 + $0x900] sm:%s95]
                %425 = vst [vmem:[%s103 + $0x500] sm:%s95] %v424
                %v426 = vld [vmem:[%s102 + $0x908] sm:%s95]
                %427 = vst [vmem:[%s103 + $0x508] sm:%s95] %v426
                %v428 = vld [vmem:[%s102 + $0x910] sm:%s95]
                %429 = vst [vmem:[%s103 + $0x510] sm:%s95] %v428
                %v430 = vld [vmem:[%s102 + $0x918] sm:%s95]
                %431 = vst [vmem:[%s103 + $0x518] sm:%s95] %v430
                %v432 = vld [vmem:[%s102 + $0x920] sm:%s95]
                %433 = vst [vmem:[%s103 + $0x520] sm:%s95] %v432
                %v434 = vld [vmem:[%s102 + $0x928] sm:%s95]
                %435 = vst [vmem:[%s103 + $0x528] sm:%s95] %v434
                %v436 = vld [vmem:[%s102 + $0x930] sm:%s95]
                %437 = vst [vmem:[%s103 + $0x530] sm:%s95] %v436
                %v438 = vld [vmem:[%s102 + $0x938] sm:%s95]
                %439 = vst [vmem:[%s103 + $0x538] sm:%s95] %v438
                %v440 = vld [vmem:[%s102 + $0x940] sm:%s95]
                %441 = vst [vmem:[%s103 + $0x540] sm:%s95] %v440
                %v442 = vld [vmem:[%s102 + $0x948] sm:%s95]
                %443 = vst [vmem:[%s103 + $0x548] sm:%s95] %v442
                %v444 = vld [vmem:[%s102 + $0x950] sm:%s95]
                %445 = vst [vmem:[%s103 + $0x550] sm:%s95] %v444
                %v446 = vld [vmem:[%s102 + $0x958] sm:%s95]
                %447 = vst [vmem:[%s103 + $0x558] sm:%s95] %v446
                %v448 = vld [vmem:[%s102 + $0x960] sm:%s95]
                %449 = vst [vmem:[%s103 + $0x560] sm:%s95] %v448
                %v450 = vld [vmem:[%s102 + $0x968] sm:%s95]
                %451 = vst [vmem:[%s103 + $0x568] sm:%s95] %v450
                %v452 = vld [vmem:[%s102 + $0x970] sm:%s95]
                %453 = vst [vmem:[%s103 + $0x570] sm:%s95] %v452
                %v454 = vld [vmem:[%s102 + $0x978] sm:%s95]
                %455 = vst [vmem:[%s103 + $0x578] sm:%s95] %v454
                %v456 = vld [vmem:[%s102 + $0x980] sm:%s95]
                %457 = vst [vmem:[%s103 + $0x580] sm:%s95] %v456
                %v458 = vld [vmem:[%s102 + $0x988] sm:%s95]
                %459 = vst [vmem:[%s103 + $0x588] sm:%s95] %v458
                %v460 = vld [vmem:[%s102 + $0x990] sm:%s95]
                %461 = vst [vmem:[%s103 + $0x590] sm:%s95] %v460
                %v462 = vld [vmem:[%s102 + $0x998] sm:%s95]
                %463 = vst [vmem:[%s103 + $0x598] sm:%s95] %v462
                %v464 = vld [vmem:[%s102 + $0x9a0] sm:%s95]
                %465 = vst [vmem:[%s103 + $0x5a0] sm:%s95] %v464
                %v466 = vld [vmem:[%s102 + $0x9a8] sm:%s95]
                %467 = vst [vmem:[%s103 + $0x5a8] sm:%s95] %v466
                %v468 = vld [vmem:[%s102 + $0x9b0] sm:%s95]
                %469 = vst [vmem:[%s103 + $0x5b0] sm:%s95] %v468
                %v470 = vld [vmem:[%s102 + $0x9b8] sm:%s95]
                %471 = vst [vmem:[%s103 + $0x5b8] sm:%s95] %v470
                %v472 = vld [vmem:[%s102 + $0x9c0] sm:%s95]
                %473 = vst [vmem:[%s103 + $0x5c0] sm:%s95] %v472
                %v474 = vld [vmem:[%s102 + $0x9c8] sm:%s95]
                %475 = vst [vmem:[%s103 + $0x5c8] sm:%s95] %v474
                %v476 = vld [vmem:[%s102 + $0x9d0] sm:%s95]
                %477 = vst [vmem:[%s103 + $0x5d0] sm:%s95] %v476
                %v478 = vld [vmem:[%s102 + $0x9d8] sm:%s95]
                %479 = vst [vmem:[%s103 + $0x5d8] sm:%s95] %v478
                %v480 = vld [vmem:[%s102 + $0x9e0] sm:%s95]
                %481 = vst [vmem:[%s103 + $0x5e0] sm:%s95] %v480
                %v482 = vld [vmem:[%s102 + $0x9e8] sm:%s95]
                %483 = vst [vmem:[%s103 + $0x5e8] sm:%s95] %v482
                %v484 = vld [vmem:[%s102 + $0x9f0] sm:%s95]
                %485 = vst [vmem:[%s103 + $0x5f0] sm:%s95] %v484
                %v486 = vld [vmem:[%s102 + $0x9f8] sm:%s95]
                %487 = vst [vmem:[%s103 + $0x5f8] sm:%s95] %v486
                %v488 = vld [vmem:[%s102 + $0xc00] sm:%s95]
                %489 = vst [vmem:[%s103 + $0x600] sm:%s95] %v488
                %v490 = vld [vmem:[%s102 + $0xc08] sm:%s95]
                %491 = vst [vmem:[%s103 + $0x608] sm:%s95] %v490
                %v492 = vld [vmem:[%s102 + $0xc10] sm:%s95]
                %493 = vst [vmem:[%s103 + $0x610] sm:%s95] %v492
                %v494 = vld [vmem:[%s102 + $0xc18] sm:%s95]
                %495 = vst [vmem:[%s103 + $0x618] sm:%s95] %v494
                %v496 = vld [vmem:[%s102 + $0xc20] sm:%s95]
                %497 = vst [vmem:[%s103 + $0x620] sm:%s95] %v496
                %v498 = vld [vmem:[%s102 + $0xc28] sm:%s95]
                %499 = vst [vmem:[%s103 + $0x628] sm:%s95] %v498
                %v500 = vld [vmem:[%s102 + $0xc30] sm:%s95]
                %501 = vst [vmem:[%s103 + $0x630] sm:%s95] %v500
                %v502 = vld [vmem:[%s102 + $0xc38] sm:%s95]
                %503 = vst [vmem:[%s103 + $0x638] sm:%s95] %v502
                %v504 = vld [vmem:[%s102 + $0xc40] sm:%s95]
                %505 = vst [vmem:[%s103 + $0x640] sm:%s95] %v504
                %v506 = vld [vmem:[%s102 + $0xc48] sm:%s95]
                %507 = vst [vmem:[%s103 + $0x648] sm:%s95] %v506
                %v508 = vld [vmem:[%s102 + $0xc50] sm:%s95]
                %509 = vst [vmem:[%s103 + $0x650] sm:%s95] %v508
                %v510 = vld [vmem:[%s102 + $0xc58] sm:%s95]
                %511 = vst [vmem:[%s103 + $0x658] sm:%s95] %v510
                %v512 = vld [vmem:[%s102 + $0xc60] sm:%s95]
                %513 = vst [vmem:[%s103 + $0x660] sm:%s95] %v512
                %v514 = vld [vmem:[%s102 + $0xc68] sm:%s95]
                %515 = vst [vmem:[%s103 + $0x668] sm:%s95] %v514
                %v516 = vld [vmem:[%s102 + $0xc70] sm:%s95]
                %517 = vst [vmem:[%s103 + $0x670] sm:%s95] %v516
                %v518 = vld [vmem:[%s102 + $0xc78] sm:%s95]
                %519 = vst [vmem:[%s103 + $0x678] sm:%s95] %v518
                %v520 = vld [vmem:[%s102 + $0xc80] sm:%s95]
                %521 = vst [vmem:[%s103 + $0x680] sm:%s95] %v520
                %v522 = vld [vmem:[%s102 + $0xc88] sm:%s95]
                %523 = vst [vmem:[%s103 + $0x688] sm:%s95] %v522
                %v524 = vld [vmem:[%s102 + $0xc90] sm:%s95]
                %525 = vst [vmem:[%s103 + $0x690] sm:%s95] %v524
                %v526 = vld [vmem:[%s102 + $0xc98] sm:%s95]
                %527 = vst [vmem:[%s103 + $0x698] sm:%s95] %v526
                %v528 = vld [vmem:[%s102 + $0xca0] sm:%s95]
                %529 = vst [vmem:[%s103 + $0x6a0] sm:%s95] %v528
                %v530 = vld [vmem:[%s102 + $0xca8] sm:%s95]
                %531 = vst [vmem:[%s103 + $0x6a8] sm:%s95] %v530
                %v532 = vld [vmem:[%s102 + $0xcb0] sm:%s95]
                %533 = vst [vmem:[%s103 + $0x6b0] sm:%s95] %v532
                %v534 = vld [vmem:[%s102 + $0xcb8] sm:%s95]
                %535 = vst [vmem:[%s103 + $0x6b8] sm:%s95] %v534
                %v536 = vld [vmem:[%s102 + $0xcc0] sm:%s95]
                %537 = vst [vmem:[%s103 + $0x6c0] sm:%s95] %v536
                %v538 = vld [vmem:[%s102 + $0xcc8] sm:%s95]
                %539 = vst [vmem:[%s103 + $0x6c8] sm:%s95] %v538
                %v540 = vld [vmem:[%s102 + $0xcd0] sm:%s95]
                %541 = vst [vmem:[%s103 + $0x6d0] sm:%s95] %v540
                %v542 = vld [vmem:[%s102 + $0xcd8] sm:%s95]
                %543 = vst [vmem:[%s103 + $0x6d8] sm:%s95] %v542
                %v544 = vld [vmem:[%s102 + $0xce0] sm:%s95]
                %545 = vst [vmem:[%s103 + $0x6e0] sm:%s95] %v544
                %v546 = vld [vmem:[%s102 + $0xce8] sm:%s95]
                %547 = vst [vmem:[%s103 + $0x6e8] sm:%s95] %v546
                %v548 = vld [vmem:[%s102 + $0xcf0] sm:%s95]
                %549 = vst [vmem:[%s103 + $0x6f0] sm:%s95] %v548
                %v550 = vld [vmem:[%s102 + $0xcf8] sm:%s95]
                %551 = vst [vmem:[%s103 + $0x6f8] sm:%s95] %v550
                %v552 = vld [vmem:[%s102 + $0xd00] sm:%s95]
                %553 = vst [vmem:[%s103 + $0x700] sm:%s95] %v552
                %v554 = vld [vmem:[%s102 + $0xd08] sm:%s95]
                %555 = vst [vmem:[%s103 + $0x708] sm:%s95] %v554
                %v556 = vld [vmem:[%s102 + $0xd10] sm:%s95]
                %557 = vst [vmem:[%s103 + $0x710] sm:%s95] %v556
                %v558 = vld [vmem:[%s102 + $0xd18] sm:%s95]
                %559 = vst [vmem:[%s103 + $0x718] sm:%s95] %v558
                %v560 = vld [vmem:[%s102 + $0xd20] sm:%s95]
                %561 = vst [vmem:[%s103 + $0x720] sm:%s95] %v560
                %v562 = vld [vmem:[%s102 + $0xd28] sm:%s95]
                %563 = vst [vmem:[%s103 + $0x728] sm:%s95] %v562
                %v564 = vld [vmem:[%s102 + $0xd30] sm:%s95]
                %565 = vst [vmem:[%s103 + $0x730] sm:%s95] %v564
                %v566 = vld [vmem:[%s102 + $0xd38] sm:%s95]
                %567 = vst [vmem:[%s103 + $0x738] sm:%s95] %v566
                %v568 = vld [vmem:[%s102 + $0xd40] sm:%s95]
                %569 = vst [vmem:[%s103 + $0x740] sm:%s95] %v568
                %v570 = vld [vmem:[%s102 + $0xd48] sm:%s95]
                %571 = vst [vmem:[%s103 + $0x748] sm:%s95] %v570
                %v572 = vld [vmem:[%s102 + $0xd50] sm:%s95]
                %573 = vst [vmem:[%s103 + $0x750] sm:%s95] %v572
                %v574 = vld [vmem:[%s102 + $0xd58] sm:%s95]
                %575 = vst [vmem:[%s103 + $0x758] sm:%s95] %v574
                %v576 = vld [vmem:[%s102 + $0xd60] sm:%s95]
                %577 = vst [vmem:[%s103 + $0x760] sm:%s95] %v576
                %v578 = vld [vmem:[%s102 + $0xd68] sm:%s95]
                %579 = vst [vmem:[%s103 + $0x768] sm:%s95] %v578
                %v580 = vld [vmem:[%s102 + $0xd70] sm:%s95]
                %581 = vst [vmem:[%s103 + $0x770] sm:%s95] %v580
                %v582 = vld [vmem:[%s102 + $0xd78] sm:%s95]
                %583 = vst [vmem:[%s103 + $0x778] sm:%s95] %v582
                %v584 = vld [vmem:[%s102 + $0xd80] sm:%s95]
                %585 = vst [vmem:[%s103 + $0x780] sm:%s95] %v584
                %v586 = vld [vmem:[%s102 + $0xd88] sm:%s95]
                %587 = vst [vmem:[%s103 + $0x788] sm:%s95] %v586
                %v588 = vld [vmem:[%s102 + $0xd90] sm:%s95]
                %589 = vst [vmem:[%s103 + $0x790] sm:%s95] %v588
                %v590 = vld [vmem:[%s102 + $0xd98] sm:%s95]
                %591 = vst [vmem:[%s103 + $0x798] sm:%s95] %v590
                %v592 = vld [vmem:[%s102 + $0xda0] sm:%s95]
                %593 = vst [vmem:[%s103 + $0x7a0] sm:%s95] %v592
                %v594 = vld [vmem:[%s102 + $0xda8] sm:%s95]
                %595 = vst [vmem:[%s103 + $0x7a8] sm:%s95] %v594
                %v596 = vld [vmem:[%s102 + $0xdb0] sm:%s95]
                %597 = vst [vmem:[%s103 + $0x7b0] sm:%s95] %v596
                %v598 = vld [vmem:[%s102 + $0xdb8] sm:%s95]
                %599 = vst [vmem:[%s103 + $0x7b8] sm:%s95] %v598
                %v600 = vld [vmem:[%s102 + $0xdc0] sm:%s95]
                %601 = vst [vmem:[%s103 + $0x7c0] sm:%s95] %v600
                %v602 = vld [vmem:[%s102 + $0xdc8] sm:%s95]
                %603 = vst [vmem:[%s103 + $0x7c8] sm:%s95] %v602
                %v604 = vld [vmem:[%s102 + $0xdd0] sm:%s95]
                %605 = vst [vmem:[%s103 + $0x7d0] sm:%s95] %v604
                %v606 = vld [vmem:[%s102 + $0xdd8] sm:%s95]
                %607 = vst [vmem:[%s103 + $0x7d8] sm:%s95] %v606
                %v608 = vld [vmem:[%s102 + $0xde0] sm:%s95]
                %609 = vst [vmem:[%s103 + $0x7e0] sm:%s95] %v608
                %v610 = vld [vmem:[%s102 + $0xde8] sm:%s95]
                %611 = vst [vmem:[%s103 + $0x7e8] sm:%s95] %v610
                %v612 = vld [vmem:[%s102 + $0xdf0] sm:%s95]
                %613 = vst [vmem:[%s103 + $0x7f0] sm:%s95] %v612
                %v614 = vld [vmem:[%s102 + $0xdf8] sm:%s95]
                %615 = vst [vmem:[%s103 + $0x7f8] sm:%s95] %v614
              $region37: #{encoder_forward.6} parent=31 // loop_footer
                %s101 = sadd.s32 1, %s97
              $region38: #{encoder_forward.6} parent=31 // loop_footer_branch
                %96 = sbr.rel target = $region34
              $region39: #{encoder_forward.6} parent=31 // loop_exit
                _
            $region32: #{encoder_forward.6} parent=23 // pred_fallthru
              _
          $region24: #{encoder_forward.6} parent=19 // pred_fallthru
            _
          %1140 = vnop
        $region20: #{encoder_forward.6} parent=15 // pred_fallthru
          _
      $region16: #{encoder_forward.6} parent=5 // pred_fallthru
        _
      %p1141 = scmp.le.s32.totalorder 1, %s7
      %p1142 = scmp.lt.s32.totalorder %s7, 3
      %p1143 = pnand %p1141, %p1142
      %p1144 = pneg %p1143
      // Predicated region
      $region55: #{encoder_forward.6} parent=5 // pred_check
        _
      $region56: #{encoder_forward.6} parent=5 // pred_check_branch
        %1146 = sbr.rel (%p1143) target = $region58
      $region57: #{encoder_forward.6} parent=5 // pred_region
        %s1147 = ssub.s32 %s7, 1
        %s1148 = sand.u32 %s20, 1
        %s1149 = sand.u32 %s20, 1
        %s1150 = smul.addr %s1149, 2048
        %s1151 = scalar_lea.vmem [#allocation2], %s1150
        // Predicated region
        $region59: #{encoder_forward.6} parent=57 // pred_check
          %p1152 = pneg %p33
        $region60: #{encoder_forward.6} parent=57 // pred_check_branch
          %1154 = sbr.rel (%p1152) target = $region62
        $region61: #{encoder_forward.6} parent=57 // pred_region
          _
        $region62: #{encoder_forward.6} parent=57 // pred_fallthru
          _
        %s1155 = sand.u32 %s20, 1
        %s1156 = sand.u32 %s20, 1
        %s1157 = smul.addr %s1156, 2048
        %s1158 = scalar_lea.vmem [#allocation2], %s1157
        %p1159 = pneg %p33
        %p1160 = pneg %p30
        %p1161 = pneg %p59
        %p1162 = pneg %p56
        %s1163 = smul.u32 64, %s12
        %p1164 = scmp.lt.s32.totalorder %s1163, 127
        %s1165 = scalar_select %p1164, %s1163, 127
        %s1166 = smul.addr %s1165, 8
        %s1167 = scalar_lea.vmem %s1, %s1166
        %s1168 = smul.u32 64, %s12
        %s1169 = smul.u32 64, %s12
        %p1170 = scmp.lt.s32.totalorder %s1169, 127
        %s1171 = scalar_select %p1170, %s1169, 127
        %s1172 = smul.addr %s1171, 8
        %s1173 = scalar_lea.vmem %s1, %s1172
        %s1174 = smul.u32 64, %s12
        %v1175 = vld [vmem:[%s1151] sm:$0xff]
        %v1176 = vld [vmem:[%s1151 + $0x8] sm:$0xff]
        %v1177 = vld [vmem:[%s1151 + $0x10] sm:$0xff]
        %v1178 = vld [vmem:[%s1151 + $0x18] sm:$0xff]
        %v1179 = vld [vmem:[%s1151 + $0x20] sm:$0xff]
        %v1180 = vld [vmem:[%s1151 + $0x28] sm:$0xff]
        %v1181 = vld [vmem:[%s1151 + $0x30] sm:$0xff]
        %v1182 = vld [vmem:[%s1151 + $0x38] sm:$0xff]
        %v1183 = vld [vmem:[%s1151 + $0x40] sm:$0xff]
        %v1184 = vld [vmem:[%s1151 + $0x48] sm:$0xff]
        %v1185 = vld [vmem:[%s1151 + $0x50] sm:$0xff]
        %v1186 = vld [vmem:[%s1151 + $0x58] sm:$0xff]
        %v1187 = vld [vmem:[%s1151 + $0x60] sm:$0xff]
        %v1188 = vld [vmem:[%s1151 + $0x68] sm:$0xff]
        %v1189 = vld [vmem:[%s1151 + $0x70] sm:$0xff]
        %v1190 = vld [vmem:[%s1151 + $0x78] sm:$0xff]
        %v1191 = vld [vmem:[%s1151 + $0x80] sm:$0xff]
        %v1192 = vld [vmem:[%s1151 + $0x88] sm:$0xff]
        %v1193 = vld [vmem:[%s1151 + $0x90] sm:$0xff]
        %v1194 = vld [vmem:[%s1151 + $0x98] sm:$0xff]
        %v1195 = vld [vmem:[%s1151 + $0xa0] sm:$0xff]
        %v1196 = vld [vmem:[%s1151 + $0xa8] sm:$0xff]
        %v1197 = vld [vmem:[%s1151 + $0xb0] sm:$0xff]
        %v1198 = vld [vmem:[%s1151 + $0xb8] sm:$0xff]
        %v1199 = vld [vmem:[%s1151 + $0xc0] sm:$0xff]
        %v1200 = vld [vmem:[%s1151 + $0xc8] sm:$0xff]
        %v1201 = vld [vmem:[%s1151 + $0xd0] sm:$0xff]
        %v1202 = vld [vmem:[%s1151 + $0xd8] sm:$0xff]
        %v1203 = vld [vmem:[%s1151 + $0xe0] sm:$0xff]
        %v1204 = vld [vmem:[%s1151 + $0xe8] sm:$0xff]
        %v1205 = vld [vmem:[%s1151 + $0xf0] sm:$0xff]
        %v1206 = vld [vmem:[%s1151 + $0xf8] sm:$0xff]
        %v1207 = vld [vmem:[%s1151 + $0x100] sm:$0xff]
        %v1208 = vld [vmem:[%s1151 + $0x108] sm:$0xff]
        %v1209 = vld [vmem:[%s1151 + $0x110] sm:$0xff]
        %v1210 = vld [vmem:[%s1151 + $0x118] sm:$0xff]
        %v1211 = vld [vmem:[%s1151 + $0x120] sm:$0xff]
        %v1212 = vld [vmem:[%s1151 + $0x128] sm:$0xff]
        %v1213 = vld [vmem:[%s1151 + $0x130] sm:$0xff]
        %v1214 = vld [vmem:[%s1151 + $0x138] sm:$0xff]
        %v1215 = vld [vmem:[%s1151 + $0x140] sm:$0xff]
        %v1216 = vld [vmem:[%s1151 + $0x148] sm:$0xff]
        %v1217 = vld [vmem:[%s1151 + $0x150] sm:$0xff]
        %v1218 = vld [vmem:[%s1151 + $0x158] sm:$0xff]
        %v1219 = vld [vmem:[%s1151 + $0x160] sm:$0xff]
        %v1220 = vld [vmem:[%s1151 + $0x168] sm:$0xff]
        %v1221 = vld [vmem:[%s1151 + $0x170] sm:$0xff]
        %v1222 = vld [vmem:[%s1151 + $0x178] sm:$0xff]
        %v1223 = vld [vmem:[%s1151 + $0x180] sm:$0xff]
        %v1224 = vld [vmem:[%s1151 + $0x188] sm:$0xff]
        %v1225 = vld [vmem:[%s1151 + $0x190] sm:$0xff]
        %v1226 = vld [vmem:[%s1151 + $0x198] sm:$0xff]
        %v1227 = vld [vmem:[%s1151 + $0x1a0] sm:$0xff]
        %v1228 = vld [vmem:[%s1151 + $0x1a8] sm:$0xff]
        %v1229 = vld [vmem:[%s1151 + $0x1b0] sm:$0xff]
        %v1230 = vld [vmem:[%s1151 + $0x1b8] sm:$0xff]
        %v1231 = vld [vmem:[%s1151 + $0x1c0] sm:$0xff]
        %v1232 = vld [vmem:[%s1151 + $0x1c8] sm:$0xff]
        %v1233 = vld [vmem:[%s1151 + $0x1d0] sm:$0xff]
        %v1234 = vld [vmem:[%s1151 + $0x1d8] sm:$0xff]
        %v1235 = vld [vmem:[%s1151 + $0x1e0] sm:$0xff]
        %v1236 = vld [vmem:[%s1151 + $0x1e8] sm:$0xff]
        %v1237 = vld [vmem:[%s1151 + $0x1f0] sm:$0xff]
        %v1238 = vld [vmem:[%s1151 + $0x1f8] sm:$0xff]
        %s1239 = scalar_lea.vmem %s1151, 512 [#allocation2]
        %v1240 = vld [vmem:[%s1239] sm:$0xff]
        %v1241 = vld [vmem:[%s1239 + $0x8] sm:$0xff]
        %v1242 = vld [vmem:[%s1239 + $0x10] sm:$0xff]
        %v1243 = vld [vmem:[%s1239 + $0x18] sm:$0xff]
        %v1244 = vld [vmem:[%s1239 + $0x20] sm:$0xff]
        %v1245 = vld [vmem:[%s1239 + $0x28] sm:$0xff]
        %v1246 = vld [vmem:[%s1239 + $0x30] sm:$0xff]
        %v1247 = vld [vmem:[%s1239 + $0x38] sm:$0xff]
        %v1248 = vld [vmem:[%s1239 + $0x40] sm:$0xff]
        %v1249 = vld [vmem:[%s1239 + $0x48] sm:$0xff]
        %v1250 = vld [vmem:[%s1239 + $0x50] sm:$0xff]
        %v1251 = vld [vmem:[%s1239 + $0x58] sm:$0xff]
        %v1252 = vld [vmem:[%s1239 + $0x60] sm:$0xff]
        %v1253 = vld [vmem:[%s1239 + $0x68] sm:$0xff]
        %v1254 = vld [vmem:[%s1239 + $0x70] sm:$0xff]
        %v1255 = vld [vmem:[%s1239 + $0x78] sm:$0xff]
        %v1256 = vld [vmem:[%s1239 + $0x80] sm:$0xff]
        %v1257 = vld [vmem:[%s1239 + $0x88] sm:$0xff]
        %v1258 = vld [vmem:[%s1239 + $0x90] sm:$0xff]
        %v1259 = vld [vmem:[%s1239 + $0x98] sm:$0xff]
        %v1260 = vld [vmem:[%s1239 + $0xa0] sm:$0xff]
        %v1261 = vld [vmem:[%s1239 + $0xa8] sm:$0xff]
        %v1262 = vld [vmem:[%s1239 + $0xb0] sm:$0xff]
        %v1263 = vld [vmem:[%s1239 + $0xb8] sm:$0xff]
        %v1264 = vld [vmem:[%s1239 + $0xc0] sm:$0xff]
        %v1265 = vld [vmem:[%s1239 + $0xc8] sm:$0xff]
        %v1266 = vld [vmem:[%s1239 + $0xd0] sm:$0xff]
        %v1267 = vld [vmem:[%s1239 + $0xd8] sm:$0xff]
        %v1268 = vld [vmem:[%s1239 + $0xe0] sm:$0xff]
        %v1269 = vld [vmem:[%s1239 + $0xe8] sm:$0xff]
        %v1270 = vld [vmem:[%s1239 + $0xf0] sm:$0xff]
        %v1271 = vld [vmem:[%s1239 + $0xf8] sm:$0xff]
        %v1272 = vld [vmem:[%s1239 + $0x100] sm:$0xff]
        %v1273 = vld [vmem:[%s1239 + $0x108] sm:$0xff]
        %v1274 = vld [vmem:[%s1239 + $0x110] sm:$0xff]
        %v1275 = vld [vmem:[%s1239 + $0x118] sm:$0xff]
        %v1276 = vld [vmem:[%s1239 + $0x120] sm:$0xff]
        %v1277 = vld [vmem:[%s1239 + $0x128] sm:$0xff]
        %v1278 = vld [vmem:[%s1239 + $0x130] sm:$0xff]
        %v1279 = vld [vmem:[%s1239 + $0x138] sm:$0xff]
        %v1280 = vld [vmem:[%s1239 + $0x140] sm:$0xff]
        %v1281 = vld [vmem:[%s1239 + $0x148] sm:$0xff]
        %v1282 = vld [vmem:[%s1239 + $0x150] sm:$0xff]
        %v1283 = vld [vmem:[%s1239 + $0x158] sm:$0xff]
        %v1284 = vld [vmem:[%s1239 + $0x160] sm:$0xff]
        %v1285 = vld [vmem:[%s1239 + $0x168] sm:$0xff]
        %v1286 = vld [vmem:[%s1239 + $0x170] sm:$0xff]
        %v1287 = vld [vmem:[%s1239 + $0x178] sm:$0xff]
        %v1288 = vld [vmem:[%s1239 + $0x180] sm:$0xff]
        %v1289 = vld [vmem:[%s1239 + $0x188] sm:$0xff]
        %v1290 = vld [vmem:[%s1239 + $0x190] sm:$0xff]
        %v1291 = vld [vmem:[%s1239 + $0x198] sm:$0xff]
        %v1292 = vld [vmem:[%s1239 + $0x1a0] sm:$0xff]
        %v1293 = vld [vmem:[%s1239 + $0x1a8] sm:$0xff]
        %v1294 = vld [vmem:[%s1239 + $0x1b0] sm:$0xff]
        %v1295 = vld [vmem:[%s1239 + $0x1b8] sm:$0xff]
        %v1296 = vld [vmem:[%s1239 + $0x1c0] sm:$0xff]
        %v1297 = vld [vmem:[%s1239 + $0x1c8] sm:$0xff]
        %v1298 = vld [vmem:[%s1239 + $0x1d0] sm:$0xff]
        %v1299 = vld [vmem:[%s1239 + $0x1d8] sm:$0xff]
        %v1300 = vld [vmem:[%s1239 + $0x1e0] sm:$0xff]
        %v1301 = vld [vmem:[%s1239 + $0x1e8] sm:$0xff]
        %v1302 = vld [vmem:[%s1239 + $0x1f0] sm:$0xff]
        %v1303 = vld [vmem:[%s1239 + $0x1f8] sm:$0xff]
        %v1304 = vmax.f32 %v1175, %v1240
        %v1305 = vmax.f32 %v1176, %v1241
        %v1306 = vmax.f32 %v1177, %v1242
        %v1307 = vmax.f32 %v1178, %v1243
        %v1308 = vmax.f32 %v1179, %v1244
        %v1309 = vmax.f32 %v1180, %v1245
        %v1310 = vmax.f32 %v1181, %v1246
        %v1311 = vmax.f32 %v1182, %v1247
        %v1312 = vmax.f32 %v1183, %v1248
        %v1313 = vmax.f32 %v1184, %v1249
        %v1314 = vmax.f32 %v1185, %v1250
        %v1315 = vmax.f32 %v1186, %v1251
        %v1316 = vmax.f32 %v1187, %v1252
        %v1317 = vmax.f32 %v1188, %v1253
        %v1318 = vmax.f32 %v1189, %v1254
        %v1319 = vmax.f32 %v1190, %v1255
        %v1320 = vmax.f32 %v1191, %v1256
        %v1321 = vmax.f32 %v1192, %v1257
        %v1322 = vmax.f32 %v1193, %v1258
        %v1323 = vmax.f32 %v1194, %v1259
        %v1324 = vmax.f32 %v1195, %v1260
        %v1325 = vmax.f32 %v1196, %v1261
        %v1326 = vmax.f32 %v1197, %v1262
        %v1327 = vmax.f32 %v1198, %v1263
        %v1328 = vmax.f32 %v1199, %v1264
        %v1329 = vmax.f32 %v1200, %v1265
        %v1330 = vmax.f32 %v1201, %v1266
        %v1331 = vmax.f32 %v1202, %v1267
        %v1332 = vmax.f32 %v1203, %v1268
        %v1333 = vmax.f32 %v1204, %v1269
        %v1334 = vmax.f32 %v1205, %v1270
        %v1335 = vmax.f32 %v1206, %v1271
        %v1336 = vmax.f32 %v1207, %v1272
        %v1337 = vmax.f32 %v1208, %v1273
        %v1338 = vmax.f32 %v1209, %v1274
        %v1339 = vmax.f32 %v1210, %v1275
        %v1340 = vmax.f32 %v1211, %v1276
        %v1341 = vmax.f32 %v1212, %v1277
        %v1342 = vmax.f32 %v1213, %v1278
        %v1343 = vmax.f32 %v1214, %v1279
        %v1344 = vmax.f32 %v1215, %v1280
        %v1345 = vmax.f32 %v1216, %v1281
        %v1346 = vmax.f32 %v1217, %v1282
        %v1347 = vmax.f32 %v1218, %v1283
        %v1348 = vmax.f32 %v1219, %v1284
        %v1349 = vmax.f32 %v1220, %v1285
        %v1350 = vmax.f32 %v1221, %v1286
        %v1351 = vmax.f32 %v1222, %v1287
        %v1352 = vmax.f32 %v1223, %v1288
        %v1353 = vmax.f32 %v1224, %v1289
        %v1354 = vmax.f32 %v1225, %v1290
        %v1355 = vmax.f32 %v1226, %v1291
        %v1356 = vmax.f32 %v1227, %v1292
        %v1357 = vmax.f32 %v1228, %v1293
        %v1358 = vmax.f32 %v1229, %v1294
        %v1359 = vmax.f32 %v1230, %v1295
        %v1360 = vmax.f32 %v1231, %v1296
        %v1361 = vmax.f32 %v1232, %v1297
        %v1362 = vmax.f32 %v1233, %v1298
        %v1363 = vmax.f32 %v1234, %v1299
        %v1364 = vmax.f32 %v1235, %v1300
        %v1365 = vmax.f32 %v1236, %v1301
        %v1366 = vmax.f32 %v1237, %v1302
        %v1367 = vmax.f32 %v1238, %v1303
        %s1368 = scalar_lea.vmem %s1151, 1024 [#allocation2]
        %v1369 = vld [vmem:[%s1368] sm:$0xff]
        %v1370 = vld [vmem:[%s1368 + $0x8] sm:$0xff]
        %v1371 = vld [vmem:[%s1368 + $0x10] sm:$0xff]
        %v1372 = vld [vmem:[%s1368 + $0x18] sm:$0xff]
        %v1373 = vld [vmem:[%s1368 + $0x20] sm:$0xff]
        %v1374 = vld [vmem:[%s1368 + $0x28] sm:$0xff]
        %v1375 = vld [vmem:[%s1368 + $0x30] sm:$0xff]
        %v1376 = vld [vmem:[%s1368 + $0x38] sm:$0xff]
        %v1377 = vld [vmem:[%s1368 + $0x40] sm:$0xff]
        %v1378 = vld [vmem:[%s1368 + $0x48] sm:$0xff]
        %v1379 = vld [vmem:[%s1368 + $0x50] sm:$0xff]
        %v1380 = vld [vmem:[%s1368 + $0x58] sm:$0xff]
        %v1381 = vld [vmem:[%s1368 + $0x60] sm:$0xff]
        %v1382 = vld [vmem:[%s1368 + $0x68] sm:$0xff]
        %v1383 = vld [vmem:[%s1368 + $0x70] sm:$0xff]
        %v1384 = vld [vmem:[%s1368 + $0x78] sm:$0xff]
        %v1385 = vld [vmem:[%s1368 + $0x80] sm:$0xff]
        %v1386 = vld [vmem:[%s1368 + $0x88] sm:$0xff]
        %v1387 = vld [vmem:[%s1368 + $0x90] sm:$0xff]
        %v1388 = vld [vmem:[%s1368 + $0x98] sm:$0xff]
        %v1389 = vld [vmem:[%s1368 + $0xa0] sm:$0xff]
        %v1390 = vld [vmem:[%s1368 + $0xa8] sm:$0xff]
        %v1391 = vld [vmem:[%s1368 + $0xb0] sm:$0xff]
        %v1392 = vld [vmem:[%s1368 + $0xb8] sm:$0xff]
        %v1393 = vld [vmem:[%s1368 + $0xc0] sm:$0xff]
        %v1394 = vld [vmem:[%s1368 + $0xc8] sm:$0xff]
        %v1395 = vld [vmem:[%s1368 + $0xd0] sm:$0xff]
        %v1396 = vld [vmem:[%s1368 + $0xd8] sm:$0xff]
        %v1397 = vld [vmem:[%s1368 + $0xe0] sm:$0xff]
        %v1398 = vld [vmem:[%s1368 + $0xe8] sm:$0xff]
        %v1399 = vld [vmem:[%s1368 + $0xf0] sm:$0xff]
        %v1400 = vld [vmem:[%s1368 + $0xf8] sm:$0xff]
        %v1401 = vld [vmem:[%s1368 + $0x100] sm:$0xff]
        %v1402 = vld [vmem:[%s1368 + $0x108] sm:$0xff]
        %v1403 = vld [vmem:[%s1368 + $0x110] sm:$0xff]
        %v1404 = vld [vmem:[%s1368 + $0x118] sm:$0xff]
        %v1405 = vld [vmem:[%s1368 + $0x120] sm:$0xff]
        %v1406 = vld [vmem:[%s1368 + $0x128] sm:$0xff]
        %v1407 = vld [vmem:[%s1368 + $0x130] sm:$0xff]
        %v1408 = vld [vmem:[%s1368 + $0x138] sm:$0xff]
        %v1409 = vld [vmem:[%s1368 + $0x140] sm:$0xff]
        %v1410 = vld [vmem:[%s1368 + $0x148] sm:$0xff]
        %v1411 = vld [vmem:[%s1368 + $0x150] sm:$0xff]
        %v1412 = vld [vmem:[%s1368 + $0x158] sm:$0xff]
        %v1413 = vld [vmem:[%s1368 + $0x160] sm:$0xff]
        %v1414 = vld [vmem:[%s1368 + $0x168] sm:$0xff]
        %v1415 = vld [vmem:[%s1368 + $0x170] sm:$0xff]
        %v1416 = vld [vmem:[%s1368 + $0x178] sm:$0xff]
        %v1417 = vld [vmem:[%s1368 + $0x180] sm:$0xff]
        %v1418 = vld [vmem:[%s1368 + $0x188] sm:$0xff]
        %v1419 = vld [vmem:[%s1368 + $0x190] sm:$0xff]
        %v1420 = vld [vmem:[%s1368 + $0x198] sm:$0xff]
        %v1421 = vld [vmem:[%s1368 + $0x1a0] sm:$0xff]
        %v1422 = vld [vmem:[%s1368 + $0x1a8] sm:$0xff]
        %v1423 = vld [vmem:[%s1368 + $0x1b0] sm:$0xff]
        %v1424 = vld [vmem:[%s1368 + $0x1b8] sm:$0xff]
        %v1425 = vld [vmem:[%s1368 + $0x1c0] sm:$0xff]
        %v1426 = vld [vmem:[%s1368 + $0x1c8] sm:$0xff]
        %v1427 = vld [vmem:[%s1368 + $0x1d0] sm:$0xff]
        %v1428 = vld [vmem:[%s1368 + $0x1d8] sm:$0xff]
        %v1429 = vld [vmem:[%s1368 + $0x1e0] sm:$0xff]
        %v1430 = vld [vmem:[%s1368 + $0x1e8] sm:$0xff]
        %v1431 = vld [vmem:[%s1368 + $0x1f0] sm:$0xff]
        %v1432 = vld [vmem:[%s1368 + $0x1f8] sm:$0xff]
        %v1433 = vmax.f32 %v1304, %v1369
        %v1434 = vmax.f32 %v1305, %v1370
        %v1435 = vmax.f32 %v1306, %v1371
        %v1436 = vmax.f32 %v1307, %v1372
        %v1437 = vmax.f32 %v1308, %v1373
        %v1438 = vmax.f32 %v1309, %v1374
        %v1439 = vmax.f32 %v1310, %v1375
        %v1440 = vmax.f32 %v1311, %v1376
        %v1441 = vmax.f32 %v1312, %v1377
        %v1442 = vmax.f32 %v1313, %v1378
        %v1443 = vmax.f32 %v1314, %v1379
        %v1444 = vmax.f32 %v1315, %v1380
        %v1445 = vmax.f32 %v1316, %v1381
        %v1446 = vmax.f32 %v1317, %v1382
        %v1447 = vmax.f32 %v1318, %v1383
        %v1448 = vmax.f32 %v1319, %v1384
        %v1449 = vmax.f32 %v1320, %v1385
        %v1450 = vmax.f32 %v1321, %v1386
        %v1451 = vmax.f32 %v1322, %v1387
        %v1452 = vmax.f32 %v1323, %v1388
        %v1453 = vmax.f32 %v1324, %v1389
        %v1454 = vmax.f32 %v1325, %v1390
        %v1455 = vmax.f32 %v1326, %v1391
        %v1456 = vmax.f32 %v1327, %v1392
        %v1457 = vmax.f32 %v1328, %v1393
        %v1458 = vmax.f32 %v1329, %v1394
        %v1459 = vmax.f32 %v1330, %v1395
        %v1460 = vmax.f32 %v1331, %v1396
        %v1461 = vmax.f32 %v1332, %v1397
        %v1462 = vmax.f32 %v1333, %v1398
        %v1463 = vmax.f32 %v1334, %v1399
        %v1464 = vmax.f32 %v1335, %v1400
        %v1465 = vmax.f32 %v1336, %v1401
        %v1466 = vmax.f32 %v1337, %v1402
        %v1467 = vmax.f32 %v1338, %v1403
        %v1468 = vmax.f32 %v1339, %v1404
        %v1469 = vmax.f32 %v1340, %v1405
        %v1470 = vmax.f32 %v1341, %v1406
        %v1471 = vmax.f32 %v1342, %v1407
        %v1472 = vmax.f32 %v1343, %v1408
        %v1473 = vmax.f32 %v1344, %v1409
        %v1474 = vmax.f32 %v1345, %v1410
        %v1475 = vmax.f32 %v1346, %v1411
        %v1476 = vmax.f32 %v1347, %v1412
        %v1477 = vmax.f32 %v1348, %v1413
        %v1478 = vmax.f32 %v1349, %v1414
        %v1479 = vmax.f32 %v1350, %v1415
        %v1480 = vmax.f32 %v1351, %v1416
        %v1481 = vmax.f32 %v1352, %v1417
        %v1482 = vmax.f32 %v1353, %v1418
        %v1483 = vmax.f32 %v1354, %v1419
        %v1484 = vmax.f32 %v1355, %v1420
        %v1485 = vmax.f32 %v1356, %v1421
        %v1486 = vmax.f32 %v1357, %v1422
        %v1487 = vmax.f32 %v1358, %v1423
        %v1488 = vmax.f32 %v1359, %v1424
        %v1489 = vmax.f32 %v1360, %v1425
        %v1490 = vmax.f32 %v1361, %v1426
        %v1491 = vmax.f32 %v1362, %v1427
        %v1492 = vmax.f32 %v1363, %v1428
        %v1493 = vmax.f32 %v1364, %v1429
        %v1494 = vmax.f32 %v1365, %v1430
        %v1495 = vmax.f32 %v1366, %v1431
        %v1496 = vmax.f32 %v1367, %v1432
        %s1497 = scalar_lea.vmem %s1151, 1536 [#allocation2]
        %v1498 = vld [vmem:[%s1497] sm:$0xff]
        %v1499 = vld [vmem:[%s1497 + $0x8] sm:$0xff]
        %v1500 = vld [vmem:[%s1497 + $0x10] sm:$0xff]
        %v1501 = vld [vmem:[%s1497 + $0x18] sm:$0xff]
        %v1502 = vld [vmem:[%s1497 + $0x20] sm:$0xff]
        %v1503 = vld [vmem:[%s1497 + $0x28] sm:$0xff]
        %v1504 = vld [vmem:[%s1497 + $0x30] sm:$0xff]
        %v1505 = vld [vmem:[%s1497 + $0x38] sm:$0xff]
        %v1506 = vld [vmem:[%s1497 + $0x40] sm:$0xff]
        %v1507 = vld [vmem:[%s1497 + $0x48] sm:$0xff]
        %v1508 = vld [vmem:[%s1497 + $0x50] sm:$0xff]
        %v1509 = vld [vmem:[%s1497 + $0x58] sm:$0xff]
        %v1510 = vld [vmem:[%s1497 + $0x60] sm:$0xff]
        %v1511 = vld [vmem:[%s1497 + $0x68] sm:$0xff]
        %v1512 = vld [vmem:[%s1497 + $0x70] sm:$0xff]
        %v1513 = vld [vmem:[%s1497 + $0x78] sm:$0xff]
        %v1514 = vld [vmem:[%s1497 + $0x80] sm:$0xff]
        %v1515 = vld [vmem:[%s1497 + $0x88] sm:$0xff]
        %v1516 = vld [vmem:[%s1497 + $0x90] sm:$0xff]
        %v1517 = vld [vmem:[%s1497 + $0x98] sm:$0xff]
        %v1518 = vld [vmem:[%s1497 + $0xa0] sm:$0xff]
        %v1519 = vld [vmem:[%s1497 + $0xa8] sm:$0xff]
        %v1520 = vld [vmem:[%s1497 + $0xb0] sm:$0xff]
        %v1521 = vld [vmem:[%s1497 + $0xb8] sm:$0xff]
        %v1522 = vld [vmem:[%s1497 + $0xc0] sm:$0xff]
        %v1523 = vld [vmem:[%s1497 + $0xc8] sm:$0xff]
        %v1524 = vld [vmem:[%s1497 + $0xd0] sm:$0xff]
        %v1525 = vld [vmem:[%s1497 + $0xd8] sm:$0xff]
        %v1526 = vld [vmem:[%s1497 + $0xe0] sm:$0xff]
        %v1527 = vld [vmem:[%s1497 + $0xe8] sm:$0xff]
        %v1528 = vld [vmem:[%s1497 + $0xf0] sm:$0xff]
        %v1529 = vld [vmem:[%s1497 + $0xf8] sm:$0xff]
        %v1530 = vld [vmem:[%s1497 + $0x100] sm:$0xff]
        %v1531 = vld [vmem:[%s1497 + $0x108] sm:$0xff]
        %v1532 = vld [vmem:[%s1497 + $0x110] sm:$0xff]
        %v1533 = vld [vmem:[%s1497 + $0x118] sm:$0xff]
        %v1534 = vld [vmem:[%s1497 + $0x120] sm:$0xff]
        %v1535 = vld [vmem:[%s1497 + $0x128] sm:$0xff]
        %v1536 = vld [vmem:[%s1497 + $0x130] sm:$0xff]
        %v1537 = vld [vmem:[%s1497 + $0x138] sm:$0xff]
        %v1538 = vld [vmem:[%s1497 + $0x140] sm:$0xff]
        %v1539 = vld [vmem:[%s1497 + $0x148] sm:$0xff]
        %v1540 = vld [vmem:[%s1497 + $0x150] sm:$0xff]
        %v1541 = vld [vmem:[%s1497 + $0x158] sm:$0xff]
        %v1542 = vld [vmem:[%s1497 + $0x160] sm:$0xff]
        %v1543 = vld [vmem:[%s1497 + $0x168] sm:$0xff]
        %v1544 = vld [vmem:[%s1497 + $0x170] sm:$0xff]
        %v1545 = vld [vmem:[%s1497 + $0x178] sm:$0xff]
        %v1546 = vld [vmem:[%s1497 + $0x180] sm:$0xff]
        %v1547 = vld [vmem:[%s1497 + $0x188] sm:$0xff]
        %v1548 = vld [vmem:[%s1497 + $0x190] sm:$0xff]
        %v1549 = vld [vmem:[%s1497 + $0x198] sm:$0xff]
        %v1550 = vld [vmem:[%s1497 + $0x1a0] sm:$0xff]
        %v1551 = vld [vmem:[%s1497 + $0x1a8] sm:$0xff]
        %v1552 = vld [vmem:[%s1497 + $0x1b0] sm:$0xff]
        %v1553 = vld [vmem:[%s1497 + $0x1b8] sm:$0xff]
        %v1554 = vld [vmem:[%s1497 + $0x1c0] sm:$0xff]
        %v1555 = vld [vmem:[%s1497 + $0x1c8] sm:$0xff]
        %v1556 = vld [vmem:[%s1497 + $0x1d0] sm:$0xff]
        %v1557 = vld [vmem:[%s1497 + $0x1d8] sm:$0xff]
        %v1558 = vld [vmem:[%s1497 + $0x1e0] sm:$0xff]
        %v1559 = vld [vmem:[%s1497 + $0x1e8] sm:$0xff]
        %v1560 = vld [vmem:[%s1497 + $0x1f0] sm:$0xff]
        %v1561 = vld [vmem:[%s1497 + $0x1f8] sm:$0xff]
        %v1562 = vmax.f32 %v1433, %v1498
        %v1563 = vmax.f32 %v1434, %v1499
        %v1564 = vmax.f32 %v1435, %v1500
        %v1565 = vmax.f32 %v1436, %v1501
        %v1566 = vmax.f32 %v1437, %v1502
        %v1567 = vmax.f32 %v1438, %v1503
        %v1568 = vmax.f32 %v1439, %v1504
        %v1569 = vmax.f32 %v1440, %v1505
        %v1570 = vmax.f32 %v1441, %v1506
        %v1571 = vmax.f32 %v1442, %v1507
        %v1572 = vmax.f32 %v1443, %v1508
        %v1573 = vmax.f32 %v1444, %v1509
        %v1574 = vmax.f32 %v1445, %v1510
        %v1575 = vmax.f32 %v1446, %v1511
        %v1576 = vmax.f32 %v1447, %v1512
        %v1577 = vmax.f32 %v1448, %v1513
        %v1578 = vmax.f32 %v1449, %v1514
        %v1579 = vmax.f32 %v1450, %v1515
        %v1580 = vmax.f32 %v1451, %v1516
        %v1581 = vmax.f32 %v1452, %v1517
        %v1582 = vmax.f32 %v1453, %v1518
        %v1583 = vmax.f32 %v1454, %v1519
        %v1584 = vmax.f32 %v1455, %v1520
        %v1585 = vmax.f32 %v1456, %v1521
        %v1586 = vmax.f32 %v1457, %v1522
        %v1587 = vmax.f32 %v1458, %v1523
        %v1588 = vmax.f32 %v1459, %v1524
        %v1589 = vmax.f32 %v1460, %v1525
        %v1590 = vmax.f32 %v1461, %v1526
        %v1591 = vmax.f32 %v1462, %v1527
        %v1592 = vmax.f32 %v1463, %v1528
        %v1593 = vmax.f32 %v1464, %v1529
        %v1594 = vmax.f32 %v1465, %v1530
        %v1595 = vmax.f32 %v1466, %v1531
        %v1596 = vmax.f32 %v1467, %v1532
        %v1597 = vmax.f32 %v1468, %v1533
        %v1598 = vmax.f32 %v1469, %v1534
        %v1599 = vmax.f32 %v1470, %v1535
        %v1600 = vmax.f32 %v1471, %v1536
        %v1601 = vmax.f32 %v1472, %v1537
        %v1602 = vmax.f32 %v1473, %v1538
        %v1603 = vmax.f32 %v1474, %v1539
        %v1604 = vmax.f32 %v1475, %v1540
        %v1605 = vmax.f32 %v1476, %v1541
        %v1606 = vmax.f32 %v1477, %v1542
        %v1607 = vmax.f32 %v1478, %v1543
        %v1608 = vmax.f32 %v1479, %v1544
        %v1609 = vmax.f32 %v1480, %v1545
        %v1610 = vmax.f32 %v1481, %v1546
        %v1611 = vmax.f32 %v1482, %v1547
        %v1612 = vmax.f32 %v1483, %v1548
        %v1613 = vmax.f32 %v1484, %v1549
        %v1614 = vmax.f32 %v1485, %v1550
        %v1615 = vmax.f32 %v1486, %v1551
        %v1616 = vmax.f32 %v1487, %v1552
        %v1617 = vmax.f32 %v1488, %v1553
        %v1618 = vmax.f32 %v1489, %v1554
        %v1619 = vmax.f32 %v1490, %v1555
        %v1620 = vmax.f32 %v1491, %v1556
        %v1621 = vmax.f32 %v1492, %v1557
        %v1622 = vmax.f32 %v1493, %v1558
        %v1623 = vmax.f32 %v1494, %v1559
        %v1624 = vmax.f32 %v1495, %v1560
        %v1625 = vmax.f32 %v1496, %v1561
        %vm1626 = vcmask 130048
        %1627 = vst.msk [vmem:[%s1173] sm:$0xff] %vm1626, %v1562
        %1628 = vst.msk [vmem:[%s1173 + $0x8] sm:$0xff] %vm1626, %v1563
        %1629 = vst.msk [vmem:[%s1173 + $0x10] sm:$0xff] %vm1626, %v1564
        %1630 = vst.msk [vmem:[%s1173 + $0x18] sm:$0xff] %vm1626, %v1565
        %1631 = vst.msk [vmem:[%s1173 + $0x20] sm:$0xff] %vm1626, %v1566
        %1632 = vst.msk [vmem:[%s1173 + $0x28] sm:$0xff] %vm1626, %v1567
        %1633 = vst.msk [vmem:[%s1173 + $0x30] sm:$0xff] %vm1626, %v1568
        %1634 = vst.msk [vmem:[%s1173 + $0x38] sm:$0xff] %vm1626, %v1569
        %1635 = vst.msk [vmem:[%s1173 + $0x40] sm:$0xff] %vm1626, %v1570
        %1636 = vst.msk [vmem:[%s1173 + $0x48] sm:$0xff] %vm1626, %v1571
        %1637 = vst.msk [vmem:[%s1173 + $0x50] sm:$0xff] %vm1626, %v1572
        %1638 = vst.msk [vmem:[%s1173 + $0x58] sm:$0xff] %vm1626, %v1573
        %1639 = vst.msk [vmem:[%s1173 + $0x60] sm:$0xff] %vm1626, %v1574
        %1640 = vst.msk [vmem:[%s1173 + $0x68] sm:$0xff] %vm1626, %v1575
        %1641 = vst.msk [vmem:[%s1173 + $0x70] sm:$0xff] %vm1626, %v1576
        %1642 = vst.msk [vmem:[%s1173 + $0x78] sm:$0xff] %vm1626, %v1577
        %1643 = vst.msk [vmem:[%s1173 + $0x80] sm:$0xff] %vm1626, %v1578
        %1644 = vst.msk [vmem:[%s1173 + $0x88] sm:$0xff] %vm1626, %v1579
        %1645 = vst.msk [vmem:[%s1173 + $0x90] sm:$0xff] %vm1626, %v1580
        %1646 = vst.msk [vmem:[%s1173 + $0x98] sm:$0xff] %vm1626, %v1581
        %1647 = vst.msk [vmem:[%s1173 + $0xa0] sm:$0xff] %vm1626, %v1582
        %1648 = vst.msk [vmem:[%s1173 + $0xa8] sm:$0xff] %vm1626, %v1583
        %1649 = vst.msk [vmem:[%s1173 + $0xb0] sm:$0xff] %vm1626, %v1584
        %1650 = vst.msk [vmem:[%s1173 + $0xb8] sm:$0xff] %vm1626, %v1585
        %1651 = vst.msk [vmem:[%s1173 + $0xc0] sm:$0xff] %vm1626, %v1586
        %1652 = vst.msk [vmem:[%s1173 + $0xc8] sm:$0xff] %vm1626, %v1587
        %1653 = vst.msk [vmem:[%s1173 + $0xd0] sm:$0xff] %vm1626, %v1588
        %1654 = vst.msk [vmem:[%s1173 + $0xd8] sm:$0xff] %vm1626, %v1589
        %1655 = vst.msk [vmem:[%s1173 + $0xe0] sm:$0xff] %vm1626, %v1590
        %1656 = vst.msk [vmem:[%s1173 + $0xe8] sm:$0xff] %vm1626, %v1591
        %1657 = vst.msk [vmem:[%s1173 + $0xf0] sm:$0xff] %vm1626, %v1592
        %1658 = vst.msk [vmem:[%s1173 + $0xf8] sm:$0xff] %vm1626, %v1593
        %1659 = vst.msk [vmem:[%s1173 + $0x100] sm:$0xff] %vm1626, %v1594
        %1660 = vst.msk [vmem:[%s1173 + $0x108] sm:$0xff] %vm1626, %v1595
        %1661 = vst.msk [vmem:[%s1173 + $0x110] sm:$0xff] %vm1626, %v1596
        %1662 = vst.msk [vmem:[%s1173 + $0x118] sm:$0xff] %vm1626, %v1597
        %1663 = vst.msk [vmem:[%s1173 + $0x120] sm:$0xff] %vm1626, %v1598
        %1664 = vst.msk [vmem:[%s1173 + $0x128] sm:$0xff] %vm1626, %v1599
        %1665 = vst.msk [vmem:[%s1173 + $0x130] sm:$0xff] %vm1626, %v1600
        %1666 = vst.msk [vmem:[%s1173 + $0x138] sm:$0xff] %vm1626, %v1601
        %1667 = vst.msk [vmem:[%s1173 + $0x140] sm:$0xff] %vm1626, %v1602
        %1668 = vst.msk [vmem:[%s1173 + $0x148] sm:$0xff] %vm1626, %v1603
        %1669 = vst.msk [vmem:[%s1173 + $0x150] sm:$0xff] %vm1626, %v1604
        %1670 = vst.msk [vmem:[%s1173 + $0x158] sm:$0xff] %vm1626, %v1605
        %1671 = vst.msk [vmem:[%s1173 + $0x160] sm:$0xff] %vm1626, %v1606
        %1672 = vst.msk [vmem:[%s1173 + $0x168] sm:$0xff] %vm1626, %v1607
        %1673 = vst.msk [vmem:[%s1173 + $0x170] sm:$0xff] %vm1626, %v1608
        %1674 = vst.msk [vmem:[%s1173 + $0x178] sm:$0xff] %vm1626, %v1609
        %1675 = vst.msk [vmem:[%s1173 + $0x180] sm:$0xff] %vm1626, %v1610
        %1676 = vst.msk [vmem:[%s1173 + $0x188] sm:$0xff] %vm1626, %v1611
        %1677 = vst.msk [vmem:[%s1173 + $0x190] sm:$0xff] %vm1626, %v1612
        %1678 = vst.msk [vmem:[%s1173 + $0x198] sm:$0xff] %vm1626, %v1613
        %1679 = vst.msk [vmem:[%s1173 + $0x1a0] sm:$0xff] %vm1626, %v1614
        %1680 = vst.msk [vmem:[%s1173 + $0x1a8] sm:$0xff] %vm1626, %v1615
        %1681 = vst.msk [vmem:[%s1173 + $0x1b0] sm:$0xff] %vm1626, %v1616
        %1682 = vst.msk [vmem:[%s1173 + $0x1b8] sm:$0xff] %vm1626, %v1617
        %1683 = vst.msk [vmem:[%s1173 + $0x1c0] sm:$0xff] %vm1626, %v1618
        %1684 = vst.msk [vmem:[%s1173 + $0x1c8] sm:$0xff] %vm1626, %v1619
        %1685 = vst.msk [vmem:[%s1173 + $0x1d0] sm:$0xff] %vm1626, %v1620
        %1686 = vst.msk [vmem:[%s1173 + $0x1d8] sm:$0xff] %vm1626, %v1621
        %1687 = vst.msk [vmem:[%s1173 + $0x1e0] sm:$0xff] %vm1626, %v1622
        %1688 = vst.msk [vmem:[%s1173 + $0x1e8] sm:$0xff] %vm1626, %v1623
        %1689 = vst.msk [vmem:[%s1173 + $0x1f0] sm:$0xff] %vm1626, %v1624
        %1690 = vst.msk [vmem:[%s1173 + $0x1f8] sm:$0xff] %vm1626, %v1625
        %s1691 = smul.u32 64, %s12
        %p1692 = scmp.lt.s32.totalorder %s1691, 127
        %s1693 = scalar_select %p1692, %s1691, 127
        %s1694 = smul.addr %s1693, 8
        %s1695 = scalar_lea.vmem %s1, %s1694
        // Predicated region
        $region63: #{encoder_forward.6} parent=57 // pred_check
          %p1696 = pneg %p56
        $region64: #{encoder_forward.6} parent=57 // pred_check_branch
          %1698 = sbr.rel (%p1696) target = $region66
        $region65: #{encoder_forward.6} parent=57 // pred_region
          %s1699 = smul.u32 64, %s12
        $region66: #{encoder_forward.6} parent=57 // pred_fallthru
          _
      $region58: #{encoder_forward.6} parent=5 // pred_fallthru
        _
      %p1700 = scmp.le.s32.totalorder 2, %s7
      // Predicated region
      $region67: #{encoder_forward.6} parent=5 // pred_check
        %p1701 = pneg %p1700
      $region68: #{encoder_forward.6} parent=5 // pred_check_branch
        %1703 = sbr.rel (%p1701) target = $region70
      $region69: #{encoder_forward.6} parent=5 // pred_region
        %s1704 = ssub.s32 %s7, 2
        // Predicated region
        $region71: #{encoder_forward.6} parent=69 // pred_check
          %p1705 = pneg %p62
        $region72: #{encoder_forward.6} parent=69 // pred_check_branch
          %1707 = sbr.rel (%p1705) target = $region74
        $region73: #{encoder_forward.6} parent=69 // pred_region
          %s1708 = smul.u32 64, %s13
          %p1709 = scmp.lt.s32.totalorder %s1708, 127
          %s1710 = scalar_select %p1709, %s1708, 127
          %s1711 = smul.addr %s1710, 8
          %s1712 = scalar_lea.vmem %s1, %s1711
        $region74: #{encoder_forward.6} parent=69 // pred_fallthru
          _
      $region70: #{encoder_forward.6} parent=5 // pred_fallthru
        _
    $region6: #{encoder_forward.6} parent=1 // loop_footer
      %s11 = sadd.s32 1, %s7
    $region7: #{encoder_forward.6} parent=1 // loop_footer_branch
      %6 = sbr.rel target = $region3
    $region8: #{encoder_forward.6} parent=1 // loop_exit
      _

// kernel: encoder_forward.8
$region0: #{encoder_forward.8}
  #allocation0 [shape = 'u32[]', space=smem, size = 0x4, offset = 0x4, fixed_abs, tag = 'smem constant byte address 0x4 - core index']
  #allocation1 [shape = 'u32[144,128]{1,0:T(1,128)}', space=vmem, size = 0x12000, scoped, tag = 'internal scratch']
  %s0 = inlined_call_operand.vmem [shape: f32[8,16,32], index: 0, kind: input, shape index: {}]
  %s1 = inlined_call_operand.vmem [shape: f32[16,32], index: 1, kind: output, shape index: {}]
  %s2 = sld [smem:[#allocation0]]
  $region14: #{encoder_forward.8} parent=0
    _
  %s4 = ssub.s32 1, %s2
  %s5 = scalar_select 0, %s4, %s2
  // Predicated region
  $region2: #{encoder_forward.8} parent=0 // pred_check
    _
  $region3: #{encoder_forward.8} parent=0 // pred_check_branch
    %7 = sbr.rel (0) target = $region5
  $region4: #{encoder_forward.8} parent=0 // pred_region
    _
  $region5: #{encoder_forward.8} parent=0 // pred_fallthru
    _
  %v8 = vld [vmem:[%s0] sm:$0xff]
  %v9 = vld [vmem:[%s0 + $0x8] sm:$0xff]
  %s10 = scalar_lea.vmem %s0, 16
  %v11 = vld [vmem:[%s10] sm:$0xff]
  %v12 = vld [vmem:[%s10 + $0x8] sm:$0xff]
  %v13 = vmax.f32 %v8, %v11
  %v14 = vmax.f32 %v9, %v12
  %s15 = scalar_lea.vmem %s0, 32
  %v16 = vld [vmem:[%s15] sm:$0xff]
  %v17 = vld [vmem:[%s15 + $0x8] sm:$0xff]
  %v18 = vmax.f32 %v13, %v16
  %v19 = vmax.f32 %v14, %v17
  %s20 = scalar_lea.vmem %s0, 48
  %v21 = vld [vmem:[%s20] sm:$0xff]
  %v22 = vld [vmem:[%s20 + $0x8] sm:$0xff]
  %v23 = vmax.f32 %v18, %v21
  %v24 = vmax.f32 %v19, %v22
  %s25 = scalar_lea.vmem %s0, 64
  %v26 = vld [vmem:[%s25] sm:$0xff]
  %v27 = vld [vmem:[%s25 + $0x8] sm:$0xff]
  %v28 = vmax.f32 %v23, %v26
  %v29 = vmax.f32 %v24, %v27
  %s30 = scalar_lea.vmem %s0, 80
  %v31 = vld [vmem:[%s30] sm:$0xff]
  %v32 = vld [vmem:[%s30 + $0x8] sm:$0xff]
  %v33 = vmax.f32 %v28, %v31
  %v34 = vmax.f32 %v29, %v32
  %s35 = scalar_lea.vmem %s0, 96
  %v36 = vld [vmem:[%s35] sm:$0xff]
  %v37 = vld [vmem:[%s35 + $0x8] sm:$0xff]
  %v38 = vmax.f32 %v33, %v36
  %v39 = vmax.f32 %v34, %v37
  %s40 = scalar_lea.vmem %s0, 112
  %v41 = vld [vmem:[%s40] sm:$0xff]
  %v42 = vld [vmem:[%s40 + $0x8] sm:$0xff]
  %v43 = vmax.f32 %v38, %v41
  %v44 = vmax.f32 %v39, %v42
  %vm45 = vcmask 261120
  %46 = vst.msk [vmem:[%s1] sm:$0xff] %vm45, %v43
  %47 = vst.msk [vmem:[%s1 + $0x8] sm:$0xff] %vm45, %v44
  // Predicated region
  $region6: #{encoder_forward.8} parent=0 // pred_check
    _
  $region7: #{encoder_forward.8} parent=0 // pred_check_branch
    %49 = sbr.rel (0) target = $region9
  $region8: #{encoder_forward.8} parent=0 // pred_region
    _
  $region9: #{encoder_forward.8} parent=0 // pred_fallthru
    _
  // Predicated region
  $region10: #{encoder_forward.8} parent=0 // pred_check
    _
  $region11: #{encoder_forward.8} parent=0 // pred_check_branch
    %51 = sbr.rel (0) target = $region13
  $region12: #{encoder_forward.8} parent=0 // pred_region
    _
  $region13: #{encoder_forward.8} parent=0 // pred_fallthru
    _

// kernel: encoder_forward.7
$region0: #{encoder_forward.7}
  #allocation0 [shape = 'u32[]', space=smem, size = 0x4, offset = 0x4, fixed_abs, tag = 'smem constant byte address 0x4 - core index']
  #allocation1 [shape = 'u32[144,128]{1,0:T(1,128)}', space=vmem, size = 0x12000, scoped, tag = 'internal scratch']
  %s0 = inlined_call_operand.vmem [shape: bf16[128,1024], index: 0, kind: input, shape index: {}]
  %s1 = inlined_call_operand.vmem [shape: bf16[1024,128], index: 1, kind: input, shape index: {}]
  %s2 = inlined_call_operand.vmem [shape: f32[1,128], index: 2, kind: input, shape index: {}]
  %s3 = inlined_call_operand.vmem [shape: f32[128,128], index: 3, kind: output, shape index: {}]
  %s4 = sld [smem:[#allocation0]]
  $region26: #{encoder_forward.7} parent=0
    _
  %s6 = ssub.s32 1, %s4
  %s7 = scalar_select 0, %s6, %s4
  // Predicated region
  $region2: #{encoder_forward.7} parent=0 // pred_check
    _
  $region3: #{encoder_forward.7} parent=0 // pred_check_branch
    %9 = sbr.rel (0) target = $region5
  $region4: #{encoder_forward.7} parent=0 // pred_region
    _
  $region5: #{encoder_forward.7} parent=0 // pred_fallthru
    _
  // Predicated region
  $region6: #{encoder_forward.7} parent=0 // pred_check
    _
  $region7: #{encoder_forward.7} parent=0 // pred_check_branch
    %11 = sbr.rel (0) target = $region9
  $region8: #{encoder_forward.7} parent=0 // pred_region
    _
  $region9: #{encoder_forward.7} parent=0 // pred_fallthru
    _
  // Predicated region
  $region10: #{encoder_forward.7} parent=0 // pred_check
    _
  $region11: #{encoder_forward.7} parent=0 // pred_check_branch
    %13 = sbr.rel (0) target = $region13
  $region12: #{encoder_forward.7} parent=0 // pred_region
    _
  $region13: #{encoder_forward.7} parent=0 // pred_fallthru
    _
  %p15 = scmp.eq.s32.totalorder 0, 0
  // Predicated region
  $region14: #{encoder_forward.7} parent=0 // pred_check
    %p16 = pneg %p15
  $region15: #{encoder_forward.7} parent=0 // pred_check_branch
    %18 = sbr.rel (%p16) target = $region17
  $region16: #{encoder_forward.7} parent=0 // pred_region
    %v19 = vld [vmem:[%s2] sm:$0x1]
    %v21 = vlaneseq
    %v22 = vshrl.u32 %v21, 7
    %v23 = vsub.s32 0, %v22
    %v24 = vrot.slane %v19, %v23
    %v26 = vadd.f32 %v24, 0.0
    %27 = vst [vmem:[%s3] sm:$0xff] %v26
    %28 = vst [vmem:[%s3 + $0x8] sm:$0xff] %v26
    %29 = vst [vmem:[%s3 + $0x10] sm:$0xff] %v26
    %30 = vst [vmem:[%s3 + $0x18] sm:$0xff] %v26
    %31 = vst [vmem:[%s3 + $0x20] sm:$0xff] %v26
    %32 = vst [vmem:[%s3 + $0x28] sm:$0xff] %v26
    %33 = vst [vmem:[%s3 + $0x30] sm:$0xff] %v26
    %34 = vst [vmem:[%s3 + $0x38] sm:$0xff] %v26
    %35 = vst [vmem:[%s3 + $0x40] sm:$0xff] %v26
    %36 = vst [vmem:[%s3 + $0x48] sm:$0xff] %v26
    %37 = vst [vmem:[%s3 + $0x50] sm:$0xff] %v26
    %38 = vst [vmem:[%s3 + $0x58] sm:$0xff] %v26
    %39 = vst [vmem:[%s3 + $0x60] sm:$0xff] %v26
    %40 = vst [vmem:[%s3 + $0x68] sm:$0xff] %v26
    %41 = vst [vmem:[%s3 + $0x70] sm:$0xff] %v26
    %42 = vst [vmem:[%s3 + $0x78] sm:$0xff] %v26
  $region17: #{encoder_forward.7} parent=0 // pred_fallthru
    _
  %v43 = vld [vmem:[%s3] sm:$0xff]
  %v44 = vld [vmem:[%s3 + $0x8] sm:$0xff]
  %v45 = vld [vmem:[%s3 + $0x10] sm:$0xff]
  %v46 = vld [vmem:[%s3 + $0x18] sm:$0xff]
  %v47 = vld [vmem:[%s3 + $0x20] sm:$0xff]
  %v48 = vld [vmem:[%s3 + $0x28] sm:$0xff]
  %v49 = vld [vmem:[%s3 + $0x30] sm:$0xff]
  %v50 = vld [vmem:[%s3 + $0x38] sm:$0xff]
  %v51 = vld [vmem:[%s3 + $0x40] sm:$0xff]
  %v52 = vld [vmem:[%s3 + $0x48] sm:$0xff]
  %v53 = vld [vmem:[%s3 + $0x50] sm:$0xff]
  %v54 = vld [vmem:[%s3 + $0x58] sm:$0xff]
  %v55 = vld [vmem:[%s3 + $0x60] sm:$0xff]
  %v56 = vld [vmem:[%s3 + $0x68] sm:$0xff]
  %v57 = vld [vmem:[%s3 + $0x70] sm:$0xff]
  %v58 = vld [vmem:[%s3 + $0x78] sm:$0xff]
  %v59 = vld [vmem:[%s0] sm:$0xff]
  %v60 = vld [vmem:[%s0 + $0x8] sm:$0xff]
  %v61 = vld [vmem:[%s0 + $0x10] sm:$0xff]
  %v62 = vld [vmem:[%s0 + $0x18] sm:$0xff]
  %v63 = vld [vmem:[%s0 + $0x20] sm:$0xff]
  %v64 = vld [vmem:[%s0 + $0x28] sm:$0xff]
  %v65 = vld [vmem:[%s0 + $0x30] sm:$0xff]
  %v66 = vld [vmem:[%s0 + $0x38] sm:$0xff]
  %v67 = vld [vmem:[%s0 + $0x40] sm:$0xff]
  %v68 = vld [vmem:[%s0 + $0x48] sm:$0xff]
  %v69 = vld [vmem:[%s0 + $0x50] sm:$0xff]
  %v70 = vld [vmem:[%s0 + $0x58] sm:$0xff]
  %v71 = vld [vmem:[%s0 + $0x60] sm:$0xff]
  %v72 = vld [vmem:[%s0 + $0x68] sm:$0xff]
  %v73 = vld [vmem:[%s0 + $0x70] sm:$0xff]
  %v74 = vld [vmem:[%s0 + $0x78] sm:$0xff]
  %v75 = vld [vmem:[%s0 + $0x80] sm:$0xff]
  %v76 = vld [vmem:[%s0 + $0x88] sm:$0xff]
  %v77 = vld [vmem:[%s0 + $0x90] sm:$0xff]
  %v78 = vld [vmem:[%s0 + $0x98] sm:$0xff]
  %v79 = vld [vmem:[%s0 + $0xa0] sm:$0xff]
  %v80 = vld [vmem:[%s0 + $0xa8] sm:$0xff]
  %v81 = vld [vmem:[%s0 + $0xb0] sm:$0xff]
  %v82 = vld [vmem:[%s0 + $0xb8] sm:$0xff]
  %v83 = vld [vmem:[%s0 + $0xc0] sm:$0xff]
  %v84 = vld [vmem:[%s0 + $0xc8] sm:$0xff]
  %v85 = vld [vmem:[%s0 + $0xd0] sm:$0xff]
  %v86 = vld [vmem:[%s0 + $0xd8] sm:$0xff]
  %v87 = vld [vmem:[%s0 + $0xe0] sm:$0xff]
  %v88 = vld [vmem:[%s0 + $0xe8] sm:$0xff]
  %v89 = vld [vmem:[%s0 + $0xf0] sm:$0xff]
  %v90 = vld [vmem:[%s0 + $0xf8] sm:$0xff]
  %v91 = vld [vmem:[%s0 + $0x100] sm:$0xff]
  %v92 = vld [vmem:[%s0 + $0x108] sm:$0xff]
  %v93 = vld [vmem:[%s0 + $0x110] sm:$0xff]
  %v94 = vld [vmem:[%s0 + $0x118] sm:$0xff]
  %v95 = vld [vmem:[%s0 + $0x120] sm:$0xff]
  %v96 = vld [vmem:[%s0 + $0x128] sm:$0xff]
  %v97 = vld [vmem:[%s0 + $0x130] sm:$0xff]
  %v98 = vld [vmem:[%s0 + $0x138] sm:$0xff]
  %v99 = vld [vmem:[%s0 + $0x140] sm:$0xff]
  %v100 = vld [vmem:[%s0 + $0x148] sm:$0xff]
  %v101 = vld [vmem:[%s0 + $0x150] sm:$0xff]
  %v102 = vld [vmem:[%s0 + $0x158] sm:$0xff]
  %v103 = vld [vmem:[%s0 + $0x160] sm:$0xff]
  %v104 = vld [vmem:[%s0 + $0x168] sm:$0xff]
  %v105 = vld [vmem:[%s0 + $0x170] sm:$0xff]
  %v106 = vld [vmem:[%s0 + $0x178] sm:$0xff]
  %v107 = vld [vmem:[%s0 + $0x180] sm:$0xff]
  %v108 = vld [vmem:[%s0 + $0x188] sm:$0xff]
  %v109 = vld [vmem:[%s0 + $0x190] sm:$0xff]
  %v110 = vld [vmem:[%s0 + $0x198] sm:$0xff]
  %v111 = vld [vmem:[%s0 + $0x1a0] sm:$0xff]
  %v112 = vld [vmem:[%s0 + $0x1a8] sm:$0xff]
  %v113 = vld [vmem:[%s0 + $0x1b0] sm:$0xff]
  %v114 = vld [vmem:[%s0 + $0x1b8] sm:$0xff]
  %v115 = vld [vmem:[%s0 + $0x1c0] sm:$0xff]
  %v116 = vld [vmem:[%s0 + $0x1c8] sm:$0xff]
  %v117 = vld [vmem:[%s0 + $0x1d0] sm:$0xff]
  %v118 = vld [vmem:[%s0 + $0x1d8] sm:$0xff]
  %v119 = vld [vmem:[%s0 + $0x1e0] sm:$0xff]
  %v120 = vld [vmem:[%s0 + $0x1e8] sm:$0xff]
  %v121 = vld [vmem:[%s0 + $0x1f0] sm:$0xff]
  %v122 = vld [vmem:[%s0 + $0x1f8] sm:$0xff]
  %v123 = vld [vmem:[%s1] sm:$0xf]
  %v124 = vld [vmem:[%s1 + $0x4] sm:$0xf]
  %v125 = vld [vmem:[%s1 + $0x8] sm:$0xf]
  %v126 = vld [vmem:[%s1 + $0xc] sm:$0xf]
  %v127 = vld [vmem:[%s1 + $0x10] sm:$0xf]
  %v128 = vld [vmem:[%s1 + $0x14] sm:$0xf]
  %v129 = vld [vmem:[%s1 + $0x18] sm:$0xf]
  %v130 = vld [vmem:[%s1 + $0x1c] sm:$0xf]
  %v131 = vld [vmem:[%s1 + $0x20] sm:$0xf]
  %v132 = vld [vmem:[%s1 + $0x24] sm:$0xf]
  %v133 = vld [vmem:[%s1 + $0x28] sm:$0xf]
  %v134 = vld [vmem:[%s1 + $0x2c] sm:$0xf]
  %v135 = vld [vmem:[%s1 + $0x30] sm:$0xf]
  %v136 = vld [vmem:[%s1 + $0x34] sm:$0xf]
  %v137 = vld [vmem:[%s1 + $0x38] sm:$0xf]
  %v138 = vld [vmem:[%s1 + $0x3c] sm:$0xf]
  %v139 = vld [vmem:[%s1 + $0x40] sm:$0xf]
  %v140 = vld [vmem:[%s1 + $0x44] sm:$0xf]
  %v141 = vld [vmem:[%s1 + $0x48] sm:$0xf]
  %v142 = vld [vmem:[%s1 + $0x4c] sm:$0xf]
  %v143 = vld [vmem:[%s1 + $0x50] sm:$0xf]
  %v144 = vld [vmem:[%s1 + $0x54] sm:$0xf]
  %v145 = vld [vmem:[%s1 + $0x58] sm:$0xf]
  %v146 = vld [vmem:[%s1 + $0x5c] sm:$0xf]
  %v147 = vld [vmem:[%s1 + $0x60] sm:$0xf]
  %v148 = vld [vmem:[%s1 + $0x64] sm:$0xf]
  %v149 = vld [vmem:[%s1 + $0x68] sm:$0xf]
  %v150 = vld [vmem:[%s1 + $0x6c] sm:$0xf]
  %v151 = vld [vmem:[%s1 + $0x70] sm:$0xf]
  %v152 = vld [vmem:[%s1 + $0x74] sm:$0xf]
  %v153 = vld [vmem:[%s1 + $0x78] sm:$0xf]
  %v154 = vld [vmem:[%s1 + $0x7c] sm:$0xf]
  %v155 = vld [vmem:[%s1 + $0x80] sm:$0xf]
  %v156 = vld [vmem:[%s1 + $0x84] sm:$0xf]
  %v157 = vld [vmem:[%s1 + $0x88] sm:$0xf]
  %v158 = vld [vmem:[%s1 + $0x8c] sm:$0xf]
  %v159 = vld [vmem:[%s1 + $0x90] sm:$0xf]
  %v160 = vld [vmem:[%s1 + $0x94] sm:$0xf]
  %v161 = vld [vmem:[%s1 + $0x98] sm:$0xf]
  %v162 = vld [vmem:[%s1 + $0x9c] sm:$0xf]
  %v163 = vld [vmem:[%s1 + $0xa0] sm:$0xf]
  %v164 = vld [vmem:[%s1 + $0xa4] sm:$0xf]
  %v165 = vld [vmem:[%s1 + $0xa8] sm:$0xf]
  %v166 = vld [vmem:[%s1 + $0xac] sm:$0xf]
  %v167 = vld [vmem:[%s1 + $0xb0] sm:$0xf]
  %v168 = vld [vmem:[%s1 + $0xb4] sm:$0xf]
  %v169 = vld [vmem:[%s1 + $0xb8] sm:$0xf]
  %v170 = vld [vmem:[%s1 + $0xbc] sm:$0xf]
  %v171 = vld [vmem:[%s1 + $0xc0] sm:$0xf]
  %v172 = vld [vmem:[%s1 + $0xc4] sm:$0xf]
  %v173 = vld [vmem:[%s1 + $0xc8] sm:$0xf]
  %v174 = vld [vmem:[%s1 + $0xcc] sm:$0xf]
  %v175 = vld [vmem:[%s1 + $0xd0] sm:$0xf]
  %v176 = vld [vmem:[%s1 + $0xd4] sm:$0xf]
  %v177 = vld [vmem:[%s1 + $0xd8] sm:$0xf]
  %v178 = vld [vmem:[%s1 + $0xdc] sm:$0xf]
  %v179 = vld [vmem:[%s1 + $0xe0] sm:$0xf]
  %v180 = vld [vmem:[%s1 + $0xe4] sm:$0xf]
  %v181 = vld [vmem:[%s1 + $0xe8] sm:$0xf]
  %v182 = vld [vmem:[%s1 + $0xec] sm:$0xf]
  %v183 = vld [vmem:[%s1 + $0xf0] sm:$0xf]
  %v184 = vld [vmem:[%s1 + $0xf4] sm:$0xf]
  %v185 = vld [vmem:[%s1 + $0xf8] sm:$0xf]
  %v186 = vld [vmem:[%s1 + $0xfc] sm:$0xf]
  %v187 = vld [vmem:[%s1 + $0x100] sm:$0xf]
  %v188 = vld [vmem:[%s1 + $0x104] sm:$0xf]
  %v189 = vld [vmem:[%s1 + $0x108] sm:$0xf]
  %v190 = vld [vmem:[%s1 + $0x10c] sm:$0xf]
  %v191 = vld [vmem:[%s1 + $0x110] sm:$0xf]
  %v192 = vld [vmem:[%s1 + $0x114] sm:$0xf]
  %v193 = vld [vmem:[%s1 + $0x118] sm:$0xf]
  %v194 = vld [vmem:[%s1 + $0x11c] sm:$0xf]
  %v195 = vld [vmem:[%s1 + $0x120] sm:$0xf]
  %v196 = vld [vmem:[%s1 + $0x124] sm:$0xf]
  %v197 = vld [vmem:[%s1 + $0x128] sm:$0xf]
  %v198 = vld [vmem:[%s1 + $0x12c] sm:$0xf]
  %v199 = vld [vmem:[%s1 + $0x130] sm:$0xf]
  %v200 = vld [vmem:[%s1 + $0x134] sm:$0xf]
  %v201 = vld [vmem:[%s1 + $0x138] sm:$0xf]
  %v202 = vld [vmem:[%s1 + $0x13c] sm:$0xf]
  %v203 = vld [vmem:[%s1 + $0x140] sm:$0xf]
  %v204 = vld [vmem:[%s1 + $0x144] sm:$0xf]
  %v205 = vld [vmem:[%s1 + $0x148] sm:$0xf]
  %v206 = vld [vmem:[%s1 + $0x14c] sm:$0xf]
  %v207 = vld [vmem:[%s1 + $0x150] sm:$0xf]
  %v208 = vld [vmem:[%s1 + $0x154] sm:$0xf]
  %v209 = vld [vmem:[%s1 + $0x158] sm:$0xf]
  %v210 = vld [vmem:[%s1 + $0x15c] sm:$0xf]
  %v211 = vld [vmem:[%s1 + $0x160] sm:$0xf]
  %v212 = vld [vmem:[%s1 + $0x164] sm:$0xf]
  %v213 = vld [vmem:[%s1 + $0x168] sm:$0xf]
  %v214 = vld [vmem:[%s1 + $0x16c] sm:$0xf]
  %v215 = vld [vmem:[%s1 + $0x170] sm:$0xf]
  %v216 = vld [vmem:[%s1 + $0x174] sm:$0xf]
  %v217 = vld [vmem:[%s1 + $0x178] sm:$0xf]
  %v218 = vld [vmem:[%s1 + $0x17c] sm:$0xf]
  %v219 = vld [vmem:[%s1 + $0x180] sm:$0xf]
  %v220 = vld [vmem:[%s1 + $0x184] sm:$0xf]
  %v221 = vld [vmem:[%s1 + $0x188] sm:$0xf]
  %v222 = vld [vmem:[%s1 + $0x18c] sm:$0xf]
  %v223 = vld [vmem:[%s1 + $0x190] sm:$0xf]
  %v224 = vld [vmem:[%s1 + $0x194] sm:$0xf]
  %v225 = vld [vmem:[%s1 + $0x198] sm:$0xf]
  %v226 = vld [vmem:[%s1 + $0x19c] sm:$0xf]
  %v227 = vld [vmem:[%s1 + $0x1a0] sm:$0xf]
  %v228 = vld [vmem:[%s1 + $0x1a4] sm:$0xf]
  %v229 = vld [vmem:[%s1 + $0x1a8] sm:$0xf]
  %v230 = vld [vmem:[%s1 + $0x1ac] sm:$0xf]
  %v231 = vld [vmem:[%s1 + $0x1b0] sm:$0xf]
  %v232 = vld [vmem:[%s1 + $0x1b4] sm:$0xf]
  %v233 = vld [vmem:[%s1 + $0x1b8] sm:$0xf]
  %v234 = vld [vmem:[%s1 + $0x1bc] sm:$0xf]
  %v235 = vld [vmem:[%s1 + $0x1c0] sm:$0xf]
  %v236 = vld [vmem:[%s1 + $0x1c4] sm:$0xf]
  %v237 = vld [vmem:[%s1 + $0x1c8] sm:$0xf]
  %v238 = vld [vmem:[%s1 + $0x1cc] sm:$0xf]
  %v239 = vld [vmem:[%s1 + $0x1d0] sm:$0xf]
  %v240 = vld [vmem:[%s1 + $0x1d4] sm:$0xf]
  %v241 = vld [vmem:[%s1 + $0x1d8] sm:$0xf]
  %v242 = vld [vmem:[%s1 + $0x1dc] sm:$0xf]
  %v243 = vld [vmem:[%s1 + $0x1e0] sm:$0xf]
  %v244 = vld [vmem:[%s1 + $0x1e4] sm:$0xf]
  %v245 = vld [vmem:[%s1 + $0x1e8] sm:$0xf]
  %v246 = vld [vmem:[%s1 + $0x1ec] sm:$0xf]
  %v247 = vld [vmem:[%s1 + $0x1f0] sm:$0xf]
  %v248 = vld [vmem:[%s1 + $0x1f4] sm:$0xf]
  %v249 = vld [vmem:[%s1 + $0x1f8] sm:$0xf]
  %v250 = vld [vmem:[%s1 + $0x1fc] sm:$0xf]
  %v315 = vunpack.c.l.b16 %v59
  %v316 = vunpack.c.h.b16 %v59
  %v317 = vunpack.c.l.b16 %v60
  %v318 = vunpack.c.h.b16 %v60
  %v319 = vunpack.c.l.b16 %v61
  %v320 = vunpack.c.h.b16 %v61
  %v321 = vunpack.c.l.b16 %v62
  %v322 = vunpack.c.h.b16 %v62
  %v323 = vunpack.c.l.b16 %v63
  %v324 = vunpack.c.h.b16 %v63
  %v325 = vunpack.c.l.b16 %v64
  %v326 = vunpack.c.h.b16 %v64
  %v327 = vunpack.c.l.b16 %v65
  %v328 = vunpack.c.h.b16 %v65
  %v329 = vunpack.c.l.b16 %v66
  %v330 = vunpack.c.h.b16 %v66
  %v331 = vunpack.c.l.b16 %v67
  %v332 = vunpack.c.h.b16 %v67
  %v333 = vunpack.c.l.b16 %v68
  %v334 = vunpack.c.h.b16 %v68
  %v335 = vunpack.c.l.b16 %v69
  %v336 = vunpack.c.h.b16 %v69
  %v337 = vunpack.c.l.b16 %v70
  %v338 = vunpack.c.h.b16 %v70
  %v339 = vunpack.c.l.b16 %v71
  %v340 = vunpack.c.h.b16 %v71
  %v341 = vunpack.c.l.b16 %v72
  %v342 = vunpack.c.h.b16 %v72
  %v343 = vunpack.c.l.b16 %v73
  %v344 = vunpack.c.h.b16 %v73
  %v345 = vunpack.c.l.b16 %v74
  %v346 = vunpack.c.h.b16 %v74
  %v347 = vunpack.c.l.b16 %v75
  %v348 = vunpack.c.h.b16 %v75
  %v349 = vunpack.c.l.b16 %v76
  %v350 = vunpack.c.h.b16 %v76
  %v351 = vunpack.c.l.b16 %v77
  %v352 = vunpack.c.h.b16 %v77
  %v353 = vunpack.c.l.b16 %v78
  %v354 = vunpack.c.h.b16 %v78
  %v355 = vunpack.c.l.b16 %v79
  %v356 = vunpack.c.h.b16 %v79
  %v357 = vunpack.c.l.b16 %v80
  %v358 = vunpack.c.h.b16 %v80
  %v359 = vunpack.c.l.b16 %v81
  %v360 = vunpack.c.h.b16 %v81
  %v361 = vunpack.c.l.b16 %v82
  %v362 = vunpack.c.h.b16 %v82
  %v363 = vunpack.c.l.b16 %v83
  %v364 = vunpack.c.h.b16 %v83
  %v365 = vunpack.c.l.b16 %v84
  %v366 = vunpack.c.h.b16 %v84
  %v367 = vunpack.c.l.b16 %v85
  %v368 = vunpack.c.h.b16 %v85
  %v369 = vunpack.c.l.b16 %v86
  %v370 = vunpack.c.h.b16 %v86
  %v371 = vunpack.c.l.b16 %v87
  %v372 = vunpack.c.h.b16 %v87
  %v373 = vunpack.c.l.b16 %v88
  %v374 = vunpack.c.h.b16 %v88
  %v375 = vunpack.c.l.b16 %v89
  %v376 = vunpack.c.h.b16 %v89
  %v377 = vunpack.c.l.b16 %v90
  %v378 = vunpack.c.h.b16 %v90
  %v379 = vunpack.c.l.b16 %v91
  %v380 = vunpack.c.h.b16 %v91
  %v381 = vunpack.c.l.b16 %v92
  %v382 = vunpack.c.h.b16 %v92
  %v383 = vunpack.c.l.b16 %v93
  %v384 = vunpack.c.h.b16 %v93
  %v385 = vunpack.c.l.b16 %v94
  %v386 = vunpack.c.h.b16 %v94
  %v387 = vunpack.c.l.b16 %v95
  %v388 = vunpack.c.h.b16 %v95
  %v389 = vunpack.c.l.b16 %v96
  %v390 = vunpack.c.h.b16 %v96
  %v391 = vunpack.c.l.b16 %v97
  %v392 = vunpack.c.h.b16 %v97
  %v393 = vunpack.c.l.b16 %v98
  %v394 = vunpack.c.h.b16 %v98
  %v395 = vunpack.c.l.b16 %v99
  %v396 = vunpack.c.h.b16 %v99
  %v397 = vunpack.c.l.b16 %v100
  %v398 = vunpack.c.h.b16 %v100
  %v399 = vunpack.c.l.b16 %v101
  %v400 = vunpack.c.h.b16 %v101
  %v401 = vunpack.c.l.b16 %v102
  %v402 = vunpack.c.h.b16 %v102
  %v403 = vunpack.c.l.b16 %v103
  %v404 = vunpack.c.h.b16 %v103
  %v405 = vunpack.c.l.b16 %v104
  %v406 = vunpack.c.h.b16 %v104
  %v407 = vunpack.c.l.b16 %v105
  %v408 = vunpack.c.h.b16 %v105
  %v409 = vunpack.c.l.b16 %v106
  %v410 = vunpack.c.h.b16 %v106
  %v411 = vunpack.c.l.b16 %v107
  %v412 = vunpack.c.h.b16 %v107
  %v413 = vunpack.c.l.b16 %v108
  %v414 = vunpack.c.h.b16 %v108
  %v415 = vunpack.c.l.b16 %v109
  %v416 = vunpack.c.h.b16 %v109
  %v417 = vunpack.c.l.b16 %v110
  %v418 = vunpack.c.h.b16 %v110
  %v419 = vunpack.c.l.b16 %v111
  %v420 = vunpack.c.h.b16 %v111
  %v421 = vunpack.c.l.b16 %v112
  %v422 = vunpack.c.h.b16 %v112
  %v423 = vunpack.c.l.b16 %v113
  %v424 = vunpack.c.h.b16 %v113
  %v425 = vunpack.c.l.b16 %v114
  %v426 = vunpack.c.h.b16 %v114
  %v427 = vunpack.c.l.b16 %v115
  %v428 = vunpack.c.h.b16 %v115
  %v429 = vunpack.c.l.b16 %v116
  %v430 = vunpack.c.h.b16 %v116
  %v431 = vunpack.c.l.b16 %v117
  %v432 = vunpack.c.h.b16 %v117
  %v433 = vunpack.c.l.b16 %v118
  %v434 = vunpack.c.h.b16 %v118
  %v435 = vunpack.c.l.b16 %v119
  %v436 = vunpack.c.h.b16 %v119
  %v437 = vunpack.c.l.b16 %v120
  %v438 = vunpack.c.h.b16 %v120
  %v439 = vunpack.c.l.b16 %v121
  %v440 = vunpack.c.h.b16 %v121
  %v441 = vunpack.c.l.b16 %v122
  %v442 = vunpack.c.h.b16 %v122
  %v443 = vpack.c.b16 %v323, %v315
  %v444 = vpack.c.b16 %v324, %v316
  %v445 = vpack.c.b16 %v325, %v317
  %v446 = vpack.c.b16 %v326, %v318
  %v447 = vpack.c.b16 %v327, %v319
  %v448 = vpack.c.b16 %v328, %v320
  %v449 = vpack.c.b16 %v329, %v321
  %v450 = vpack.c.b16 %v330, %v322
  %v451 = vpack.c.b16 %v339, %v331
  %v452 = vpack.c.b16 %v340, %v332
  %v453 = vpack.c.b16 %v341, %v333
  %v454 = vpack.c.b16 %v342, %v334
  %v455 = vpack.c.b16 %v343, %v335
  %v456 = vpack.c.b16 %v344, %v336
  %v457 = vpack.c.b16 %v345, %v337
  %v458 = vpack.c.b16 %v346, %v338
  %v459 = vpack.c.b16 %v355, %v347
  %v460 = vpack.c.b16 %v356, %v348
  %v461 = vpack.c.b16 %v357, %v349
  %v462 = vpack.c.b16 %v358, %v350
  %v463 = vpack.c.b16 %v359, %v351
  %v464 = vpack.c.b16 %v360, %v352
  %v465 = vpack.c.b16 %v361, %v353
  %v466 = vpack.c.b16 %v362, %v354
  %v467 = vpack.c.b16 %v371, %v363
  %v468 = vpack.c.b16 %v372, %v364
  %v469 = vpack.c.b16 %v373, %v365
  %v470 = vpack.c.b16 %v374, %v366
  %v471 = vpack.c.b16 %v375, %v367
  %v472 = vpack.c.b16 %v376, %v368
  %v473 = vpack.c.b16 %v377, %v369
  %v474 = vpack.c.b16 %v378, %v370
  %v475 = vpack.c.b16 %v387, %v379
  %v476 = vpack.c.b16 %v388, %v380
  %v477 = vpack.c.b16 %v389, %v381
  %v478 = vpack.c.b16 %v390, %v382
  %v479 = vpack.c.b16 %v391, %v383
  %v480 = vpack.c.b16 %v392, %v384
  %v481 = vpack.c.b16 %v393, %v385
  %v482 = vpack.c.b16 %v394, %v386
  %v483 = vpack.c.b16 %v403, %v395
  %v484 = vpack.c.b16 %v404, %v396
  %v485 = vpack.c.b16 %v405, %v397
  %v486 = vpack.c.b16 %v406, %v398
  %v487 = vpack.c.b16 %v407, %v399
  %v488 = vpack.c.b16 %v408, %v400
  %v489 = vpack.c.b16 %v409, %v401
  %v490 = vpack.c.b16 %v410, %v402
  %v491 = vpack.c.b16 %v419, %v411
  %v492 = vpack.c.b16 %v420, %v412
  %v493 = vpack.c.b16 %v421, %v413
  %v494 = vpack.c.b16 %v422, %v414
  %v495 = vpack.c.b16 %v423, %v415
  %v496 = vpack.c.b16 %v424, %v416
  %v497 = vpack.c.b16 %v425, %v417
  %v498 = vpack.c.b16 %v426, %v418
  %v499 = vpack.c.b16 %v435, %v427
  %v500 = vpack.c.b16 %v436, %v428
  %v501 = vpack.c.b16 %v437, %v429
  %v502 = vpack.c.b16 %v438, %v430
  %v503 = vpack.c.b16 %v439, %v431
  %v504 = vpack.c.b16 %v440, %v432
  %v505 = vpack.c.b16 %v441, %v433
  %v506 = vpack.c.b16 %v442, %v434
  %v699 = vunpack.c.l.b16 %v123
  %v700 = vunpack.c.l.b16 %v124
  %v701 = vunpack.c.l.b16 %v125
  %v702 = vunpack.c.l.b16 %v126
  %v703 = vunpack.c.l.b16 %v127
  %v704 = vunpack.c.l.b16 %v128
  %v705 = vunpack.c.l.b16 %v129
  %v706 = vunpack.c.l.b16 %v130
  %v707 = vunpack.c.l.b16 %v131
  %v708 = vunpack.c.l.b16 %v132
  %v709 = vunpack.c.l.b16 %v133
  %v710 = vunpack.c.l.b16 %v134
  %v711 = vunpack.c.l.b16 %v135
  %v712 = vunpack.c.l.b16 %v136
  %v713 = vunpack.c.l.b16 %v137
  %v714 = vunpack.c.l.b16 %v138
  %v715 = vunpack.c.l.b16 %v139
  %v716 = vunpack.c.l.b16 %v140
  %v717 = vunpack.c.l.b16 %v141
  %v718 = vunpack.c.l.b16 %v142
  %v719 = vunpack.c.l.b16 %v143
  %v720 = vunpack.c.l.b16 %v144
  %v721 = vunpack.c.l.b16 %v145
  %v722 = vunpack.c.l.b16 %v146
  %v723 = vunpack.c.l.b16 %v147
  %v724 = vunpack.c.l.b16 %v148
  %v725 = vunpack.c.l.b16 %v149
  %v726 = vunpack.c.l.b16 %v150
  %v727 = vunpack.c.l.b16 %v151
  %v728 = vunpack.c.l.b16 %v152
  %v729 = vunpack.c.l.b16 %v153
  %v730 = vunpack.c.l.b16 %v154
  %v731 = vunpack.c.l.b16 %v155
  %v732 = vunpack.c.l.b16 %v156
  %v733 = vunpack.c.l.b16 %v157
  %v734 = vunpack.c.l.b16 %v158
  %v735 = vunpack.c.l.b16 %v159
  %v736 = vunpack.c.l.b16 %v160
  %v737 = vunpack.c.l.b16 %v161
  %v738 = vunpack.c.l.b16 %v162
  %v739 = vunpack.c.l.b16 %v163
  %v740 = vunpack.c.l.b16 %v164
  %v741 = vunpack.c.l.b16 %v165
  %v742 = vunpack.c.l.b16 %v166
  %v743 = vunpack.c.l.b16 %v167
  %v744 = vunpack.c.l.b16 %v168
  %v745 = vunpack.c.l.b16 %v169
  %v746 = vunpack.c.l.b16 %v170
  %v747 = vunpack.c.l.b16 %v171
  %v748 = vunpack.c.l.b16 %v172
  %v749 = vunpack.c.l.b16 %v173
  %v750 = vunpack.c.l.b16 %v174
  %v751 = vunpack.c.l.b16 %v175
  %v752 = vunpack.c.l.b16 %v176
  %v753 = vunpack.c.l.b16 %v177
  %v754 = vunpack.c.l.b16 %v178
  %v755 = vunpack.c.l.b16 %v179
  %v756 = vunpack.c.l.b16 %v180
  %v757 = vunpack.c.l.b16 %v181
  %v758 = vunpack.c.l.b16 %v182
  %v759 = vunpack.c.l.b16 %v183
  %v760 = vunpack.c.l.b16 %v184
  %v761 = vunpack.c.l.b16 %v185
  %v762 = vunpack.c.l.b16 %v186
  %v763 = vunpack.c.l.b16 %v187
  %v764 = vunpack.c.l.b16 %v188
  %v765 = vunpack.c.l.b16 %v189
  %v766 = vunpack.c.l.b16 %v190
  %v767 = vunpack.c.l.b16 %v191
  %v768 = vunpack.c.l.b16 %v192
  %v769 = vunpack.c.l.b16 %v193
  %v770 = vunpack.c.l.b16 %v194
  %v771 = vunpack.c.l.b16 %v195
  %v772 = vunpack.c.l.b16 %v196
  %v773 = vunpack.c.l.b16 %v197
  %v774 = vunpack.c.l.b16 %v198
  %v775 = vunpack.c.l.b16 %v199
  %v776 = vunpack.c.l.b16 %v200
  %v777 = vunpack.c.l.b16 %v201
  %v778 = vunpack.c.l.b16 %v202
  %v779 = vunpack.c.l.b16 %v203
  %v780 = vunpack.c.l.b16 %v204
  %v781 = vunpack.c.l.b16 %v205
  %v782 = vunpack.c.l.b16 %v206
  %v783 = vunpack.c.l.b16 %v207
  %v784 = vunpack.c.l.b16 %v208
  %v785 = vunpack.c.l.b16 %v209
  %v786 = vunpack.c.l.b16 %v210
  %v787 = vunpack.c.l.b16 %v211
  %v788 = vunpack.c.l.b16 %v212
  %v789 = vunpack.c.l.b16 %v213
  %v790 = vunpack.c.l.b16 %v214
  %v791 = vunpack.c.l.b16 %v215
  %v792 = vunpack.c.l.b16 %v216
  %v793 = vunpack.c.l.b16 %v217
  %v794 = vunpack.c.l.b16 %v218
  %v795 = vunpack.c.l.b16 %v219
  %v796 = vunpack.c.l.b16 %v220
  %v797 = vunpack.c.l.b16 %v221
  %v798 = vunpack.c.l.b16 %v222
  %v799 = vunpack.c.l.b16 %v223
  %v800 = vunpack.c.l.b16 %v224
  %v801 = vunpack.c.l.b16 %v225
  %v802 = vunpack.c.l.b16 %v226
  %v803 = vunpack.c.l.b16 %v227
  %v804 = vunpack.c.l.b16 %v228
  %v805 = vunpack.c.l.b16 %v229
  %v806 = vunpack.c.l.b16 %v230
  %v807 = vunpack.c.l.b16 %v231
  %v808 = vunpack.c.l.b16 %v232
  %v809 = vunpack.c.l.b16 %v233
  %v810 = vunpack.c.l.b16 %v234
  %v811 = vunpack.c.l.b16 %v235
  %v812 = vunpack.c.l.b16 %v236
  %v813 = vunpack.c.l.b16 %v237
  %v814 = vunpack.c.l.b16 %v238
  %v815 = vunpack.c.l.b16 %v239
  %v816 = vunpack.c.l.b16 %v240
  %v817 = vunpack.c.l.b16 %v241
  %v818 = vunpack.c.l.b16 %v242
  %v819 = vunpack.c.l.b16 %v243
  %v820 = vunpack.c.l.b16 %v244
  %v821 = vunpack.c.l.b16 %v245
  %v822 = vunpack.c.l.b16 %v246
  %v823 = vunpack.c.l.b16 %v247
  %v824 = vunpack.c.l.b16 %v248
  %v825 = vunpack.c.l.b16 %v249
  %v826 = vunpack.c.l.b16 %v250
  %v827 = vpack.c.b16 %v700, %v699
  %v828 = vpack.c.b16 %v702, %v701
  %v829 = vpack.c.b16 %v704, %v703
  %v830 = vpack.c.b16 %v706, %v705
  %v831 = vpack.c.b16 %v708, %v707
  %v832 = vpack.c.b16 %v710, %v709
  %v833 = vpack.c.b16 %v712, %v711
  %v834 = vpack.c.b16 %v714, %v713
  %v835 = vpack.c.b16 %v716, %v715
  %v836 = vpack.c.b16 %v718, %v717
  %v837 = vpack.c.b16 %v720, %v719
  %v838 = vpack.c.b16 %v722, %v721
  %v839 = vpack.c.b16 %v724, %v723
  %v840 = vpack.c.b16 %v726, %v725
  %v841 = vpack.c.b16 %v728, %v727
  %v842 = vpack.c.b16 %v730, %v729
  %v843 = vpack.c.b16 %v732, %v731
  %v844 = vpack.c.b16 %v734, %v733
  %v845 = vpack.c.b16 %v736, %v735
  %v846 = vpack.c.b16 %v738, %v737
  %v847 = vpack.c.b16 %v740, %v739
  %v848 = vpack.c.b16 %v742, %v741
  %v849 = vpack.c.b16 %v744, %v743
  %v850 = vpack.c.b16 %v746, %v745
  %v851 = vpack.c.b16 %v748, %v747
  %v852 = vpack.c.b16 %v750, %v749
  %v853 = vpack.c.b16 %v752, %v751
  %v854 = vpack.c.b16 %v754, %v753
  %v855 = vpack.c.b16 %v756, %v755
  %v856 = vpack.c.b16 %v758, %v757
  %v857 = vpack.c.b16 %v760, %v759
  %v858 = vpack.c.b16 %v762, %v761
  %v859 = vpack.c.b16 %v764, %v763
  %v860 = vpack.c.b16 %v766, %v765
  %v861 = vpack.c.b16 %v768, %v767
  %v862 = vpack.c.b16 %v770, %v769
  %v863 = vpack.c.b16 %v772, %v771
  %v864 = vpack.c.b16 %v774, %v773
  %v865 = vpack.c.b16 %v776, %v775
  %v866 = vpack.c.b16 %v778, %v777
  %v867 = vpack.c.b16 %v780, %v779
  %v868 = vpack.c.b16 %v782, %v781
  %v869 = vpack.c.b16 %v784, %v783
  %v870 = vpack.c.b16 %v786, %v785
  %v871 = vpack.c.b16 %v788, %v787
  %v872 = vpack.c.b16 %v790, %v789
  %v873 = vpack.c.b16 %v792, %v791
  %v874 = vpack.c.b16 %v794, %v793
  %v875 = vpack.c.b16 %v796, %v795
  %v876 = vpack.c.b16 %v798, %v797
  %v877 = vpack.c.b16 %v800, %v799
  %v878 = vpack.c.b16 %v802, %v801
  %v879 = vpack.c.b16 %v804, %v803
  %v880 = vpack.c.b16 %v806, %v805
  %v881 = vpack.c.b16 %v808, %v807
  %v882 = vpack.c.b16 %v810, %v809
  %v883 = vpack.c.b16 %v812, %v811
  %v884 = vpack.c.b16 %v814, %v813
  %v885 = vpack.c.b16 %v816, %v815
  %v886 = vpack.c.b16 %v818, %v817
  %v887 = vpack.c.b16 %v820, %v819
  %v888 = vpack.c.b16 %v822, %v821
  %v889 = vpack.c.b16 %v824, %v823
  %v890 = vpack.c.b16 %v826, %v825
  %955 = vmatprep.subr.bf16.mxu0 0
  %956 = vmatpush1.bf16.msra.mxu0 %v834
  %957 = vmatprep.subr.bf16.mxu0 0
  %958 = vmatpush1.bf16.msra.mxu0 %v833
  %959 = vmatprep.subr.bf16.mxu0 0
  %960 = vmatpush1.bf16.msra.mxu0 %v832
  %961 = vmatprep.subr.bf16.mxu0 0
  %962 = vmatpush1.bf16.msra.mxu0 %v831
  %963 = vmatprep.subr.bf16.mxu0 0
  %964 = vmatpush1.bf16.msra.mxu0 %v830
  %965 = vmatprep.subr.bf16.mxu0 0
  %966 = vmatpush1.bf16.msra.mxu0 %v829
  %967 = vmatprep.subr.bf16.mxu0 0
  %968 = vmatpush1.bf16.msra.mxu0 %v828
  %969 = vmatprep.subr.bf16.mxu0 0
  %970 = vmatpush1.bf16.msra.mxu0 %v827
  %971 = vmatprep.subr.bf16.mxu0 0
  %972 = vmatpush2.bf16.msra.mxu0 %v842
  %973 = vmatprep.subr.bf16.mxu0 0
  %974 = vmatpush2.bf16.msra.mxu0 %v841
  %975 = vmatprep.subr.bf16.mxu0 0
  %976 = vmatpush2.bf16.msra.mxu0 %v840
  %977 = vmatprep.subr.bf16.mxu0 0
  %978 = vmatpush2.bf16.msra.mxu0 %v839
  %979 = vmatprep.subr.bf16.mxu0 0
  %980 = vmatpush2.bf16.msra.mxu0 %v838
  %981 = vmatprep.subr.bf16.mxu0 0
  %982 = vmatpush2.bf16.msra.mxu0 %v837
  %983 = vmatprep.subr.bf16.mxu0 0
  %984 = vmatpush2.bf16.msra.mxu0 %v836
  %985 = vmatprep.subr.bf16.mxu0 0
  %986 = vmatpush2.bf16.msra.mxu0 %v835
  %987 = vmatprep.mubr.bf16.mxu0 %v444
  %988 = vmatmul.mubr.bf16.gmra.mxu0 %v443
  %v989 = vpop.f32.mrf.mxu0
  %v990 = vadd.f32 0.0, %v989
  %v991 = vpop.f32.mrf.mxu0
  %v992 = vpop.f32.mrf.mxu0
  %v993 = vadd.f32 0.0, %v992
  %v994 = vpop.f32.mrf.mxu0
  %995 = vmatprep.mubr.bf16.mxu0 %v452
  %996 = vmatmul.mubr.bf16.gmra.mxu0 %v451
  %v997 = vpop.f32.mrf.mxu0
  %v998 = vadd.f32 0.0, %v997
  %v999 = vpop.f32.mrf.mxu0
  %v1000 = vpop.f32.mrf.mxu0
  %v1001 = vadd.f32 0.0, %v1000
  %v1002 = vpop.f32.mrf.mxu0
  %1003 = vmatprep.mubr.bf16.mxu0 %v460
  %1004 = vmatmul.mubr.bf16.gmra.mxu0 %v459
  %v1005 = vpop.f32.mrf.mxu0
  %v1006 = vadd.f32 0.0, %v1005
  %v1007 = vpop.f32.mrf.mxu0
  %v1008 = vpop.f32.mrf.mxu0
  %v1009 = vadd.f32 0.0, %v1008
  %v1010 = vpop.f32.mrf.mxu0
  %1011 = vmatprep.mubr.bf16.mxu0 %v468
  %1012 = vmatmul.mubr.bf16.gmra.mxu0 %v467
  %v1013 = vpop.f32.mrf.mxu0
  %v1014 = vadd.f32 0.0, %v1013
  %v1015 = vpop.f32.mrf.mxu0
  %v1016 = vpop.f32.mrf.mxu0
  %v1017 = vadd.f32 0.0, %v1016
  %v1018 = vpop.f32.mrf.mxu0
  %1019 = vmatprep.mubr.bf16.mxu0 %v476
  %1020 = vmatmul.mubr.bf16.gmra.mxu0 %v475
  %v1021 = vpop.f32.mrf.mxu0
  %v1022 = vadd.f32 0.0, %v1021
  %v1023 = vpop.f32.mrf.mxu0
  %v1024 = vpop.f32.mrf.mxu0
  %v1025 = vadd.f32 0.0, %v1024
  %v1026 = vpop.f32.mrf.mxu0
  %1027 = vmatprep.mubr.bf16.mxu0 %v484
  %1028 = vmatmul.mubr.bf16.gmra.mxu0 %v483
  %v1029 = vpop.f32.mrf.mxu0
  %v1030 = vadd.f32 0.0, %v1029
  %v1031 = vpop.f32.mrf.mxu0
  %v1032 = vpop.f32.mrf.mxu0
  %v1033 = vadd.f32 0.0, %v1032
  %v1034 = vpop.f32.mrf.mxu0
  %1035 = vmatprep.mubr.bf16.mxu0 %v492
  %1036 = vmatmul.mubr.bf16.gmra.mxu0 %v491
  %v1037 = vpop.f32.mrf.mxu0
  %v1038 = vadd.f32 0.0, %v1037
  %v1039 = vpop.f32.mrf.mxu0
  %v1040 = vpop.f32.mrf.mxu0
  %v1041 = vadd.f32 0.0, %v1040
  %v1042 = vpop.f32.mrf.mxu0
  %1043 = vmatprep.mubr.bf16.mxu0 %v500
  %1044 = vmatmul.mubr.bf16.gmra.mxu0 %v499
  %v1045 = vpop.f32.mrf.mxu0
  %v1046 = vadd.f32 0.0, %v1045
  %v1047 = vpop.f32.mrf.mxu0
  %v1048 = vpop.f32.mrf.mxu0
  %v1049 = vadd.f32 0.0, %v1048
  %v1050 = vpop.f32.mrf.mxu0
  %1051 = vdwg.mxu0
  %1052 = vmatprep.subr.bf16.mxu0 0
  %1053 = vmatpush1.bf16.msra.mxu0 %v850
  %1054 = vmatprep.subr.bf16.mxu0 0
  %1055 = vmatpush1.bf16.msra.mxu0 %v849
  %1056 = vmatprep.subr.bf16.mxu0 0
  %1057 = vmatpush1.bf16.msra.mxu0 %v848
  %1058 = vmatprep.subr.bf16.mxu0 0
  %1059 = vmatpush1.bf16.msra.mxu0 %v847
  %1060 = vmatprep.subr.bf16.mxu0 0
  %1061 = vmatpush1.bf16.msra.mxu0 %v846
  %1062 = vmatprep.subr.bf16.mxu0 0
  %1063 = vmatpush1.bf16.msra.mxu0 %v845
  %1064 = vmatprep.subr.bf16.mxu0 0
  %1065 = vmatpush1.bf16.msra.mxu0 %v844
  %1066 = vmatprep.subr.bf16.mxu0 0
  %1067 = vmatpush1.bf16.msra.mxu0 %v843
  %1068 = vmatprep.subr.bf16.mxu0 0
  %1069 = vmatpush2.bf16.msra.mxu0 %v858
  %1070 = vmatprep.subr.bf16.mxu0 0
  %1071 = vmatpush2.bf16.msra.mxu0 %v857
  %1072 = vmatprep.subr.bf16.mxu0 0
  %1073 = vmatpush2.bf16.msra.mxu0 %v856
  %1074 = vmatprep.subr.bf16.mxu0 0
  %1075 = vmatpush2.bf16.msra.mxu0 %v855
  %1076 = vmatprep.subr.bf16.mxu0 0
  %1077 = vmatpush2.bf16.msra.mxu0 %v854
  %1078 = vmatprep.subr.bf16.mxu0 0
  %1079 = vmatpush2.bf16.msra.mxu0 %v853
  %1080 = vmatprep.subr.bf16.mxu0 0
  %1081 = vmatpush2.bf16.msra.mxu0 %v852
  %1082 = vmatprep.subr.bf16.mxu0 0
  %1083 = vmatpush2.bf16.msra.mxu0 %v851
  %1084 = vmatprep.mubr.bf16.mxu0 %v446
  %1085 = vmatmul.mubr.bf16.gmra.mxu0 %v445
  %v1086 = vpop.f32.mrf.mxu0
  %v1087 = vadd.f32 %v990, %v1086
  %v1088 = vpop.f32.mrf.mxu0
  %v1089 = vpop.f32.mrf.mxu0
  %v1090 = vadd.f32 %v993, %v1089
  %v1091 = vpop.f32.mrf.mxu0
  %1092 = vmatprep.mubr.bf16.mxu0 %v454
  %1093 = vmatmul.mubr.bf16.gmra.mxu0 %v453
  %v1094 = vpop.f32.mrf.mxu0
  %v1095 = vadd.f32 %v998, %v1094
  %v1096 = vpop.f32.mrf.mxu0
  %v1097 = vpop.f32.mrf.mxu0
  %v1098 = vadd.f32 %v1001, %v1097
  %v1099 = vpop.f32.mrf.mxu0
  %1100 = vmatprep.mubr.bf16.mxu0 %v462
  %1101 = vmatmul.mubr.bf16.gmra.mxu0 %v461
  %v1102 = vpop.f32.mrf.mxu0
  %v1103 = vadd.f32 %v1006, %v1102
  %v1104 = vpop.f32.mrf.mxu0
  %v1105 = vpop.f32.mrf.mxu0
  %v1106 = vadd.f32 %v1009, %v1105
  %v1107 = vpop.f32.mrf.mxu0
  %1108 = vmatprep.mubr.bf16.mxu0 %v470
  %1109 = vmatmul.mubr.bf16.gmra.mxu0 %v469
  %v1110 = vpop.f32.mrf.mxu0
  %v1111 = vadd.f32 %v1014, %v1110
  %v1112 = vpop.f32.mrf.mxu0
  %v1113 = vpop.f32.mrf.mxu0
  %v1114 = vadd.f32 %v1017, %v1113
  %v1115 = vpop.f32.mrf.mxu0
  %1116 = vmatprep.mubr.bf16.mxu0 %v478
  %1117 = vmatmul.mubr.bf16.gmra.mxu0 %v477
  %v1118 = vpop.f32.mrf.mxu0
  %v1119 = vadd.f32 %v1022, %v1118
  %v1120 = vpop.f32.mrf.mxu0
  %v1121 = vpop.f32.mrf.mxu0
  %v1122 = vadd.f32 %v1025, %v1121
  %v1123 = vpop.f32.mrf.mxu0
  %1124 = vmatprep.mubr.bf16.mxu0 %v486
  %1125 = vmatmul.mubr.bf16.gmra.mxu0 %v485
  %v1126 = vpop.f32.mrf.mxu0
  %v1127 = vadd.f32 %v1030, %v1126
  %v1128 = vpop.f32.mrf.mxu0
  %v1129 = vpop.f32.mrf.mxu0
  %v1130 = vadd.f32 %v1033, %v1129
  %v1131 = vpop.f32.mrf.mxu0
  %1132 = vmatprep.mubr.bf16.mxu0 %v494
  %1133 = vmatmul.mubr.bf16.gmra.mxu0 %v493
  %v1134 = vpop.f32.mrf.mxu0
  %v1135 = vadd.f32 %v1038, %v1134
  %v1136 = vpop.f32.mrf.mxu0
  %v1137 = vpop.f32.mrf.mxu0
  %v1138 = vadd.f32 %v1041, %v1137
  %v1139 = vpop.f32.mrf.mxu0
  %1140 = vmatprep.mubr.bf16.mxu0 %v502
  %1141 = vmatmul.mubr.bf16.gmra.mxu0 %v501
  %v1142 = vpop.f32.mrf.mxu0
  %v1143 = vadd.f32 %v1046, %v1142
  %v1144 = vpop.f32.mrf.mxu0
  %v1145 = vpop.f32.mrf.mxu0
  %v1146 = vadd.f32 %v1049, %v1145
  %v1147 = vpop.f32.mrf.mxu0
  %1148 = vdwg.mxu0
  %1149 = vmatprep.subr.bf16.mxu0 0
  %1150 = vmatpush1.bf16.msra.mxu0 %v866
  %1151 = vmatprep.subr.bf16.mxu0 0
  %1152 = vmatpush1.bf16.msra.mxu0 %v865
  %1153 = vmatprep.subr.bf16.mxu0 0
  %1154 = vmatpush1.bf16.msra.mxu0 %v864
  %1155 = vmatprep.subr.bf16.mxu0 0
  %1156 = vmatpush1.bf16.msra.mxu0 %v863
  %1157 = vmatprep.subr.bf16.mxu0 0
  %1158 = vmatpush1.bf16.msra.mxu0 %v862
  %1159 = vmatprep.subr.bf16.mxu0 0
  %1160 = vmatpush1.bf16.msra.mxu0 %v861
  %1161 = vmatprep.subr.bf16.mxu0 0
  %1162 = vmatpush1.bf16.msra.mxu0 %v860
  %1163 = vmatprep.subr.bf16.mxu0 0
  %1164 = vmatpush1.bf16.msra.mxu0 %v859
  %1165 = vmatprep.subr.bf16.mxu0 0
  %1166 = vmatpush2.bf16.msra.mxu0 %v874
  %1167 = vmatprep.subr.bf16.mxu0 0
  %1168 = vmatpush2.bf16.msra.mxu0 %v873
  %1169 = vmatprep.subr.bf16.mxu0 0
  %1170 = vmatpush2.bf16.msra.mxu0 %v872
  %1171 = vmatprep.subr.bf16.mxu0 0
  %1172 = vmatpush2.bf16.msra.mxu0 %v871
  %1173 = vmatprep.subr.bf16.mxu0 0
  %1174 = vmatpush2.bf16.msra.mxu0 %v870
  %1175 = vmatprep.subr.bf16.mxu0 0
  %1176 = vmatpush2.bf16.msra.mxu0 %v869
  %1177 = vmatprep.subr.bf16.mxu0 0
  %1178 = vmatpush2.bf16.msra.mxu0 %v868
  %1179 = vmatprep.subr.bf16.mxu0 0
  %1180 = vmatpush2.bf16.msra.mxu0 %v867
  %1181 = vmatprep.mubr.bf16.mxu0 %v448
  %1182 = vmatmul.mubr.bf16.gmra.mxu0 %v447
  %v1183 = vpop.f32.mrf.mxu0
  %v1184 = vadd.f32 %v1087, %v1183
  %v1185 = vpop.f32.mrf.mxu0
  %v1186 = vpop.f32.mrf.mxu0
  %v1187 = vadd.f32 %v1090, %v1186
  %v1188 = vpop.f32.mrf.mxu0
  %1189 = vmatprep.mubr.bf16.mxu0 %v456
  %1190 = vmatmul.mubr.bf16.gmra.mxu0 %v455
  %v1191 = vpop.f32.mrf.mxu0
  %v1192 = vadd.f32 %v1095, %v1191
  %v1193 = vpop.f32.mrf.mxu0
  %v1194 = vpop.f32.mrf.mxu0
  %v1195 = vadd.f32 %v1098, %v1194
  %v1196 = vpop.f32.mrf.mxu0
  %1197 = vmatprep.mubr.bf16.mxu0 %v464
  %1198 = vmatmul.mubr.bf16.gmra.mxu0 %v463
  %v1199 = vpop.f32.mrf.mxu0
  %v1200 = vadd.f32 %v1103, %v1199
  %v1201 = vpop.f32.mrf.mxu0
  %v1202 = vpop.f32.mrf.mxu0
  %v1203 = vadd.f32 %v1106, %v1202
  %v1204 = vpop.f32.mrf.mxu0
  %1205 = vmatprep.mubr.bf16.mxu0 %v472
  %1206 = vmatmul.mubr.bf16.gmra.mxu0 %v471
  %v1207 = vpop.f32.mrf.mxu0
  %v1208 = vadd.f32 %v1111, %v1207
  %v1209 = vpop.f32.mrf.mxu0
  %v1210 = vpop.f32.mrf.mxu0
  %v1211 = vadd.f32 %v1114, %v1210
  %v1212 = vpop.f32.mrf.mxu0
  %1213 = vmatprep.mubr.bf16.mxu0 %v480
  %1214 = vmatmul.mubr.bf16.gmra.mxu0 %v479
  %v1215 = vpop.f32.mrf.mxu0
  %v1216 = vadd.f32 %v1119, %v1215
  %v1217 = vpop.f32.mrf.mxu0
  %v1218 = vpop.f32.mrf.mxu0
  %v1219 = vadd.f32 %v1122, %v1218
  %v1220 = vpop.f32.mrf.mxu0
  %1221 = vmatprep.mubr.bf16.mxu0 %v488
  %1222 = vmatmul.mubr.bf16.gmra.mxu0 %v487
  %v1223 = vpop.f32.mrf.mxu0
  %v1224 = vadd.f32 %v1127, %v1223
  %v1225 = vpop.f32.mrf.mxu0
  %v1226 = vpop.f32.mrf.mxu0
  %v1227 = vadd.f32 %v1130, %v1226
  %v1228 = vpop.f32.mrf.mxu0
  %1229 = vmatprep.mubr.bf16.mxu0 %v496
  %1230 = vmatmul.mubr.bf16.gmra.mxu0 %v495
  %v1231 = vpop.f32.mrf.mxu0
  %v1232 = vadd.f32 %v1135, %v1231
  %v1233 = vpop.f32.mrf.mxu0
  %v1234 = vpop.f32.mrf.mxu0
  %v1235 = vadd.f32 %v1138, %v1234
  %v1236 = vpop.f32.mrf.mxu0
  %1237 = vmatprep.mubr.bf16.mxu0 %v504
  %1238 = vmatmul.mubr.bf16.gmra.mxu0 %v503
  %v1239 = vpop.f32.mrf.mxu0
  %v1240 = vadd.f32 %v1143, %v1239
  %v1241 = vpop.f32.mrf.mxu0
  %v1242 = vpop.f32.mrf.mxu0
  %v1243 = vadd.f32 %v1146, %v1242
  %v1244 = vpop.f32.mrf.mxu0
  %1245 = vdwg.mxu0
  %1246 = vmatprep.subr.bf16.mxu0 0
  %1247 = vmatpush1.bf16.msra.mxu0 %v882
  %1248 = vmatprep.subr.bf16.mxu0 0
  %1249 = vmatpush1.bf16.msra.mxu0 %v881
  %1250 = vmatprep.subr.bf16.mxu0 0
  %1251 = vmatpush1.bf16.msra.mxu0 %v880
  %1252 = vmatprep.subr.bf16.mxu0 0
  %1253 = vmatpush1.bf16.msra.mxu0 %v879
  %1254 = vmatprep.subr.bf16.mxu0 0
  %1255 = vmatpush1.bf16.msra.mxu0 %v878
  %1256 = vmatprep.subr.bf16.mxu0 0
  %1257 = vmatpush1.bf16.msra.mxu0 %v877
  %1258 = vmatprep.subr.bf16.mxu0 0
  %1259 = vmatpush1.bf16.msra.mxu0 %v876
  %1260 = vmatprep.subr.bf16.mxu0 0
  %1261 = vmatpush1.bf16.msra.mxu0 %v875
  %1262 = vmatprep.subr.bf16.mxu0 0
  %1263 = vmatpush2.bf16.msra.mxu0 %v890
  %1264 = vmatprep.subr.bf16.mxu0 0
  %1265 = vmatpush2.bf16.msra.mxu0 %v889
  %1266 = vmatprep.subr.bf16.mxu0 0
  %1267 = vmatpush2.bf16.msra.mxu0 %v888
  %1268 = vmatprep.subr.bf16.mxu0 0
  %1269 = vmatpush2.bf16.msra.mxu0 %v887
  %1270 = vmatprep.subr.bf16.mxu0 0
  %1271 = vmatpush2.bf16.msra.mxu0 %v886
  %1272 = vmatprep.subr.bf16.mxu0 0
  %1273 = vmatpush2.bf16.msra.mxu0 %v885
  %1274 = vmatprep.subr.bf16.mxu0 0
  %1275 = vmatpush2.bf16.msra.mxu0 %v884
  %1276 = vmatprep.subr.bf16.mxu0 0
  %1277 = vmatpush2.bf16.msra.mxu0 %v883
  %1278 = vmatprep.mubr.bf16.mxu0 %v450
  %1279 = vmatmul.mubr.bf16.gmra.mxu0 %v449
  %v1280 = vpop.f32.mrf.mxu0
  %v1281 = vadd.f32 %v1184, %v1280
  %v1282 = vpop.f32.mrf.mxu0
  %v1283 = vpop.f32.mrf.mxu0
  %v1284 = vadd.f32 %v1187, %v1283
  %v1285 = vpop.f32.mrf.mxu0
  %1286 = vmatprep.mubr.bf16.mxu0 %v458
  %1287 = vmatmul.mubr.bf16.gmra.mxu0 %v457
  %v1288 = vpop.f32.mrf.mxu0
  %v1289 = vadd.f32 %v1192, %v1288
  %v1290 = vpop.f32.mrf.mxu0
  %v1291 = vpop.f32.mrf.mxu0
  %v1292 = vadd.f32 %v1195, %v1291
  %v1293 = vpop.f32.mrf.mxu0
  %1294 = vmatprep.mubr.bf16.mxu0 %v466
  %1295 = vmatmul.mubr.bf16.gmra.mxu0 %v465
  %v1296 = vpop.f32.mrf.mxu0
  %v1297 = vadd.f32 %v1200, %v1296
  %v1298 = vpop.f32.mrf.mxu0
  %v1299 = vpop.f32.mrf.mxu0
  %v1300 = vadd.f32 %v1203, %v1299
  %v1301 = vpop.f32.mrf.mxu0
  %1302 = vmatprep.mubr.bf16.mxu0 %v474
  %1303 = vmatmul.mubr.bf16.gmra.mxu0 %v473
  %v1304 = vpop.f32.mrf.mxu0
  %v1305 = vadd.f32 %v1208, %v1304
  %v1306 = vpop.f32.mrf.mxu0
  %v1307 = vpop.f32.mrf.mxu0
  %v1308 = vadd.f32 %v1211, %v1307
  %v1309 = vpop.f32.mrf.mxu0
  %1310 = vmatprep.mubr.bf16.mxu0 %v482
  %1311 = vmatmul.mubr.bf16.gmra.mxu0 %v481
  %v1312 = vpop.f32.mrf.mxu0
  %v1313 = vadd.f32 %v1216, %v1312
  %v1314 = vpop.f32.mrf.mxu0
  %v1315 = vpop.f32.mrf.mxu0
  %v1316 = vadd.f32 %v1219, %v1315
  %v1317 = vpop.f32.mrf.mxu0
  %1318 = vmatprep.mubr.bf16.mxu0 %v490
  %1319 = vmatmul.mubr.bf16.gmra.mxu0 %v489
  %v1320 = vpop.f32.mrf.mxu0
  %v1321 = vadd.f32 %v1224, %v1320
  %v1322 = vpop.f32.mrf.mxu0
  %v1323 = vpop.f32.mrf.mxu0
  %v1324 = vadd.f32 %v1227, %v1323
  %v1325 = vpop.f32.mrf.mxu0
  %1326 = vmatprep.mubr.bf16.mxu0 %v498
  %1327 = vmatmul.mubr.bf16.gmra.mxu0 %v497
  %v1328 = vpop.f32.mrf.mxu0
  %v1329 = vadd.f32 %v1232, %v1328
  %v1330 = vpop.f32.mrf.mxu0
  %v1331 = vpop.f32.mrf.mxu0
  %v1332 = vadd.f32 %v1235, %v1331
  %v1333 = vpop.f32.mrf.mxu0
  %1334 = vmatprep.mubr.bf16.mxu0 %v506
  %1335 = vmatmul.mubr.bf16.gmra.mxu0 %v505
  %v1336 = vpop.f32.mrf.mxu0
  %v1337 = vadd.f32 %v1240, %v1336
  %v1338 = vpop.f32.mrf.mxu0
  %v1339 = vpop.f32.mrf.mxu0
  %v1340 = vadd.f32 %v1243, %v1339
  %v1341 = vpop.f32.mrf.mxu0
  %1342 = vdwg.mxu0
  %v1343 = vadd.f32 %v43, %v1281
  %v1344 = vadd.f32 %v44, %v1284
  %v1345 = vadd.f32 %v45, %v1289
  %v1346 = vadd.f32 %v46, %v1292
  %v1347 = vadd.f32 %v47, %v1297
  %v1348 = vadd.f32 %v48, %v1300
  %v1349 = vadd.f32 %v49, %v1305
  %v1350 = vadd.f32 %v50, %v1308
  %v1351 = vadd.f32 %v51, %v1313
  %v1352 = vadd.f32 %v52, %v1316
  %v1353 = vadd.f32 %v53, %v1321
  %v1354 = vadd.f32 %v54, %v1324
  %v1355 = vadd.f32 %v55, %v1329
  %v1356 = vadd.f32 %v56, %v1332
  %v1357 = vadd.f32 %v57, %v1337
  %v1358 = vadd.f32 %v58, %v1340
  %1359 = vst [vmem:[%s3] sm:$0xff] %v1343
  %1360 = vst [vmem:[%s3 + $0x8] sm:$0xff] %v1344
  %1361 = vst [vmem:[%s3 + $0x10] sm:$0xff] %v1345
  %1362 = vst [vmem:[%s3 + $0x18] sm:$0xff] %v1346
  %1363 = vst [vmem:[%s3 + $0x20] sm:$0xff] %v1347
  %1364 = vst [vmem:[%s3 + $0x28] sm:$0xff] %v1348
  %1365 = vst [vmem:[%s3 + $0x30] sm:$0xff] %v1349
  %1366 = vst [vmem:[%s3 + $0x38] sm:$0xff] %v1350
  %1367 = vst [vmem:[%s3 + $0x40] sm:$0xff] %v1351
  %1368 = vst [vmem:[%s3 + $0x48] sm:$0xff] %v1352
  %1369 = vst [vmem:[%s3 + $0x50] sm:$0xff] %v1353
  %1370 = vst [vmem:[%s3 + $0x58] sm:$0xff] %v1354
  %1371 = vst [vmem:[%s3 + $0x60] sm:$0xff] %v1355
  %1372 = vst [vmem:[%s3 + $0x68] sm:$0xff] %v1356
  %1373 = vst [vmem:[%s3 + $0x70] sm:$0xff] %v1357
  %1374 = vst [vmem:[%s3 + $0x78] sm:$0xff] %v1358
  // Predicated region
  $region18: #{encoder_forward.7} parent=0 // pred_check
    _
  $region19: #{encoder_forward.7} parent=0 // pred_check_branch
    %1376 = sbr.rel (0) target = $region21
  $region20: #{encoder_forward.7} parent=0 // pred_region
    _
  $region21: #{encoder_forward.7} parent=0 // pred_fallthru
    _
  // Predicated region
  $region22: #{encoder_forward.7} parent=0 // pred_check
    _
  $region23: #{encoder_forward.7} parent=0 // pred_check_branch
    %1378 = sbr.rel (0) target = $region25
  $region24: #{encoder_forward.7} parent=0 // pred_region
    _
  $region25: #{encoder_forward.7} parent=0 // pred_fallthru
    _

// kernel: encoder_forward.9
$region0: #{encoder_forward.9}
  #allocation0 [shape = 'u32[]', space=smem, size = 0x4, offset = 0x4, fixed_abs, tag = 'smem constant byte address 0x4 - core index']
  #allocation1 [shape = 'u32[144,128]{1,0:T(1,128)}', space=vmem, size = 0x12000, scoped, tag = 'internal scratch']
  %s0 = inlined_call_operand.vmem [shape: bf16[8,1152], index: 0, kind: input, shape index: {}]
  %s1 = inlined_call_operand.vmem [shape: bf16[1152,128], index: 1, kind: input, shape index: {}]
  %s2 = inlined_call_operand.vmem [shape: f32[1,128], index: 2, kind: input, shape index: {}]
  %s3 = inlined_call_operand.vmem [shape: f32[8,128], index: 3, kind: output, shape index: {}]
  %s4 = sld [smem:[#allocation0]]
  $region49: #{encoder_forward.9} parent=0
    _
  %s6 = ssub.s32 1, %s4
  %s7 = scalar_select 0, %s6, %s4
  loop: start=0, step=1, limit=5
  $region2: #{encoder_forward.9} parent=0 // loop_pre_header
    _
  $region3: #{encoder_forward.9} parent=0 // loop_header
    %s9 = sphi 0, %s13
    %p10 = scmp.ge.s32.totalorder %s9, 5
    %s16 = sphi 0, %s28
    %s17 = sphi 0, %s24
    %s18 = sphi 0, %s16
    %s19 = sphi 0, %s17
    %s20 = sphi 0, %s18
    %s21 = sphi 0, %s19
    %s33 = sphi 0, %s35
    %s36 = sphi 0, %s33
    %s37 = sphi 0, %s36
    %s53 = sphi 0, %s37
    %s59 = sphi 0, %s61
    %s62 = sphi 0, %s59
    %s63 = sphi 0, %s62
    %s79 = sphi 0, %s63
    %s83 = sphi 0, %s83
    %s85 = sphi 0, %s83
    %s86 = sphi 0, %s85
    %s100 = sphi 0, %s86
    %s106 = sphi 0, %s108
    %s109 = sphi 0, %s106
    %s110 = sphi 0, %s109
    %s126 = sphi 0, %s110
  $region4: #{encoder_forward.9} parent=0 // loop_header_branch
    %12 = sbr.rel (%p10) target = $region8
  $region5: #{encoder_forward.9} parent=0 // loop_body
    %s14 = ssub.s32 %s9, 1
    %s15 = ssub.s32 %s9, 2
    %s22 = sadd.s32 1, %s17
    %p23 = scmp.ge.s32.totalorder %s22, 3
    %s24 = scalar_select %p23, 0, %s22
    %s25 = sadd.s32 1, %s16
    %s26 = scalar_select %p23, %s25, %s16
    %p27 = scmp.ge.s32.totalorder %s26, 1
    %s28 = scalar_select %p27, 0, %s26
    %s29 = ssub.s32 %s16, %s28
    %s30 = ssub.s32 %s17, %s24
    %s31 = sor.u32 %s29, %s30
    %p32 = scmp.eq.s32.totalorder %s31, 0
    %s34 = sadd.s32 %s33, 1
    %s35 = scalar_select %p32, %s33, %s34
    %p38 = pneg %p32
    %p39 = scmp.eq.s32.totalorder %s9, 2
    %p40 = por %p38, %p39
    %p41 = scmp.ne.s32.totalorder %s33, %s36
    %p42 = scmp.eq.s32.totalorder %s9, 0
    %p43 = por %p41, %p42
    %p44 = scmp.ne.s32.totalorder %s33, %s36
    %p45 = scmp.eq.s32.totalorder %s14, 2
    %p46 = por %p44, %p45
    %p47 = scmp.ne.s32.totalorder %s36, %s37
    %p48 = scmp.eq.s32.totalorder %s14, 0
    %p49 = por %p47, %p48
    %p50 = scmp.ne.s32.totalorder %s36, %s37
    %p51 = scmp.eq.s32.totalorder %s15, 2
    %p52 = por %p50, %p51
    %p54 = scmp.ne.s32.totalorder %s37, %s53
    %p55 = scmp.eq.s32.totalorder %s15, 0
    %p56 = por %p54, %p55
    %s57 = ssub.s32 %s17, %s24
    %p58 = scmp.eq.s32.totalorder %s57, 0
    %s60 = sadd.s32 %s59, 1
    %s61 = scalar_select %p58, %s59, %s60
    %p64 = pneg %p58
    %p65 = scmp.eq.s32.totalorder %s9, 2
    %p66 = por %p64, %p65
    %p67 = scmp.ne.s32.totalorder %s59, %s62
    %p68 = scmp.eq.s32.totalorder %s9, 0
    %p69 = por %p67, %p68
    %p70 = scmp.ne.s32.totalorder %s59, %s62
    %p71 = scmp.eq.s32.totalorder %s14, 2
    %p72 = por %p70, %p71
    %p73 = scmp.ne.s32.totalorder %s62, %s63
    %p74 = scmp.eq.s32.totalorder %s14, 0
    %p75 = por %p73, %p74
    %p76 = scmp.ne.s32.totalorder %s62, %s63
    %p77 = scmp.eq.s32.totalorder %s15, 2
    %p78 = por %p76, %p77
    %p80 = scmp.ne.s32.totalorder %s63, %s79
    %p81 = scmp.eq.s32.totalorder %s15, 0
    %p82 = por %p80, %p81
    %s84 = sadd.s32 %s83, 1
    %p87 = scmp.eq.s32.totalorder %s9, 2
    %p88 = scmp.ne.s32.totalorder %s83, %s85
    %p89 = scmp.eq.s32.totalorder %s9, 0
    %p90 = por %p88, %p89
    %p91 = scmp.ne.s32.totalorder %s83, %s85
    %p92 = scmp.eq.s32.totalorder %s14, 2
    %p93 = por %p91, %p92
    %p94 = scmp.ne.s32.totalorder %s85, %s86
    %p95 = scmp.eq.s32.totalorder %s14, 0
    %p96 = por %p94, %p95
    %p97 = scmp.ne.s32.totalorder %s85, %s86
    %p98 = scmp.eq.s32.totalorder %s15, 2
    %p99 = por %p97, %p98
    %p101 = scmp.ne.s32.totalorder %s86, %s100
    %p102 = scmp.eq.s32.totalorder %s15, 0
    %p103 = por %p101, %p102
    %s104 = ssub.s32 %s16, %s28
    %p105 = scmp.eq.s32.totalorder %s104, 0
    %s107 = sadd.s32 %s106, 1
    %s108 = scalar_select %p105, %s106, %s107
    %p111 = pneg %p105
    %p112 = scmp.eq.s32.totalorder %s9, 2
    %p113 = por %p111, %p112
    %p114 = scmp.ne.s32.totalorder %s106, %s109
    %p115 = scmp.eq.s32.totalorder %s9, 0
    %p116 = por %p114, %p115
    %p117 = scmp.ne.s32.totalorder %s106, %s109
    %p118 = scmp.eq.s32.totalorder %s14, 2
    %p119 = por %p117, %p118
    %p120 = scmp.ne.s32.totalorder %s109, %s110
    %p121 = scmp.eq.s32.totalorder %s14, 0
    %p122 = por %p120, %p121
    %p123 = scmp.ne.s32.totalorder %s109, %s110
    %p124 = scmp.eq.s32.totalorder %s15, 2
    %p125 = por %p123, %p124
    %p127 = scmp.ne.s32.totalorder %s110, %s126
    %p128 = scmp.eq.s32.totalorder %s15, 0
    %p129 = por %p127, %p128
    %p130 = scmp.le.s32.totalorder 1, %s9
    %p131 = scmp.lt.s32.totalorder %s9, 4
    %p132 = pnand %p130, %p131
    %p133 = pneg %p132
    // Predicated region
    $region9: #{encoder_forward.9} parent=5 // pred_check
      _
    $region10: #{encoder_forward.9} parent=5 // pred_check_branch
      %135 = sbr.rel (%p132) target = $region12
    $region11: #{encoder_forward.9} parent=5 // pred_region
      %s136 = ssub.s32 %s9, 1
      // Predicated region
      $region13: #{encoder_forward.9} parent=11 // pred_check
        %p137 = pneg %p96
      $region14: #{encoder_forward.9} parent=11 // pred_check_branch
        %139 = sbr.rel (%p137) target = $region16
      $region15: #{encoder_forward.9} parent=11 // pred_region
        _
      $region16: #{encoder_forward.9} parent=11 // pred_fallthru
        _
    $region12: #{encoder_forward.9} parent=5 // pred_fallthru
      _
    %p140 = scmp.lt.s32.totalorder %s9, 3
    // Predicated region
    $region17: #{encoder_forward.9} parent=5 // pred_check
      %p141 = pneg %p140
    $region18: #{encoder_forward.9} parent=5 // pred_check_branch
      %143 = sbr.rel (%p141) target = $region20
    $region19: #{encoder_forward.9} parent=5 // pred_region
      // Predicated region
      $region21: #{encoder_forward.9} parent=19 // pred_check
        %p144 = pneg %p43
      $region22: #{encoder_forward.9} parent=19 // pred_check_branch
        %146 = sbr.rel (%p144) target = $region24
      $region23: #{encoder_forward.9} parent=19 // pred_region
        %s147 = smul.u32 3, %s17
        %p148 = scmp.lt.s32.totalorder %s16, 0
        %s149 = scalar_select %p148, %s16, 0
        %p150 = scmp.lt.s32.totalorder %s147, 8
        %s151 = scalar_select %p150, %s147, 8
        %s152 = smul.addr %s149, 9
        %s153 = sadd.s32 %s151, %s152
        %s154 = smul.addr %s153, 4
        %s155 = scalar_lea.vmem %s0, %s154
        %s156 = smul.u32 3, %s17
      $region24: #{encoder_forward.9} parent=19 // pred_fallthru
        _
      // Predicated region
      $region25: #{encoder_forward.9} parent=19 // pred_check
        %p157 = pneg %p69
      $region26: #{encoder_forward.9} parent=19 // pred_check_branch
        %159 = sbr.rel (%p157) target = $region28
      $region27: #{encoder_forward.9} parent=19 // pred_region
        %s160 = smul.u32 48, %s17
        %p161 = scmp.lt.s32.totalorder %s160, 143
        %s162 = scalar_select %p161, %s160, 143
        %s163 = smul.addr %s162, 4
        %s164 = scalar_lea.vmem %s1, %s163
        %s165 = smul.u32 48, %s17
      $region28: #{encoder_forward.9} parent=19 // pred_fallthru
        _
    $region20: #{encoder_forward.9} parent=5 // pred_fallthru
      _
    %p166 = scmp.le.s32.totalorder 1, %s9
    %p167 = scmp.lt.s32.totalorder %s9, 4
    %p168 = pnand %p166, %p167
    %p169 = pneg %p168
    // Predicated region
    $region29: #{encoder_forward.9} parent=5 // pred_check
      _
    $region30: #{encoder_forward.9} parent=5 // pred_check_branch
      %171 = sbr.rel (%p168) target = $region32
    $region31: #{encoder_forward.9} parent=5 // pred_region
      %s172 = ssub.s32 %s9, 1
      %s173 = smul.u32 3, %s19
      %p174 = scmp.lt.s32.totalorder %s18, 0
      %s175 = scalar_select %p174, %s18, 0
      %p176 = scmp.lt.s32.totalorder %s173, 8
      %s177 = scalar_select %p176, %s173, 8
      %s178 = smul.addr %s175, 9
      %s179 = sadd.s32 %s177, %s178
      %s180 = smul.addr %s179, 4
      %s181 = scalar_lea.vmem %s0, %s180
      %p182 = pneg %p49
      %p183 = pneg %p46
      %s184 = smul.u32 48, %s19
      %p185 = scmp.lt.s32.totalorder %s184, 143
      %s186 = scalar_select %p185, %s184, 143
      %s187 = smul.addr %s186, 4
      %s188 = scalar_lea.vmem %s1, %s187
      %p189 = pneg %p75
      %p190 = pneg %p72
      %p191 = pneg %p96
      %p192 = pneg %p93
      %p193 = pneg %p122
      %p194 = pneg %p119
      %p195 = scmp.lt.s32.totalorder %s18, 0
      %s196 = scalar_select %p195, %s18, 0
      %s197 = smul.addr %s196, 8
      %s198 = scalar_lea.vmem %s3, %s197
      %s199 = smul.u32 3, %s19
      %p200 = scmp.lt.s32.totalorder %s18, 0
      %s201 = scalar_select %p200, %s18, 0
      %p202 = scmp.lt.s32.totalorder %s199, 8
      %s203 = scalar_select %p202, %s199, 8
      %s204 = smul.addr %s201, 9
      %s205 = sadd.s32 %s203, %s204
      %s206 = smul.addr %s205, 4
      %s207 = scalar_lea.vmem %s0, %s206
      %s208 = smul.u32 3, %s19
      %s209 = smul.u32 48, %s19
      %p210 = scmp.lt.s32.totalorder %s209, 143
      %s211 = scalar_select %p210, %s209, 143
      %s212 = smul.addr %s211, 4
      %s213 = scalar_lea.vmem %s1, %s212
      %s214 = smul.u32 48, %s19
      %p215 = scmp.lt.s32.totalorder %s18, 0
      %s216 = scalar_select %p215, %s18, 0
      %s217 = smul.addr %s216, 8
      %s218 = scalar_lea.vmem %s3, %s217
      %p220 = scmp.eq.s32.totalorder %s19, 0
      // Predicated region
      $region33: #{encoder_forward.9} parent=31 // pred_check
        %p221 = pneg %p220
      $region34: #{encoder_forward.9} parent=31 // pred_check_branch
        %223 = sbr.rel (%p221) target = $region36
      $region35: #{encoder_forward.9} parent=31 // pred_region
        %v224 = vld [vmem:[%s2] sm:$0x1]
        %v226 = vlaneseq
        %v227 = vshrl.u32 %v226, 7
        %v228 = vsub.s32 0, %v227
        %v229 = vrot.slane %v224, %v228
        %v231 = vadd.f32 %v229, 0.0
        %232 = vst [vmem:[%s218] sm:$0xff] %v231
      $region36: #{encoder_forward.9} parent=31 // pred_fallthru
        _
      %v233 = vld [vmem:[%s218] sm:$0xff]
      %v234 = vld [vmem:[%s207] sm:$0xff]
      %v235 = vld [vmem:[%s207 + $0x8] sm:$0xf]
      %v236 = vld [vmem:[%s213] sm:$0xf]
      %v237 = vld [vmem:[%s213 + $0x4] sm:$0xf]
      %v238 = vld [vmem:[%s213 + $0x8] sm:$0xf]
      %v239 = vld [vmem:[%s213 + $0xc] sm:$0xf]
      %v240 = vld [vmem:[%s213 + $0x10] sm:$0xf]
      %v241 = vld [vmem:[%s213 + $0x14] sm:$0xf]
      %v242 = vld [vmem:[%s213 + $0x18] sm:$0xf]
      %v243 = vld [vmem:[%s213 + $0x1c] sm:$0xf]
      %v244 = vld [vmem:[%s213 + $0x20] sm:$0xf]
      %v245 = vld [vmem:[%s213 + $0x24] sm:$0xf]
      %v246 = vld [vmem:[%s213 + $0x28] sm:$0xf]
      %v247 = vld [vmem:[%s213 + $0x2c] sm:$0xf]
      %v248 = vld [vmem:[%s213 + $0x30] sm:$0xf]
      %v249 = vld [vmem:[%s213 + $0x34] sm:$0xf]
      %v250 = vld [vmem:[%s213 + $0x38] sm:$0xf]
      %v251 = vld [vmem:[%s213 + $0x3c] sm:$0xf]
      %v252 = vld [vmem:[%s213 + $0x40] sm:$0xf]
      %v253 = vld [vmem:[%s213 + $0x44] sm:$0xf]
      %v254 = vld [vmem:[%s213 + $0x48] sm:$0xf]
      %v255 = vld [vmem:[%s213 + $0x4c] sm:$0xf]
      %v256 = vld [vmem:[%s213 + $0x50] sm:$0xf]
      %v257 = vld [vmem:[%s213 + $0x54] sm:$0xf]
      %v258 = vld [vmem:[%s213 + $0x58] sm:$0xf]
      %v259 = vld [vmem:[%s213 + $0x5c] sm:$0xf]
      %v260 = vld [vmem:[%s213 + $0x60] sm:$0xf]
      %v261 = vld [vmem:[%s213 + $0x64] sm:$0xf]
      %v262 = vld [vmem:[%s213 + $0x68] sm:$0xf]
      %v263 = vld [vmem:[%s213 + $0x6c] sm:$0xf]
      %v264 = vld [vmem:[%s213 + $0x70] sm:$0xf]
      %v265 = vld [vmem:[%s213 + $0x74] sm:$0xf]
      %v266 = vld [vmem:[%s213 + $0x78] sm:$0xf]
      %v267 = vld [vmem:[%s213 + $0x7c] sm:$0xf]
      %v268 = vld [vmem:[%s213 + $0x80] sm:$0xf]
      %v269 = vld [vmem:[%s213 + $0x84] sm:$0xf]
      %v270 = vld [vmem:[%s213 + $0x88] sm:$0xf]
      %v271 = vld [vmem:[%s213 + $0x8c] sm:$0xf]
      %v272 = vld [vmem:[%s213 + $0x90] sm:$0xf]
      %v273 = vld [vmem:[%s213 + $0x94] sm:$0xf]
      %v274 = vld [vmem:[%s213 + $0x98] sm:$0xf]
      %v275 = vld [vmem:[%s213 + $0x9c] sm:$0xf]
      %v276 = vld [vmem:[%s213 + $0xa0] sm:$0xf]
      %v277 = vld [vmem:[%s213 + $0xa4] sm:$0xf]
      %v278 = vld [vmem:[%s213 + $0xa8] sm:$0xf]
      %v279 = vld [vmem:[%s213 + $0xac] sm:$0xf]
      %v280 = vld [vmem:[%s213 + $0xb0] sm:$0xf]
      %v281 = vld [vmem:[%s213 + $0xb4] sm:$0xf]
      %v282 = vld [vmem:[%s213 + $0xb8] sm:$0xf]
      %v283 = vld [vmem:[%s213 + $0xbc] sm:$0xf]
      %v286 = vunpack.c.l.b16 %v234
      %v287 = vunpack.c.h.b16 %v234
      %v288 = vunpack.c.l.b16 %v235
      %v289 = vpack.c.b16 %v286, %v286
      %v290 = vpack.c.b16 %v287, %v287
      %v291 = vpack.c.b16 %v288, %v288
      %v343 = vunpack.c.l.b16 %v236
      %v344 = vunpack.c.l.b16 %v237
      %v345 = vunpack.c.l.b16 %v238
      %v346 = vunpack.c.l.b16 %v239
      %v347 = vunpack.c.l.b16 %v240
      %v348 = vunpack.c.l.b16 %v241
      %v349 = vunpack.c.l.b16 %v242
      %v350 = vunpack.c.l.b16 %v243
      %v351 = vunpack.c.l.b16 %v244
      %v352 = vunpack.c.l.b16 %v245
      %v353 = vunpack.c.l.b16 %v246
      %v354 = vunpack.c.l.b16 %v247
      %v355 = vunpack.c.l.b16 %v248
      %v356 = vunpack.c.l.b16 %v249
      %v357 = vunpack.c.l.b16 %v250
      %v358 = vunpack.c.l.b16 %v251
      %v359 = vunpack.c.l.b16 %v252
      %v360 = vunpack.c.l.b16 %v253
      %v361 = vunpack.c.l.b16 %v254
      %v362 = vunpack.c.l.b16 %v255
      %v363 = vunpack.c.l.b16 %v256
      %v364 = vunpack.c.l.b16 %v257
      %v365 = vunpack.c.l.b16 %v258
      %v366 = vunpack.c.l.b16 %v259
      %v367 = vunpack.c.l.b16 %v260
      %v368 = vunpack.c.l.b16 %v261
      %v369 = vunpack.c.l.b16 %v262
      %v370 = vunpack.c.l.b16 %v263
      %v371 = vunpack.c.l.b16 %v264
      %v372 = vunpack.c.l.b16 %v265
      %v373 = vunpack.c.l.b16 %v266
      %v374 = vunpack.c.l.b16 %v267
      %v375 = vunpack.c.l.b16 %v268
      %v376 = vunpack.c.l.b16 %v269
      %v377 = vunpack.c.l.b16 %v270
      %v378 = vunpack.c.l.b16 %v271
      %v379 = vunpack.c.l.b16 %v272
      %v380 = vunpack.c.l.b16 %v273
      %v381 = vunpack.c.l.b16 %v274
      %v382 = vunpack.c.l.b16 %v275
      %v383 = vunpack.c.l.b16 %v276
      %v384 = vunpack.c.l.b16 %v277
      %v385 = vunpack.c.l.b16 %v278
      %v386 = vunpack.c.l.b16 %v279
      %v387 = vunpack.c.l.b16 %v280
      %v388 = vunpack.c.l.b16 %v281
      %v389 = vunpack.c.l.b16 %v282
      %v390 = vunpack.c.l.b16 %v283
      %v391 = vpack.c.b16 %v344, %v343
      %v392 = vpack.c.b16 %v346, %v345
      %v393 = vpack.c.b16 %v348, %v347
      %v394 = vpack.c.b16 %v350, %v349
      %v395 = vpack.c.b16 %v352, %v351
      %v396 = vpack.c.b16 %v354, %v353
      %v397 = vpack.c.b16 %v356, %v355
      %v398 = vpack.c.b16 %v358, %v357
      %v399 = vpack.c.b16 %v360, %v359
      %v400 = vpack.c.b16 %v362, %v361
      %v401 = vpack.c.b16 %v364, %v363
      %v402 = vpack.c.b16 %v366, %v365
      %v403 = vpack.c.b16 %v368, %v367
      %v404 = vpack.c.b16 %v370, %v369
      %v405 = vpack.c.b16 %v372, %v371
      %v406 = vpack.c.b16 %v374, %v373
      %v407 = vpack.c.b16 %v376, %v375
      %v408 = vpack.c.b16 %v378, %v377
      %v409 = vpack.c.b16 %v380, %v379
      %v410 = vpack.c.b16 %v382, %v381
      %v411 = vpack.c.b16 %v384, %v383
      %v412 = vpack.c.b16 %v386, %v385
      %v413 = vpack.c.b16 %v388, %v387
      %v414 = vpack.c.b16 %v390, %v389
      %439 = vmatprep.subr.bf16.mxu0 0
      %440 = vmatpush1.bf16.msra.mxu0 %v398
      %441 = vmatprep.subr.bf16.mxu0 0
      %442 = vmatpush1.bf16.msra.mxu0 %v397
      %443 = vmatprep.subr.bf16.mxu0 0
      %444 = vmatpush1.bf16.msra.mxu0 %v396
      %445 = vmatprep.subr.bf16.mxu0 0
      %446 = vmatpush1.bf16.msra.mxu0 %v395
      %447 = vmatprep.subr.bf16.mxu0 0
      %448 = vmatpush1.bf16.msra.mxu0 %v394
      %449 = vmatprep.subr.bf16.mxu0 0
      %450 = vmatpush1.bf16.msra.mxu0 %v393
      %451 = vmatprep.subr.bf16.mxu0 0
      %452 = vmatpush1.bf16.msra.mxu0 %v392
      %453 = vmatprep.subr.bf16.mxu0 0
      %454 = vmatpush1.bf16.msra.mxu0 %v391
      %455 = vmatprep.subr.bf16.mxu0 0
      %456 = vmatpush2.bf16.msra.mxu0 %v406
      %457 = vmatprep.subr.bf16.mxu0 0
      %458 = vmatpush2.bf16.msra.mxu0 %v405
      %459 = vmatprep.subr.bf16.mxu0 0
      %460 = vmatpush2.bf16.msra.mxu0 %v404
      %461 = vmatprep.subr.bf16.mxu0 0
      %462 = vmatpush2.bf16.msra.mxu0 %v403
      %463 = vmatprep.subr.bf16.mxu0 0
      %464 = vmatpush2.bf16.msra.mxu0 %v402
      %465 = vmatprep.subr.bf16.mxu0 0
      %466 = vmatpush2.bf16.msra.mxu0 %v401
      %467 = vmatprep.subr.bf16.mxu0 0
      %468 = vmatpush2.bf16.msra.mxu0 %v400
      %469 = vmatprep.subr.bf16.mxu0 0
      %470 = vmatpush2.bf16.msra.mxu0 %v399
      %471 = vmatprep.mubr.bf16.mxu0 %v290
      %472 = vmatmul.mubr.bf16.gmra.mxu0 %v289
      %v473 = vpop.f32.mrf.mxu0
      %v474 = vadd.f32 0.0, %v473
      %v475 = vpop.f32.mrf.mxu0
      %v476 = vpop.f32.mrf.mxu0
      %v477 = vpop.f32.mrf.mxu0
      %478 = vdwg.mxu0
      %479 = vmatprep.subr.bf16.mxu0 0
      %480 = vmatpush1.bf16.msra.mxu0 %v414
      %481 = vmatprep.subr.bf16.mxu0 0
      %482 = vmatpush1.bf16.msra.mxu0 %v413
      %483 = vmatprep.subr.bf16.mxu0 0
      %484 = vmatpush1.bf16.msra.mxu0 %v412
      %485 = vmatprep.subr.bf16.mxu0 0
      %486 = vmatpush1.bf16.msra.mxu0 %v411
      %487 = vmatprep.subr.bf16.mxu0 0
      %488 = vmatpush1.bf16.msra.mxu0 %v410
      %489 = vmatprep.subr.bf16.mxu0 0
      %490 = vmatpush1.bf16.msra.mxu0 %v409
      %491 = vmatprep.subr.bf16.mxu0 0
      %492 = vmatpush1.bf16.msra.mxu0 %v408
      %493 = vmatprep.subr.bf16.mxu0 0
      %494 = vmatpush1.bf16.msra.mxu0 %v407
      %495 = vmatprep.subr.bf16.mxu0 0
      %496 = vmatpush2.bf16.msra.mxu0 0
      %497 = vmatprep.subr.bf16.mxu0 0
      %498 = vmatpush2.bf16.msra.mxu0 0
      %499 = vmatprep.subr.bf16.mxu0 0
      %500 = vmatpush2.bf16.msra.mxu0 0
      %501 = vmatprep.subr.bf16.mxu0 0
      %502 = vmatpush2.bf16.msra.mxu0 0
      %503 = vmatprep.subr.bf16.mxu0 0
      %504 = vmatpush2.bf16.msra.mxu0 0
      %505 = vmatprep.subr.bf16.mxu0 0
      %506 = vmatpush2.bf16.msra.mxu0 0
      %507 = vmatprep.subr.bf16.mxu0 0
      %508 = vmatpush2.bf16.msra.mxu0 0
      %509 = vmatprep.subr.bf16.mxu0 0
      %510 = vmatpush2.bf16.msra.mxu0 0
      %511 = vmatprep.mubr.bf16.mxu0 0
      %512 = vmatmul.mubr.bf16.gmra.mxu0 %v291
      %v513 = vpop.f32.mrf.mxu0
      %v514 = vadd.f32 %v474, %v513
      %v515 = vpop.f32.mrf.mxu0
      %v516 = vpop.f32.mrf.mxu0
      %v517 = vpop.f32.mrf.mxu0
      %518 = vdwg.mxu0
      %v519 = vadd.f32 %v233, %v514
      %520 = vst [vmem:[%s218] sm:$0xff] %v519
      %p521 = scmp.lt.s32.totalorder %s18, 0
      %s522 = scalar_select %p521, %s18, 0
      %s523 = smul.addr %s522, 8
      %s524 = scalar_lea.vmem %s3, %s523
      // Predicated region
      $region37: #{encoder_forward.9} parent=31 // pred_check
        %p525 = pneg %p119
      $region38: #{encoder_forward.9} parent=31 // pred_check_branch
        %527 = sbr.rel (%p525) target = $region40
      $region39: #{encoder_forward.9} parent=31 // pred_region
        _
      $region40: #{encoder_forward.9} parent=31 // pred_fallthru
        _
      // Predicated region
      $region41: #{encoder_forward.9} parent=31 // pred_check
        %p528 = pneg %p119
      $region42: #{encoder_forward.9} parent=31 // pred_check_branch
        %530 = sbr.rel (%p528) target = $region44
      $region43: #{encoder_forward.9} parent=31 // pred_region
        %p531 = scmp.lt.s32.totalorder %s18, 0
        %s532 = scalar_select %p531, %s18, 0
        %s533 = smul.addr %s532, 8
        %s534 = scalar_lea.vmem %s3, %s533
      $region44: #{encoder_forward.9} parent=31 // pred_fallthru
        _
    $region32: #{encoder_forward.9} parent=5 // pred_fallthru
      _
    %p535 = scmp.le.s32.totalorder 2, %s9
    // Predicated region
    $region45: #{encoder_forward.9} parent=5 // pred_check
      %p536 = pneg %p535
    $region46: #{encoder_forward.9} parent=5 // pred_check_branch
      %538 = sbr.rel (%p536) target = $region48
    $region47: #{encoder_forward.9} parent=5 // pred_region
      %s539 = ssub.s32 %s9, 2
    $region48: #{encoder_forward.9} parent=5 // pred_fallthru
      _
  $region6: #{encoder_forward.9} parent=0 // loop_footer
    %s13 = sadd.s32 1, %s9
  $region7: #{encoder_forward.9} parent=0 // loop_footer_branch
    %8 = sbr.rel target = $region3
  $region8: #{encoder_forward.9} parent=0 // loop_exit
    _

</llo_original>
